<compile_context>
chip_gen: v5e
topology: v5e:2x2
jax: 0.10.0
libtpu: 0.0.40
codegen_flags: <defaults>
</compile_context>

<pallas_src>
import functools

import jax
import jax.numpy as jnp
from jax.experimental import pallas as pl
from jax.experimental.pallas import tpu as pltpu


# ----------------------------- Pallas kernel ------------------------------ #
def _mixer_kernel(H, W, C, B,
                  x_ref, wqkv_ref, sp_planes_ref, dwc_planes_ref, proj_planes_ref,
                  bias_ref, attA_ref, gateG_ref, wc_ref, poolS_ref, expE_ref,
                  o_ref):
    HW = H * W
    BHW = B * HW
    C2 = 2 * C
    inv_hw = 1.0 / float(HW)
    offs = [(dy, dx) for dy in (-1, 0, 1) for dx in (-1, 0, 1)]

    x = x_ref[...]                                                # (C, BHW) f32

    # Fused q|k|v 1x1 conv: one MXU matmul (3C, C) @ (C, B*HW).
    qkv = jnp.dot(wqkv_ref[...], x, preferred_element_type=jnp.float32)    # (3C, BHW)
    qk = qkv[0:C2, :]                                             # q and k, concatenated
    v = qkv[C2:3 * C, :]                                          # (C, BHW)

    def dw3x3(t, planes_ref, bias, num_acc):
        # Depthwise 3x3 conv (padding=1) on a channel-major (Cc, B*HW) tile.
        # Image-border (and cross-image) masks are pre-folded into the per-tap weight
        # planes on the host, so each tap is one roll (XLU) + one multiply (VALU).
        # The sum is split over `num_acc` partial accumulators to break the serial
        # f32 add chain (f32 adds are not reassociated by the compiler).
        accs = []
        for idx, (dy, dx) in enumerate(offs):
            plane = planes_ref[idx]                               # (Cc, BHW)
            if dy == 0 and dx == 0:
                term = t * plane                                  # centre tap: no roll
            else:
                shift = (-(dy * W + dx)) % BHW
                # rolled[:, p] = t[:, p + dy*W + dx]; any pull across an image border
                # (incl. across concatenated images) is zeroed by the folded mask.
                term = pltpu.roll(t, shift, axis=1) * plane
            if len(accs) < num_acc:
                accs.append(term)
            else:
                accs[idx % num_acc] = accs[idx % num_acc] + term
        accs[0] = accs[0] + bias                                  # (Cc, 1) broadcast
        while len(accs) > 1:                                      # pairwise tree-sum
            nxt = [accs[i] + accs[i + 1] for i in range(0, len(accs) - 1, 2)]
            if len(accs) % 2:
                nxt.append(accs[-1])
            accs = nxt
        return accs[0]

    # SpatialOperation on concatenated q|k (BN folded into the DW taps on the host):
    #   t * sigmoid(Conv1x1_{C->1}(ReLU(BN(DWConv3x3(t)))))
    s = jnp.maximum(dw3x3(qk, sp_planes_ref, bias_ref[:, 0:1], 2), 0.0)    # (2C, BHW)
    # C->1 attention conv for q and k at once as a (2, 2C) MXU matmul; broadcast the
    # sigmoid gate back to 2C rows with a one-hot (2C, 2) matmul (no sublane reduce
    # trees, no sublane concatenate copy).
    att = jnp.dot(attA_ref[...], s, preferred_element_type=jnp.float32)    # (2, BHW)
    gate = jnp.dot(gateG_ref[...], jax.nn.sigmoid(att),
                   preferred_element_type=jnp.float32)                     # (2C, BHW)
    qkg = qk * gate

    # ChannelOperation: t * sigmoid(Conv1x1_{C->C}(GlobalAvgPool(t))), per image.
    # Pool first via an indicator (BHW, B) matmul (per-image means stay segmented under
    # lane concatenation), apply the block-diagonal 1x1 conv on the tiny (2C, B) pooled
    # matrix, then broadcast the gate back with the (B, BHW) indicator matmul.
    pooled = jnp.dot(qkg, poolS_ref[...],
                     preferred_element_type=jnp.float32) * inv_hw          # (2C, B)
    y = jnp.dot(wc_ref[...], pooled, preferred_element_type=jnp.float32)   # (2C, B)
    cgate = jnp.dot(jax.nn.sigmoid(y), expE_ref[...],
                    preferred_element_type=jnp.float32)                    # (2C, BHW)
    qk2 = qkg * cgate

    # out = DWConv3x3_proj(DWConv3x3_dwc(q + k) * v);  proj_drop(p=0.0) -> identity.
    d = dw3x3(qk2[0:C, :] + qk2[C:C2, :], dwc_planes_ref, bias_ref[0:C, 1:2], 4)
    out = dw3x3(d * v, proj_planes_ref, bias_ref[C:C2, 1:2], 4)
    o_ref[...] = out.astype(o_ref.dtype)


# ------------------------------ host wrapper ------------------------------ #
def _choose_batch(N, C, HW, budget_bytes=16 * 1024 * 1024):
    """Pick images-per-grid-step: amortize per-step overhead, stay inside VMEM,
    and keep >= 2 grid steps so both v7x TensorCores get work."""
    per_img = 2 * 2 * (C * HW * 4)                      # x + out blocks, double-buffered
    per_img += 2 * 9 * (4 * C) * HW * 4                 # sp(2C)+dwc(C)+proj(C) planes, dbl-buf
    per_img += 8 * (3 * C * HW * 4)                     # live f32 intermediates (rough)
    best = 1
    for b in range(1, N + 1):
        if N % b:
            continue
        if N >= 2 and N // b < 2:                       # keep >=2 steps (v7x megacore)
            continue
        if b * per_img <= budget_bytes:
            best = b
    return best


def additive_token_mixer(x_nchw, weights, batch_per_step=None):
    """x_nchw: (N, C, H, W) f32; weights: output of prep_kernel_weights."""
    N, C, H, W = x_nchw.shape
    HW = H * W
    B = batch_per_step if batch_per_step is not None else _choose_batch(N, C, HW)
    assert N % B == 0
    BHW = B * HW

    # Tile the per-image (mask-folded) weight planes across the B lane-concatenated
    # images; build the per-image pool / broadcast indicator matrices.
    sp_planes = jnp.tile(weights["sp_planes"], (1, 1, B))     # (9, 2C, BHW)
    dwc_planes = jnp.tile(weights["dwc_planes"], (1, 1, B))   # (9, C, BHW)
    proj_planes = jnp.tile(weights["proj_planes"], (1, 1, B))
    expE = jnp.kron(jnp.eye(B, dtype=jnp.float32),
                    jnp.ones((1, HW), jnp.float32))           # (B, BHW) indicator
    poolS = expE.T                                            # (BHW, B) indicator

    # Channel-major, lane-concatenated layout: column n*HW + y*W + x.
    x = x_nchw.transpose(1, 0, 2, 3).reshape(C, N * HW)

    kern = functools.partial(_mixer_kernel, H, W, C, B)

    def const(arr):
        shape = arr.shape
        return pl.BlockSpec(shape, lambda b: (0,) * len(shape))

    in_specs = [
        pl.BlockSpec((C, BHW), lambda b: (0, b)),             # B images per grid step
        const(weights["wqkv"]),
        const(sp_planes),
        const(dwc_planes),
        const(proj_planes),
        const(weights["bias_pack"]),
        const(weights["attA"]),
        const(weights["gateG"]),
        const(weights["wc_bd"]),
        const(poolS),
        const(expE),
    ]
    out = pl.pallas_call(
        kern,
        out_shape=jax.ShapeDtypeStruct((C, N * HW), jnp.float32),
        grid_spec=pltpu.PrefetchScalarGridSpec(
            num_scalar_prefetch=0,
            grid=(N // B,),
            in_specs=in_specs,
            out_specs=pl.BlockSpec((C, BHW), lambda b: (0, b)),
        ),
        compiler_params=pltpu.CompilerParams(
            dimension_semantics=("parallel",),
            vmem_limit_bytes=32 * 1024 * 1024,
        ),
    )(x, weights["wqkv"], sp_planes, dwc_planes, proj_planes,
      weights["bias_pack"], weights["attA"], weights["gateG"], weights["wc_bd"],
      poolS, expE)
    return out.reshape(C, N, H, W).transpose(1, 0, 2, 3)


# -------------------------- parameter construction ------------------------ #
def init_params(key, C):
    ks = list(jax.random.split(key, 24))
    it = iter(ks)

    def nrm(shape, scale=0.2):
        return jax.random.normal(next(it), shape, jnp.float32) * scale

    p = {"w_qkv": nrm((3 * C, C))}                  # Conv2d(C, 3C, 1), bias=False
    for name in ("q", "k"):
        p[f"{name}_dw_w"] = nrm((C, 3, 3))          # DW Conv2d(C, C, 3, groups=C)
        p[f"{name}_dw_b"] = nrm((C,))
        p[f"{name}_bn_gamma"] = 1.0 + nrm((C,), 0.05)
        p[f"{name}_bn_beta"] = nrm((C,), 0.05)
        p[f"{name}_bn_mean"] = nrm((C,), 0.05)
        p[f"{name}_bn_var"] = 1.0 + jnp.abs(nrm((C,), 0.05))
        p[f"{name}_att_w"] = nrm((C,))              # Conv2d(C, 1, 1), bias=False
        p[f"{name}_ch_w"] = nrm((C, C))             # Conv2d(C, C, 1), bias=False
    p["dwc_w"], p["dwc_b"] = nrm((C, 3, 3)), nrm((C,))
    p["proj_w"], p["proj_b"] = nrm((C, 3, 3)), nrm((C,))
    return p


def prep_kernel_weights(p, C, H, W, eps=1e-5):
    HW = H * W

    # Border masks for the 9 depthwise taps over the flattened (row-major) H*W axis.
    yy = jnp.arange(H)[:, None]
    xx = jnp.arange(W)[None, :]
    rows = []
    for dy in (-1, 0, 1):
        for dx in (-1, 0, 1):
            m = ((yy + dy >= 0) & (yy + dy < H) & (xx + dx >= 0) & (xx + dx < W))
            rows.append(m.astype(jnp.float32).reshape(1, HW))
    masks = jnp.concatenate(rows, axis=0)                             # (9, HW)

    def fold(name):
        # Fold eval-mode BatchNorm into the preceding depthwise conv.
        scale = p[f"{name}_bn_gamma"] / jnp.sqrt(p[f"{name}_bn_var"] + eps)
        sw = (p[f"{name}_dw_w"] * scale[:, None, None]).reshape(C, 9)
        sb = (p[f"{name}_dw_b"] - p[f"{name}_bn_mean"]) * scale + p[f"{name}_bn_beta"]
        return sw, sb

    swq, sbq = fold("q")
    swk, sbk = fold("k")
    sp_w = jnp.concatenate([swq, swk], axis=0)                        # (2C, 9)
    sp_b = jnp.concatenate([sbq, sbk], axis=0)                        # (2C,)

    def planes(w9):
        # Fold the border mask into each tap's weight plane: (9, Crows, HW).
        return w9.T[:, :, None] * masks[:, None, :]

    sp_planes = planes(sp_w)                                          # (9, 2C, HW)
    dwc_planes = planes(p["dwc_w"].reshape(C, 9))                     # (9, C, HW)
    proj_planes = planes(p["proj_w"].reshape(C, 9))                   # (9, C, HW)

    # Biases: col 0 = folded spatial bias (q|k), col 1 = [dwc bias ; proj bias].
    bias_pack = jnp.stack(
        [sp_b, jnp.concatenate([p["dwc_b"], p["proj_b"]], axis=0)], axis=1)  # (2C, 2)

    # C->1 attention conv for q and k as one (2, 2C) matrix; one-hot broadcast matrix.
    attA = (jnp.zeros((2, 2 * C), jnp.float32)
            .at[0, :C].set(p["q_att_w"]).at[1, C:].set(p["k_att_w"]))
    gateG = (jnp.zeros((2 * C, 2), jnp.float32)
             .at[:C, 0].set(1.0).at[C:, 1].set(1.0))

    # Block-diagonal channel-mixing weights for concatenated q|k.
    wc_bd = (jnp.zeros((2 * C, 2 * C), jnp.float32)
             .at[:C, :C].set(p["q_ch_w"]).at[C:, C:].set(p["k_ch_w"]))

    return dict(wqkv=p["w_qkv"], sp_planes=sp_planes, dwc_planes=dwc_planes,
                proj_planes=proj_planes, bias_pack=bias_pack, attA=attA,
                gateG=gateG, wc_bd=wc_bd)


# --------------------------- pure-JAX reference ---------------------------- #
def ref_forward(x, p, eps=1e-5):
    N, C, H, W = x.shape

    def conv1x1(t, w):  # w: (Cout, Cin)
        return jnp.einsum("nchw,oc->nohw", t, w)

    def dw3x3(t, w, b):  # w: (C,3,3), b: (C,)
        tp = jnp.pad(t, ((0, 0), (0, 0), (1, 1), (1, 1)))
        out = jnp.zeros_like(t)
        for ky in range(3):
            for kx in range(3):
                out = out + tp[:, :, ky:ky + H, kx:kx + W] * w[:, ky, kx][None, :, None, None]
        return out + b[None, :, None, None]

    def spatial(t, name):
        s = dw3x3(t, p[f"{name}_dw_w"], p[f"{name}_dw_b"])
        s = ((s - p[f"{name}_bn_mean"][None, :, None, None])
             / jnp.sqrt(p[f"{name}_bn_var"] + eps)[None, :, None, None]
             * p[f"{name}_bn_gamma"][None, :, None, None]
             + p[f"{name}_bn_beta"][None, :, None, None])
        s = jnp.maximum(s, 0.0)
        att = jnp.einsum("nchw,c->nhw", s, p[f"{name}_att_w"])[:, None]
        return t * jax.nn.sigmoid(att)

    def channel(t, name):
        m = jnp.mean(t, axis=(2, 3), keepdims=True)
        return t * jax.nn.sigmoid(conv1x1(m, p[f"{name}_ch_w"]))

    qkv = conv1x1(x, p["w_qkv"])
    q, k, v = jnp.split(qkv, 3, axis=1)
    q = channel(spatial(q, "q"), "q")
    k = channel(spatial(k, "k"), "k")
    d = dw3x3(q + k, p["dwc_w"], p["dwc_b"])
    return dw3x3(d * v, p["proj_w"], p["proj_b"])


# ----------------------------------- main ---------------------------------- #
if __name__ == "__main__":
    N, C, H, W = 4, 32, 16, 16                      # NCHW, as in the PyTorch module
    key = jax.random.PRNGKey(0)
    kx, kp = jax.random.split(key)
    x = jax.random.normal(kx, (N, C, H, W), jnp.float32)
    params = init_params(kp, C)
    weights = prep_kernel_weights(params, C, H, W)

    out = jax.block_until_ready(additive_token_mixer(x, weights))

    ref = ref_forward(x, params)
    assert out.shape == (N, C, H, W)
    err = float(jnp.max(jnp.abs(out - ref)))
    assert jnp.allclose(out, ref, rtol=5e-4, atol=5e-4), f"max abs err {err}"
    print("KERNEL_OK")
</pallas_src>

<mosaic_0001>
module attributes {stable_mosaic.version = 11 : i64} {
  func.func @_mixer_kernel(%arg0: i32, %arg1: memref<32x512xf32, #tpu.memory_space<vmem>>, %arg2: memref<96x32xf32, #tpu.memory_space<vmem>>, %arg3: memref<9x64x512xf32, #tpu.memory_space<vmem>>, %arg4: memref<9x32x512xf32, #tpu.memory_space<vmem>>, %arg5: memref<9x32x512xf32, #tpu.memory_space<vmem>>, %arg6: memref<64x2xf32, #tpu.memory_space<vmem>>, %arg7: memref<2x64xf32, #tpu.memory_space<vmem>>, %arg8: memref<64x2xf32, #tpu.memory_space<vmem>>, %arg9: memref<64x64xf32, #tpu.memory_space<vmem>>, %arg10: memref<512x2xf32, #tpu.memory_space<vmem>>, %arg11: memref<2x512xf32, #tpu.memory_space<vmem>>, %arg12: memref<32x512xf32, #tpu.memory_space<vmem>>) attributes {dimension_semantics = [#tpu.dimension_semantics<parallel>], iteration_bounds = array<i64: 2>, scalar_prefetch = 0 : i64, scratch_operands = 0 : i64, tpu.core_type = #tpu.core_type<tc>, window_params = [{transform_indices = @transform_0, window_bounds = array<i64: 32, 512>}, {pipeline_mode = #tpu.pipeline_mode<synchronous>, transform_indices = @transform_1, window_bounds = array<i64: 96, 32>}, {pipeline_mode = #tpu.pipeline_mode<synchronous>, transform_indices = @transform_2, window_bounds = array<i64: 9, 64, 512>}, {pipeline_mode = #tpu.pipeline_mode<synchronous>, transform_indices = @transform_3, window_bounds = array<i64: 9, 32, 512>}, {pipeline_mode = #tpu.pipeline_mode<synchronous>, transform_indices = @transform_4, window_bounds = array<i64: 9, 32, 512>}, {pipeline_mode = #tpu.pipeline_mode<synchronous>, transform_indices = @transform_5, window_bounds = array<i64: 64, 2>}, {pipeline_mode = #tpu.pipeline_mode<synchronous>, transform_indices = @transform_6, window_bounds = array<i64: 2, 64>}, {pipeline_mode = #tpu.pipeline_mode<synchronous>, transform_indices = @transform_7, window_bounds = array<i64: 64, 2>}, {pipeline_mode = #tpu.pipeline_mode<synchronous>, transform_indices = @transform_8, window_bounds = array<i64: 64, 64>}, {pipeline_mode = #tpu.pipeline_mode<synchronous>, transform_indices = @transform_9, window_bounds = array<i64: 512, 2>}, {pipeline_mode = #tpu.pipeline_mode<synchronous>, transform_indices = @transform_10, window_bounds = array<i64: 2, 512>}, {transform_indices = @transform_11, window_bounds = array<i64: 32, 512>}]} {
    %c0 = arith.constant 0 : index
    %c0_0 = arith.constant 0 : index
    %0 = vector.load %arg1[%c0, %c0_0] : memref<32x512xf32, #tpu.memory_space<vmem>>, vector<32x512xf32>
    %c0_1 = arith.constant 0 : index
    %c0_2 = arith.constant 0 : index
    %1 = vector.load %arg2[%c0_1, %c0_2] : memref<96x32xf32, #tpu.memory_space<vmem>>, vector<96x32xf32>
    %cst = arith.constant dense<0.000000e+00> : vector<96x512xf32>
    %2 = tpu.matmul %1, %0, %cst {dimension_numbers = #tpu.dot_dimension_numbers<[1], [0], [0], [1], [0, 0, 1, 1], [], []>} : vector<96x32xf32>, vector<32x512xf32>, vector<96x512xf32> -> vector<96x512xf32>
    %3 = vector.extract_strided_slice %2 {offsets = [0, 0], sizes = [64, 512], strides = [1, 1]} : vector<96x512xf32> to vector<64x512xf32>
    %4 = vector.extract_strided_slice %2 {offsets = [64, 0], sizes = [32, 512], strides = [1, 1]} : vector<96x512xf32> to vector<32x512xf32>
    %c0_3 = arith.constant 0 : index
    %c0_4 = arith.constant 0 : index
    %5 = vector.load %arg6[%c0_3, %c0_4] : memref<64x2xf32, #tpu.memory_space<vmem>>, vector<64x1xf32>
    %c0_5 = arith.constant 0 : index
    %c0_6 = arith.constant 0 : index
    %c0_7 = arith.constant 0 : index
    %6 = vector.load %arg3[%c0_5, %c0_6, %c0_7] : memref<9x64x512xf32, #tpu.memory_space<vmem>>, vector<1x64x512xf32>
    %7 = vector.shape_cast %6 : vector<1x64x512xf32> to vector<64x512xf32>
    %c17_i32 = arith.constant 17 : i32
    %8 = tpu.dynamic_rotate %3 by %c17_i32 dim 1 : vector<64x512xf32>, i32 -> vector<64x512xf32>
    %9 = arith.mulf %8, %7 : vector<64x512xf32>
    %c1 = arith.constant 1 : index
    %c0_8 = arith.constant 0 : index
    %c0_9 = arith.constant 0 : index
    %10 = vector.load %arg3[%c1, %c0_8, %c0_9] : memref<9x64x512xf32, #tpu.memory_space<vmem>>, vector<1x64x512xf32>
    %11 = vector.shape_cast %10 : vector<1x64x512xf32> to vector<64x512xf32>
    %c16_i32 = arith.constant 16 : i32
    %12 = tpu.dynamic_rotate %3 by %c16_i32 dim 1 : vector<64x512xf32>, i32 -> vector<64x512xf32>
    %13 = arith.mulf %12, %11 : vector<64x512xf32>
    %c2 = arith.constant 2 : index
    %c0_10 = arith.constant 0 : index
    %c0_11 = arith.constant 0 : index
    %14 = vector.load %arg3[%c2, %c0_10, %c0_11] : memref<9x64x512xf32, #tpu.memory_space<vmem>>, vector<1x64x512xf32>
    %15 = vector.shape_cast %14 : vector<1x64x512xf32> to vector<64x512xf32>
    %c15_i32 = arith.constant 15 : i32
    %16 = tpu.dynamic_rotate %3 by %c15_i32 dim 1 : vector<64x512xf32>, i32 -> vector<64x512xf32>
    %17 = arith.mulf %16, %15 : vector<64x512xf32>
    %18 = arith.addf %9, %17 : vector<64x512xf32>
    %c3 = arith.constant 3 : index
    %c0_12 = arith.constant 0 : index
    %c0_13 = arith.constant 0 : index
    %19 = vector.load %arg3[%c3, %c0_12, %c0_13] : memref<9x64x512xf32, #tpu.memory_space<vmem>>, vector<1x64x512xf32>
    %20 = vector.shape_cast %19 : vector<1x64x512xf32> to vector<64x512xf32>
    %c1_i32 = arith.constant 1 : i32
    %21 = tpu.dynamic_rotate %3 by %c1_i32 dim 1 : vector<64x512xf32>, i32 -> vector<64x512xf32>
    %22 = arith.mulf %21, %20 : vector<64x512xf32>
    %23 = arith.addf %13, %22 : vector<64x512xf32>
    %c4 = arith.constant 4 : index
    %c0_14 = arith.constant 0 : index
    %c0_15 = arith.constant 0 : index
    %24 = vector.load %arg3[%c4, %c0_14, %c0_15] : memref<9x64x512xf32, #tpu.memory_space<vmem>>, vector<1x64x512xf32>
    %25 = vector.shape_cast %24 : vector<1x64x512xf32> to vector<64x512xf32>
    %26 = arith.mulf %3, %25 : vector<64x512xf32>
    %27 = arith.addf %18, %26 : vector<64x512xf32>
    %c5 = arith.constant 5 : index
    %c0_16 = arith.constant 0 : index
    %c0_17 = arith.constant 0 : index
    %28 = vector.load %arg3[%c5, %c0_16, %c0_17] : memref<9x64x512xf32, #tpu.memory_space<vmem>>, vector<1x64x512xf32>
    %29 = vector.shape_cast %28 : vector<1x64x512xf32> to vector<64x512xf32>
    %c511_i32 = arith.constant 511 : i32
    %30 = tpu.dynamic_rotate %3 by %c511_i32 dim 1 : vector<64x512xf32>, i32 -> vector<64x512xf32>
    %31 = arith.mulf %30, %29 : vector<64x512xf32>
    %32 = arith.addf %23, %31 : vector<64x512xf32>
    %c6 = arith.constant 6 : index
    %c0_18 = arith.constant 0 : index
    %c0_19 = arith.constant 0 : index
    %33 = vector.load %arg3[%c6, %c0_18, %c0_19] : memref<9x64x512xf32, #tpu.memory_space<vmem>>, vector<1x64x512xf32>
    %34 = vector.shape_cast %33 : vector<1x64x512xf32> to vector<64x512xf32>
    %c497_i32 = arith.constant 497 : i32
    %35 = tpu.dynamic_rotate %3 by %c497_i32 dim 1 : vector<64x512xf32>, i32 -> vector<64x512xf32>
    %36 = arith.mulf %35, %34 : vector<64x512xf32>
    %37 = arith.addf %27, %36 : vector<64x512xf32>
    %c7 = arith.constant 7 : index
    %c0_20 = arith.constant 0 : index
    %c0_21 = arith.constant 0 : index
    %38 = vector.load %arg3[%c7, %c0_20, %c0_21] : memref<9x64x512xf32, #tpu.memory_space<vmem>>, vector<1x64x512xf32>
    %39 = vector.shape_cast %38 : vector<1x64x512xf32> to vector<64x512xf32>
    %c496_i32 = arith.constant 496 : i32
    %40 = tpu.dynamic_rotate %3 by %c496_i32 dim 1 : vector<64x512xf32>, i32 -> vector<64x512xf32>
    %41 = arith.mulf %40, %39 : vector<64x512xf32>
    %42 = arith.addf %32, %41 : vector<64x512xf32>
    %c8 = arith.constant 8 : index
    %c0_22 = arith.constant 0 : index
    %c0_23 = arith.constant 0 : index
    %43 = vector.load %arg3[%c8, %c0_22, %c0_23] : memref<9x64x512xf32, #tpu.memory_space<vmem>>, vector<1x64x512xf32>
    %44 = vector.shape_cast %43 : vector<1x64x512xf32> to vector<64x512xf32>
    %c495_i32 = arith.constant 495 : i32
    %45 = tpu.dynamic_rotate %3 by %c495_i32 dim 1 : vector<64x512xf32>, i32 -> vector<64x512xf32>
    %46 = arith.mulf %45, %44 : vector<64x512xf32>
    %47 = arith.addf %37, %46 : vector<64x512xf32>
    %48 = vector.broadcast %5 : vector<64x1xf32> to vector<64x512xf32>
    %49 = arith.addf %47, %48 : vector<64x512xf32>
    %50 = arith.addf %49, %42 : vector<64x512xf32>
    %cst_24 = arith.constant 0.000000e+00 : f32
    %51 = vector.broadcast %cst_24 : f32 to vector<64x512xf32>
    %52 = arith.maximumf %50, %51 : vector<64x512xf32>
    %c0_25 = arith.constant 0 : index
    %c0_26 = arith.constant 0 : index
    %53 = vector.load %arg7[%c0_25, %c0_26] : memref<2x64xf32, #tpu.memory_space<vmem>>, vector<2x64xf32>
    %cst_27 = arith.constant dense<0.000000e+00> : vector<2x512xf32>
    %54 = tpu.matmul %53, %52, %cst_27 {dimension_numbers = #tpu.dot_dimension_numbers<[1], [0], [0], [1], [0, 0, 1, 1], [], []>} : vector<2x64xf32>, vector<64x512xf32>, vector<2x512xf32> -> vector<2x512xf32>
    %c0_28 = arith.constant 0 : index
    %c0_29 = arith.constant 0 : index
    %55 = vector.load %arg8[%c0_28, %c0_29] : memref<64x2xf32, #tpu.memory_space<vmem>>, vector<64x2xf32>
    %56 = arith.negf %54 : vector<2x512xf32>
    %57 = math.exp %56 : vector<2x512xf32>
    %cst_30 = arith.constant 1.000000e+00 : f32
    %58 = vector.broadcast %cst_30 : f32 to vector<2x512xf32>
    %59 = arith.addf %58, %57 : vector<2x512xf32>
    %60 = arith.divf %58, %59 : vector<2x512xf32>
    %cst_31 = arith.constant dense<0.000000e+00> : vector<64x512xf32>
    %61 = tpu.matmul %55, %60, %cst_31 {dimension_numbers = #tpu.dot_dimension_numbers<[1], [0], [0], [1], [0, 0, 1, 1], [], []>} : vector<64x2xf32>, vector<2x512xf32>, vector<64x512xf32> -> vector<64x512xf32>
    %62 = arith.mulf %3, %61 : vector<64x512xf32>
    %c0_32 = arith.constant 0 : index
    %c0_33 = arith.constant 0 : index
    %63 = vector.load %arg10[%c0_32, %c0_33] : memref<512x2xf32, #tpu.memory_space<vmem>>, vector<512x2xf32>
    %cst_34 = arith.constant dense<0.000000e+00> : vector<64x2xf32>
    %64 = tpu.matmul %62, %63, %cst_34 {dimension_numbers = #tpu.dot_dimension_numbers<[1], [0], [0], [1], [0, 0, 1, 1], [], []>} : vector<64x512xf32>, vector<512x2xf32>, vector<64x2xf32> -> vector<64x2xf32>
    %cst_35 = arith.constant 3.906250e-03 : f32
    %65 = vector.broadcast %cst_35 : f32 to vector<64x2xf32>
    %66 = arith.mulf %64, %65 : vector<64x2xf32>
    %c0_36 = arith.constant 0 : index
    %c0_37 = arith.constant 0 : index
    %67 = vector.load %arg9[%c0_36, %c0_37] : memref<64x64xf32, #tpu.memory_space<vmem>>, vector<64x64xf32>
    %cst_38 = arith.constant dense<0.000000e+00> : vector<64x2xf32>
    %68 = tpu.matmul %67, %66, %cst_38 {dimension_numbers = #tpu.dot_dimension_numbers<[1], [0], [0], [1], [0, 0, 1, 1], [], []>} : vector<64x64xf32>, vector<64x2xf32>, vector<64x2xf32> -> vector<64x2xf32>
    %69 = arith.negf %68 : vector<64x2xf32>
    %70 = math.exp %69 : vector<64x2xf32>
    %cst_39 = arith.constant 1.000000e+00 : f32
    %71 = vector.broadcast %cst_39 : f32 to vector<64x2xf32>
    %72 = arith.addf %71, %70 : vector<64x2xf32>
    %73 = arith.divf %71, %72 : vector<64x2xf32>
    %c0_40 = arith.constant 0 : index
    %c0_41 = arith.constant 0 : index
    %74 = vector.load %arg11[%c0_40, %c0_41] : memref<2x512xf32, #tpu.memory_space<vmem>>, vector<2x512xf32>
    %cst_42 = arith.constant dense<0.000000e+00> : vector<64x512xf32>
    %75 = tpu.matmul %73, %74, %cst_42 {dimension_numbers = #tpu.dot_dimension_numbers<[1], [0], [0], [1], [0, 0, 1, 1], [], []>} : vector<64x2xf32>, vector<2x512xf32>, vector<64x512xf32> -> vector<64x512xf32>
    %76 = arith.mulf %62, %75 : vector<64x512xf32>
    %77 = vector.extract_strided_slice %76 {offsets = [0, 0], sizes = [32, 512], strides = [1, 1]} : vector<64x512xf32> to vector<32x512xf32>
    %78 = vector.extract_strided_slice %76 {offsets = [32, 0], sizes = [32, 512], strides = [1, 1]} : vector<64x512xf32> to vector<32x512xf32>
    %79 = arith.addf %77, %78 : vector<32x512xf32>
    %c0_43 = arith.constant 0 : index
    %c1_44 = arith.constant 1 : index
    %80 = vector.load %arg6[%c0_43, %c1_44] : memref<64x2xf32, #tpu.memory_space<vmem>>, vector<32x1xf32>
    %c0_45 = arith.constant 0 : index
    %c0_46 = arith.constant 0 : index
    %c0_47 = arith.constant 0 : index
    %81 = vector.load %arg4[%c0_45, %c0_46, %c0_47] : memref<9x32x512xf32, #tpu.memory_space<vmem>>, vector<1x32x512xf32>
    %82 = vector.shape_cast %81 : vector<1x32x512xf32> to vector<32x512xf32>
    %c17_i32_48 = arith.constant 17 : i32
    %83 = tpu.dynamic_rotate %79 by %c17_i32_48 dim 1 : vector<32x512xf32>, i32 -> vector<32x512xf32>
    %84 = arith.mulf %83, %82 : vector<32x512xf32>
    %c1_49 = arith.constant 1 : index
    %c0_50 = arith.constant 0 : index
    %c0_51 = arith.constant 0 : index
    %85 = vector.load %arg4[%c1_49, %c0_50, %c0_51] : memref<9x32x512xf32, #tpu.memory_space<vmem>>, vector<1x32x512xf32>
    %86 = vector.shape_cast %85 : vector<1x32x512xf32> to vector<32x512xf32>
    %c16_i32_52 = arith.constant 16 : i32
    %87 = tpu.dynamic_rotate %79 by %c16_i32_52 dim 1 : vector<32x512xf32>, i32 -> vector<32x512xf32>
    %88 = arith.mulf %87, %86 : vector<32x512xf32>
    %c2_53 = arith.constant 2 : index
    %c0_54 = arith.constant 0 : index
    %c0_55 = arith.constant 0 : index
    %89 = vector.load %arg4[%c2_53, %c0_54, %c0_55] : memref<9x32x512xf32, #tpu.memory_space<vmem>>, vector<1x32x512xf32>
    %90 = vector.shape_cast %89 : vector<1x32x512xf32> to vector<32x512xf32>
    %c15_i32_56 = arith.constant 15 : i32
    %91 = tpu.dynamic_rotate %79 by %c15_i32_56 dim 1 : vector<32x512xf32>, i32 -> vector<32x512xf32>
    %92 = arith.mulf %91, %90 : vector<32x512xf32>
    %c3_57 = arith.constant 3 : index
    %c0_58 = arith.constant 0 : index
    %c0_59 = arith.constant 0 : index
    %93 = vector.load %arg4[%c3_57, %c0_58, %c0_59] : memref<9x32x512xf32, #tpu.memory_space<vmem>>, vector<1x32x512xf32>
    %94 = vector.shape_cast %93 : vector<1x32x512xf32> to vector<32x512xf32>
    %c1_i32_60 = arith.constant 1 : i32
    %95 = tpu.dynamic_rotate %79 by %c1_i32_60 dim 1 : vector<32x512xf32>, i32 -> vector<32x512xf32>
    %96 = arith.mulf %95, %94 : vector<32x512xf32>
    %c4_61 = arith.constant 4 : index
    %c0_62 = arith.constant 0 : index
    %c0_63 = arith.constant 0 : index
    %97 = vector.load %arg4[%c4_61, %c0_62, %c0_63] : memref<9x32x512xf32, #tpu.memory_space<vmem>>, vector<1x32x512xf32>
    %98 = vector.shape_cast %97 : vector<1x32x512xf32> to vector<32x512xf32>
    %99 = arith.mulf %79, %98 : vector<32x512xf32>
    %100 = arith.addf %84, %99 : vector<32x512xf32>
    %c5_64 = arith.constant 5 : index
    %c0_65 = arith.constant 0 : index
    %c0_66 = arith.constant 0 : index
    %101 = vector.load %arg4[%c5_64, %c0_65, %c0_66] : memref<9x32x512xf32, #tpu.memory_space<vmem>>, vector<1x32x512xf32>
    %102 = vector.shape_cast %101 : vector<1x32x512xf32> to vector<32x512xf32>
    %c511_i32_67 = arith.constant 511 : i32
    %103 = tpu.dynamic_rotate %79 by %c511_i32_67 dim 1 : vector<32x512xf32>, i32 -> vector<32x512xf32>
    %104 = arith.mulf %103, %102 : vector<32x512xf32>
    %105 = arith.addf %88, %104 : vector<32x512xf32>
    %c6_68 = arith.constant 6 : index
    %c0_69 = arith.constant 0 : index
    %c0_70 = arith.constant 0 : index
    %106 = vector.load %arg4[%c6_68, %c0_69, %c0_70] : memref<9x32x512xf32, #tpu.memory_space<vmem>>, vector<1x32x512xf32>
    %107 = vector.shape_cast %106 : vector<1x32x512xf32> to vector<32x512xf32>
    %c497_i32_71 = arith.constant 497 : i32
    %108 = tpu.dynamic_rotate %79 by %c497_i32_71 dim 1 : vector<32x512xf32>, i32 -> vector<32x512xf32>
    %109 = arith.mulf %108, %107 : vector<32x512xf32>
    %110 = arith.addf %92, %109 : vector<32x512xf32>
    %c7_72 = arith.constant 7 : index
    %c0_73 = arith.constant 0 : index
    %c0_74 = arith.constant 0 : index
    %111 = vector.load %arg4[%c7_72, %c0_73, %c0_74] : memref<9x32x512xf32, #tpu.memory_space<vmem>>, vector<1x32x512xf32>
    %112 = vector.shape_cast %111 : vector<1x32x512xf32> to vector<32x512xf32>
    %c496_i32_75 = arith.constant 496 : i32
    %113 = tpu.dynamic_rotate %79 by %c496_i32_75 dim 1 : vector<32x512xf32>, i32 -> vector<32x512xf32>
    %114 = arith.mulf %113, %112 : vector<32x512xf32>
    %115 = arith.addf %96, %114 : vector<32x512xf32>
    %c8_76 = arith.constant 8 : index
    %c0_77 = arith.constant 0 : index
    %c0_78 = arith.constant 0 : index
    %116 = vector.load %arg4[%c8_76, %c0_77, %c0_78] : memref<9x32x512xf32, #tpu.memory_space<vmem>>, vector<1x32x512xf32>
    %117 = vector.shape_cast %116 : vector<1x32x512xf32> to vector<32x512xf32>
    %c495_i32_79 = arith.constant 495 : i32
    %118 = tpu.dynamic_rotate %79 by %c495_i32_79 dim 1 : vector<32x512xf32>, i32 -> vector<32x512xf32>
    %119 = arith.mulf %118, %117 : vector<32x512xf32>
    %120 = arith.addf %100, %119 : vector<32x512xf32>
    %121 = vector.broadcast %80 : vector<32x1xf32> to vector<32x512xf32>
    %122 = arith.addf %120, %121 : vector<32x512xf32>
    %123 = arith.addf %122, %105 : vector<32x512xf32>
    %124 = arith.addf %110, %115 : vector<32x512xf32>
    %125 = arith.addf %123, %124 : vector<32x512xf32>
    %126 = arith.mulf %125, %4 : vector<32x512xf32>
    %c32 = arith.constant 32 : index
    %c1_80 = arith.constant 1 : index
    %127 = vector.load %arg6[%c32, %c1_80] : memref<64x2xf32, #tpu.memory_space<vmem>>, vector<32x1xf32>
    %c0_81 = arith.constant 0 : index
    %c0_82 = arith.constant 0 : index
    %c0_83 = arith.constant 0 : index
    %128 = vector.load %arg5[%c0_81, %c0_82, %c0_83] : memref<9x32x512xf32, #tpu.memory_space<vmem>>, vector<1x32x512xf32>
    %129 = vector.shape_cast %128 : vector<1x32x512xf32> to vector<32x512xf32>
    %c17_i32_84 = arith.constant 17 : i32
    %130 = tpu.dynamic_rotate %126 by %c17_i32_84 dim 1 : vector<32x512xf32>, i32 -> vector<32x512xf32>
    %131 = arith.mulf %130, %129 : vector<32x512xf32>
    %c1_85 = arith.constant 1 : index
    %c0_86 = arith.constant 0 : index
    %c0_87 = arith.constant 0 : index
    %132 = vector.load %arg5[%c1_85, %c0_86, %c0_87] : memref<9x32x512xf32, #tpu.memory_space<vmem>>, vector<1x32x512xf32>
    %133 = vector.shape_cast %132 : vector<1x32x512xf32> to vector<32x512xf32>
    %c16_i32_88 = arith.constant 16 : i32
    %134 = tpu.dynamic_rotate %126 by %c16_i32_88 dim 1 : vector<32x512xf32>, i32 -> vector<32x512xf32>
    %135 = arith.mulf %134, %133 : vector<32x512xf32>
    %c2_89 = arith.constant 2 : index
    %c0_90 = arith.constant 0 : index
    %c0_91 = arith.constant 0 : index
    %136 = vector.load %arg5[%c2_89, %c0_90, %c0_91] : memref<9x32x512xf32, #tpu.memory_space<vmem>>, vector<1x32x512xf32>
    %137 = vector.shape_cast %136 : vector<1x32x512xf32> to vector<32x512xf32>
    %c15_i32_92 = arith.constant 15 : i32
    %138 = tpu.dynamic_rotate %126 by %c15_i32_92 dim 1 : vector<32x512xf32>, i32 -> vector<32x512xf32>
    %139 = arith.mulf %138, %137 : vector<32x512xf32>
    %c3_93 = arith.constant 3 : index
    %c0_94 = arith.constant 0 : index
    %c0_95 = arith.constant 0 : index
    %140 = vector.load %arg5[%c3_93, %c0_94, %c0_95] : memref<9x32x512xf32, #tpu.memory_space<vmem>>, vector<1x32x512xf32>
    %141 = vector.shape_cast %140 : vector<1x32x512xf32> to vector<32x512xf32>
    %c1_i32_96 = arith.constant 1 : i32
    %142 = tpu.dynamic_rotate %126 by %c1_i32_96 dim 1 : vector<32x512xf32>, i32 -> vector<32x512xf32>
    %143 = arith.mulf %142, %141 : vector<32x512xf32>
    %c4_97 = arith.constant 4 : index
    %c0_98 = arith.constant 0 : index
    %c0_99 = arith.constant 0 : index
    %144 = vector.load %arg5[%c4_97, %c0_98, %c0_99] : memref<9x32x512xf32, #tpu.memory_space<vmem>>, vector<1x32x512xf32>
    %145 = vector.shape_cast %144 : vector<1x32x512xf32> to vector<32x512xf32>
    %146 = arith.mulf %126, %145 : vector<32x512xf32>
    %147 = arith.addf %131, %146 : vector<32x512xf32>
    %c5_100 = arith.constant 5 : index
    %c0_101 = arith.constant 0 : index
    %c0_102 = arith.constant 0 : index
    %148 = vector.load %arg5[%c5_100, %c0_101, %c0_102] : memref<9x32x512xf32, #tpu.memory_space<vmem>>, vector<1x32x512xf32>
    %149 = vector.shape_cast %148 : vector<1x32x512xf32> to vector<32x512xf32>
    %c511_i32_103 = arith.constant 511 : i32
    %150 = tpu.dynamic_rotate %126 by %c511_i32_103 dim 1 : vector<32x512xf32>, i32 -> vector<32x512xf32>
    %151 = arith.mulf %150, %149 : vector<32x512xf32>
    %152 = arith.addf %135, %151 : vector<32x512xf32>
    %c6_104 = arith.constant 6 : index
    %c0_105 = arith.constant 0 : index
    %c0_106 = arith.constant 0 : index
    %153 = vector.load %arg5[%c6_104, %c0_105, %c0_106] : memref<9x32x512xf32, #tpu.memory_space<vmem>>, vector<1x32x512xf32>
    %154 = vector.shape_cast %153 : vector<1x32x512xf32> to vector<32x512xf32>
    %c497_i32_107 = arith.constant 497 : i32
    %155 = tpu.dynamic_rotate %126 by %c497_i32_107 dim 1 : vector<32x512xf32>, i32 -> vector<32x512xf32>
    %156 = arith.mulf %155, %154 : vector<32x512xf32>
    %157 = arith.addf %139, %156 : vector<32x512xf32>
    %c7_108 = arith.constant 7 : index
    %c0_109 = arith.constant 0 : index
    %c0_110 = arith.constant 0 : index
    %158 = vector.load %arg5[%c7_108, %c0_109, %c0_110] : memref<9x32x512xf32, #tpu.memory_space<vmem>>, vector<1x32x512xf32>
    %159 = vector.shape_cast %158 : vector<1x32x512xf32> to vector<32x512xf32>
    %c496_i32_111 = arith.constant 496 : i32
    %160 = tpu.dynamic_rotate %126 by %c496_i32_111 dim 1 : vector<32x512xf32>, i32 -> vector<32x512xf32>
    %161 = arith.mulf %160, %159 : vector<32x512xf32>
    %162 = arith.addf %143, %161 : vector<32x512xf32>
    %c8_112 = arith.constant 8 : index
    %c0_113 = arith.constant 0 : index
    %c0_114 = arith.constant 0 : index
    %163 = vector.load %arg5[%c8_112, %c0_113, %c0_114] : memref<9x32x512xf32, #tpu.memory_space<vmem>>, vector<1x32x512xf32>
    %164 = vector.shape_cast %163 : vector<1x32x512xf32> to vector<32x512xf32>
    %c495_i32_115 = arith.constant 495 : i32
    %165 = tpu.dynamic_rotate %126 by %c495_i32_115 dim 1 : vector<32x512xf32>, i32 -> vector<32x512xf32>
    %166 = arith.mulf %165, %164 : vector<32x512xf32>
    %167 = arith.addf %147, %166 : vector<32x512xf32>
    %168 = vector.broadcast %127 : vector<32x1xf32> to vector<32x512xf32>
    %169 = arith.addf %167, %168 : vector<32x512xf32>
    %170 = arith.addf %169, %152 : vector<32x512xf32>
    %171 = arith.addf %157, %162 : vector<32x512xf32>
    %172 = arith.addf %170, %171 : vector<32x512xf32>
    %c0_116 = arith.constant 0 : index
    %c0_117 = arith.constant 0 : index
    %173 = vector.load %arg12[%c0_116, %c0_117] : memref<32x512xf32, #tpu.memory_space<vmem>>, vector<32x512xf32>
    tpu.vector_store %arg12[%c0_116, %c0_117], %172 {strides = array<i32>} : memref<32x512xf32, #tpu.memory_space<vmem>>, vector<32x512xf32>,
    return
  }
  func.func @transform_0(%arg0: i32) -> (i32, i32) {
    %c0_i32 = arith.constant 0 : i32
    %c0_i32_0 = arith.constant 0 : i32
    return %c0_i32, %arg0 : i32, i32
  }
  func.func @transform_1(%arg0: i32) -> (i32, i32) {
    %c0_i32 = arith.constant 0 : i32
    %c0_i32_0 = arith.constant 0 : i32
    %c0_i32_1 = arith.constant 0 : i32
    return %c0_i32, %c0_i32_0 : i32, i32
  }
  func.func @transform_2(%arg0: i32) -> (i32, i32, i32) {
    %c0_i32 = arith.constant 0 : i32
    %c0_i32_0 = arith.constant 0 : i32
    %c0_i32_1 = arith.constant 0 : i32
    %c0_i32_2 = arith.constant 0 : i32
    return %c0_i32, %c0_i32_0, %c0_i32_1 : i32, i32, i32
  }
  func.func @transform_3(%arg0: i32) -> (i32, i32, i32) {
    %c0_i32 = arith.constant 0 : i32
    %c0_i32_0 = arith.constant 0 : i32
    %c0_i32_1 = arith.constant 0 : i32
    %c0_i32_2 = arith.constant 0 : i32
    return %c0_i32, %c0_i32_0, %c0_i32_1 : i32, i32, i32
  }
  func.func @transform_4(%arg0: i32) -> (i32, i32, i32) {
    %c0_i32 = arith.constant 0 : i32
    %c0_i32_0 = arith.constant 0 : i32
    %c0_i32_1 = arith.constant 0 : i32
    %c0_i32_2 = arith.constant 0 : i32
    return %c0_i32, %c0_i32_0, %c0_i32_1 : i32, i32, i32
  }
  func.func @transform_5(%arg0: i32) -> (i32, i32) {
    %c0_i32 = arith.constant 0 : i32
    %c0_i32_0 = arith.constant 0 : i32
    %c0_i32_1 = arith.constant 0 : i32
    return %c0_i32, %c0_i32_0 : i32, i32
  }
  func.func @transform_6(%arg0: i32) -> (i32, i32) {
    %c0_i32 = arith.constant 0 : i32
    %c0_i32_0 = arith.constant 0 : i32
    %c0_i32_1 = arith.constant 0 : i32
    return %c0_i32, %c0_i32_0 : i32, i32
  }
  func.func @transform_7(%arg0: i32) -> (i32, i32) {
    %c0_i32 = arith.constant 0 : i32
    %c0_i32_0 = arith.constant 0 : i32
    %c0_i32_1 = arith.constant 0 : i32
    return %c0_i32, %c0_i32_0 : i32, i32
  }
  func.func @transform_8(%arg0: i32) -> (i32, i32) {
    %c0_i32 = arith.constant 0 : i32
    %c0_i32_0 = arith.constant 0 : i32
    %c0_i32_1 = arith.constant 0 : i32
    return %c0_i32, %c0_i32_0 : i32, i32
  }
  func.func @transform_9(%arg0: i32) -> (i32, i32) {
    %c0_i32 = arith.constant 0 : i32
    %c0_i32_0 = arith.constant 0 : i32
    %c0_i32_1 = arith.constant 0 : i32
    return %c0_i32, %c0_i32_0 : i32, i32
  }
  func.func @transform_10(%arg0: i32) -> (i32, i32) {
    %c0_i32 = arith.constant 0 : i32
    %c0_i32_0 = arith.constant 0 : i32
    %c0_i32_1 = arith.constant 0 : i32
    return %c0_i32, %c0_i32_0 : i32, i32
  }
  func.func @transform_11(%arg0: i32) -> (i32, i32) {
    %c0_i32 = arith.constant 0 : i32
    %c0_i32_0 = arith.constant 0 : i32
    return %c0_i32, %arg0 : i32, i32
  }
}

</mosaic_0001>

<llo_original>
// kernel: tpu_custom_call.1
$region0: #{tpu_custom_call.1}
  #allocation0 [shape = 'u32[]', space=smem, size = 0x4, offset = 0x4, fixed_abs, tag = 'smem constant byte address 0x4 - core index']
  #allocation1 [shape = 'u32[72,128]{1,0:T(1,128)}', space=vmem, size = 0x9000, scoped, tag = 'internal scratch']
  %s0 = inlined_call_operand.hbm [shape: f32[32,1024], index: 0, kind: input, shape index: {}]
  %s1 = inlined_call_operand.vmem [shape: f32[96,32], index: 1, kind: input, shape index: {}]
  %s2 = inlined_call_operand.hbm [shape: f32[9,64,512], index: 2, kind: input, shape index: {}]
  %s3 = inlined_call_operand.hbm [shape: f32[9,32,512], index: 3, kind: input, shape index: {}]
  %s4 = inlined_call_operand.hbm [shape: f32[9,32,512], index: 4, kind: input, shape index: {}]
  %s5 = inlined_call_operand.vmem [shape: f32[64,2], index: 5, kind: input, shape index: {}]
  %s6 = inlined_call_operand.hbm [shape: f32[2,64], index: 6, kind: input, shape index: {}]
  %s7 = inlined_call_operand.vmem [shape: f32[64,2], index: 7, kind: input, shape index: {}]
  %s8 = inlined_call_operand.hbm [shape: f32[64,64], index: 8, kind: input, shape index: {}]
  %s9 = inlined_call_operand.vmem [shape: f32[512,2], index: 9, kind: input, shape index: {}]
  %s10 = inlined_call_operand.hbm [shape: f32[2,512], index: 10, kind: input, shape index: {}]
  %s11 = inlined_call_operand.hbm [shape: f32[32,1024], index: 11, kind: output, shape index: {}]
  %s12 = sld [smem:[#allocation0]]
  $region105: #{tpu_custom_call.1} parent=0
    _
  %s14 = ssub.s32 1, %s12
  %s15 = scalar_select 0, %s14, %s12
  $region1: #{tpu_custom_call.1} parent=0
    #allocation2 [shape = 'u8[131072]{0}', space=vmem, size = 0x20000, scoped, tag = 'input window, operand 0']
    #allocation3 [shape = 's32[2]{0}', space=sflag, size = 0x8, scoped, tag = 'scoped memory for tpu_custom_call.1']
    #allocation4 [shape = 's32[2]{0}', space=sflag, size = 0x8, scoped, tag = 'scoped memory for tpu_custom_call.1']
    #allocation5 [shape = 'u8[1179648]{0}', space=vmem, size = 0x120000, scoped, tag = 'input window, operand 2, single buffered']
    #allocation6 [shape = 's32[1]{0}', space=sflag, size = 0x4, scoped, tag = 'scoped memory for tpu_custom_call.1']
    #allocation7 [shape = 'u8[589824]{0}', space=vmem, size = 0x90000, scoped, tag = 'input window, operand 3, single buffered']
    #allocation8 [shape = 'u8[589824]{0}', space=vmem, size = 0x90000, scoped, tag = 'input window, operand 4, single buffered']
    #allocation9 [shape = 's32[1]{0}', space=sflag, size = 0x4, scoped, tag = 'scoped memory for tpu_custom_call.1']
    #allocation10 [shape = 'u8[1024]{0}', space=vmem, size = 0x400, scoped, tag = 'input window, operand 6, single buffered']
    #allocation11 [shape = 'u8[32768]{0}', space=vmem, size = 0x8000, scoped, tag = 'input window, operand 8, single buffered']
    #allocation12 [shape = 's32[1]{0}', space=sflag, size = 0x4, scoped, tag = 'scoped memory for tpu_custom_call.1']
    #allocation13 [shape = 'u8[4096]{0}', space=vmem, size = 0x1000, scoped, tag = 'input window, operand 10, single buffered']
    #allocation14 [shape = 'u8[131072]{0}', space=vmem, size = 0x20000, scoped, tag = 'output window, operand 0']
    %16 = vsyncpa [#allocation3], 0
    %s17 = scalar_lea.sflag [#allocation3], 1
    %18 = vsyncpa %s17, 0
    %19 = vsyncpa [#allocation6], 0
    %20 = vsyncpa [#allocation9], 0
    %21 = vsyncpa [#allocation12], 0
    %22 = vsyncpa [#allocation4], 0
    %s23 = scalar_lea.sflag [#allocation4], 1
    %24 = vsyncpa %s23, 0
    loop: start=0, step=1, limit=4
    $region2: #{tpu_custom_call.1} parent=1 // loop_pre_header
      _
    $region3: #{tpu_custom_call.1} parent=1 // loop_header
      %s26 = sphi 0, %s30
      %p27 = scmp.ge.s32.totalorder %s26, 4
      %s36 = sphi 0, %s38
      %s39 = sphi 0, %s36
      %s40 = sphi 0, %s39
      %s56 = sphi 0, %s40
      %s60 = sphi 0, %s60
      %s62 = sphi 0, %s60
      %s63 = sphi 0, %s62
      %s77 = sphi 0, %s63
      %s81 = sphi 0, %s81
      %s83 = sphi 0, %s81
      %s84 = sphi 0, %s83
      %s98 = sphi 0, %s84
      %s102 = sphi 0, %s102
      %s104 = sphi 0, %s102
      %s105 = sphi 0, %s104
      %s119 = sphi 0, %s105
      %s123 = sphi 0, %s123
      %s125 = sphi 0, %s123
      %s126 = sphi 0, %s125
      %s140 = sphi 0, %s126
      %s144 = sphi 0, %s144
      %s146 = sphi 0, %s144
      %s147 = sphi 0, %s146
      %s161 = sphi 0, %s147
      %s165 = sphi 0, %s165
      %s167 = sphi 0, %s165
      %s168 = sphi 0, %s167
      %s182 = sphi 0, %s168
      %s186 = sphi 0, %s186
      %s188 = sphi 0, %s186
      %s189 = sphi 0, %s188
      %s203 = sphi 0, %s189
      %s207 = sphi 0, %s207
      %s209 = sphi 0, %s207
      %s210 = sphi 0, %s209
      %s224 = sphi 0, %s210
      %s228 = sphi 0, %s228
      %s230 = sphi 0, %s228
      %s231 = sphi 0, %s230
      %s245 = sphi 0, %s231
      %s249 = sphi 0, %s249
      %s251 = sphi 0, %s249
      %s252 = sphi 0, %s251
      %s266 = sphi 0, %s252
      %s272 = sphi 0, %s274
      %s275 = sphi 0, %s272
      %s276 = sphi 0, %s275
      %s292 = sphi 0, %s276
    $region4: #{tpu_custom_call.1} parent=1 // loop_header_branch
      %29 = sbr.rel (%p27) target = $region8
    $region5: #{tpu_custom_call.1} parent=1 // loop_body
      %s31 = ssub.s32 %s26, 1
      %s32 = ssub.s32 %s26, 2
      %s33 = sadd.s32 %s26, 1
      %s34 = ssub.s32 %s26, %s33
      %p35 = scmp.eq.s32.totalorder %s34, 0
      %s37 = sadd.s32 %s36, 1
      %s38 = scalar_select %p35, %s36, %s37
      %p41 = pneg %p35
      %p42 = scmp.eq.s32.totalorder %s26, 1
      %p43 = por %p41, %p42
      %p44 = scmp.ne.s32.totalorder %s36, %s39
      %p45 = scmp.eq.s32.totalorder %s26, 0
      %p46 = por %p44, %p45
      %p47 = scmp.ne.s32.totalorder %s36, %s39
      %p48 = scmp.eq.s32.totalorder %s31, 1
      %p49 = por %p47, %p48
      %p50 = scmp.ne.s32.totalorder %s39, %s40
      %p51 = scmp.eq.s32.totalorder %s31, 0
      %p52 = por %p50, %p51
      %p53 = scmp.ne.s32.totalorder %s39, %s40
      %p54 = scmp.eq.s32.totalorder %s32, 1
      %p55 = por %p53, %p54
      %p57 = scmp.ne.s32.totalorder %s40, %s56
      %p58 = scmp.eq.s32.totalorder %s32, 0
      %p59 = por %p57, %p58
      %s61 = sadd.s32 %s60, 1
      %p64 = scmp.eq.s32.totalorder %s26, 1
      %p65 = scmp.ne.s32.totalorder %s60, %s62
      %p66 = scmp.eq.s32.totalorder %s26, 0
      %p67 = por %p65, %p66
      %p68 = scmp.ne.s32.totalorder %s60, %s62
      %p69 = scmp.eq.s32.totalorder %s31, 1
      %p70 = por %p68, %p69
      %p71 = scmp.ne.s32.totalorder %s62, %s63
      %p72 = scmp.eq.s32.totalorder %s31, 0
      %p73 = por %p71, %p72
      %p74 = scmp.ne.s32.totalorder %s62, %s63
      %p75 = scmp.eq.s32.totalorder %s32, 1
      %p76 = por %p74, %p75
      %p78 = scmp.ne.s32.totalorder %s63, %s77
      %p79 = scmp.eq.s32.totalorder %s32, 0
      %p80 = por %p78, %p79
      %s82 = sadd.s32 %s81, 1
      %p85 = scmp.eq.s32.totalorder %s26, 1
      %p86 = scmp.ne.s32.totalorder %s81, %s83
      %p87 = scmp.eq.s32.totalorder %s26, 0
      %p88 = por %p86, %p87
      %p89 = scmp.ne.s32.totalorder %s81, %s83
      %p90 = scmp.eq.s32.totalorder %s31, 1
      %p91 = por %p89, %p90
      %p92 = scmp.ne.s32.totalorder %s83, %s84
      %p93 = scmp.eq.s32.totalorder %s31, 0
      %p94 = por %p92, %p93
      %p95 = scmp.ne.s32.totalorder %s83, %s84
      %p96 = scmp.eq.s32.totalorder %s32, 1
      %p97 = por %p95, %p96
      %p99 = scmp.ne.s32.totalorder %s84, %s98
      %p100 = scmp.eq.s32.totalorder %s32, 0
      %p101 = por %p99, %p100
      %s103 = sadd.s32 %s102, 1
      %p106 = scmp.eq.s32.totalorder %s26, 1
      %p107 = scmp.ne.s32.totalorder %s102, %s104
      %p108 = scmp.eq.s32.totalorder %s26, 0
      %p109 = por %p107, %p108
      %p110 = scmp.ne.s32.totalorder %s102, %s104
      %p111 = scmp.eq.s32.totalorder %s31, 1
      %p112 = por %p110, %p111
      %p113 = scmp.ne.s32.totalorder %s104, %s105
      %p114 = scmp.eq.s32.totalorder %s31, 0
      %p115 = por %p113, %p114
      %p116 = scmp.ne.s32.totalorder %s104, %s105
      %p117 = scmp.eq.s32.totalorder %s32, 1
      %p118 = por %p116, %p117
      %p120 = scmp.ne.s32.totalorder %s105, %s119
      %p121 = scmp.eq.s32.totalorder %s32, 0
      %p122 = por %p120, %p121
      %s124 = sadd.s32 %s123, 1
      %p127 = scmp.eq.s32.totalorder %s26, 1
      %p128 = scmp.ne.s32.totalorder %s123, %s125
      %p129 = scmp.eq.s32.totalorder %s26, 0
      %p130 = por %p128, %p129
      %p131 = scmp.ne.s32.totalorder %s123, %s125
      %p132 = scmp.eq.s32.totalorder %s31, 1
      %p133 = por %p131, %p132
      %p134 = scmp.ne.s32.totalorder %s125, %s126
      %p135 = scmp.eq.s32.totalorder %s31, 0
      %p136 = por %p134, %p135
      %p137 = scmp.ne.s32.totalorder %s125, %s126
      %p138 = scmp.eq.s32.totalorder %s32, 1
      %p139 = por %p137, %p138
      %p141 = scmp.ne.s32.totalorder %s126, %s140
      %p142 = scmp.eq.s32.totalorder %s32, 0
      %p143 = por %p141, %p142
      %s145 = sadd.s32 %s144, 1
      %p148 = scmp.eq.s32.totalorder %s26, 1
      %p149 = scmp.ne.s32.totalorder %s144, %s146
      %p150 = scmp.eq.s32.totalorder %s26, 0
      %p151 = por %p149, %p150
      %p152 = scmp.ne.s32.totalorder %s144, %s146
      %p153 = scmp.eq.s32.totalorder %s31, 1
      %p154 = por %p152, %p153
      %p155 = scmp.ne.s32.totalorder %s146, %s147
      %p156 = scmp.eq.s32.totalorder %s31, 0
      %p157 = por %p155, %p156
      %p158 = scmp.ne.s32.totalorder %s146, %s147
      %p159 = scmp.eq.s32.totalorder %s32, 1
      %p160 = por %p158, %p159
      %p162 = scmp.ne.s32.totalorder %s147, %s161
      %p163 = scmp.eq.s32.totalorder %s32, 0
      %p164 = por %p162, %p163
      %s166 = sadd.s32 %s165, 1
      %p169 = scmp.eq.s32.totalorder %s26, 1
      %p170 = scmp.ne.s32.totalorder %s165, %s167
      %p171 = scmp.eq.s32.totalorder %s26, 0
      %p172 = por %p170, %p171
      %p173 = scmp.ne.s32.totalorder %s165, %s167
      %p174 = scmp.eq.s32.totalorder %s31, 1
      %p175 = por %p173, %p174
      %p176 = scmp.ne.s32.totalorder %s167, %s168
      %p177 = scmp.eq.s32.totalorder %s31, 0
      %p178 = por %p176, %p177
      %p179 = scmp.ne.s32.totalorder %s167, %s168
      %p180 = scmp.eq.s32.totalorder %s32, 1
      %p181 = por %p179, %p180
      %p183 = scmp.ne.s32.totalorder %s168, %s182
      %p184 = scmp.eq.s32.totalorder %s32, 0
      %p185 = por %p183, %p184
      %s187 = sadd.s32 %s186, 1
      %p190 = scmp.eq.s32.totalorder %s26, 1
      %p191 = scmp.ne.s32.totalorder %s186, %s188
      %p192 = scmp.eq.s32.totalorder %s26, 0
      %p193 = por %p191, %p192
      %p194 = scmp.ne.s32.totalorder %s186, %s188
      %p195 = scmp.eq.s32.totalorder %s31, 1
      %p196 = por %p194, %p195
      %p197 = scmp.ne.s32.totalorder %s188, %s189
      %p198 = scmp.eq.s32.totalorder %s31, 0
      %p199 = por %p197, %p198
      %p200 = scmp.ne.s32.totalorder %s188, %s189
      %p201 = scmp.eq.s32.totalorder %s32, 1
      %p202 = por %p200, %p201
      %p204 = scmp.ne.s32.totalorder %s189, %s203
      %p205 = scmp.eq.s32.totalorder %s32, 0
      %p206 = por %p204, %p205
      %s208 = sadd.s32 %s207, 1
      %p211 = scmp.eq.s32.totalorder %s26, 1
      %p212 = scmp.ne.s32.totalorder %s207, %s209
      %p213 = scmp.eq.s32.totalorder %s26, 0
      %p214 = por %p212, %p213
      %p215 = scmp.ne.s32.totalorder %s207, %s209
      %p216 = scmp.eq.s32.totalorder %s31, 1
      %p217 = por %p215, %p216
      %p218 = scmp.ne.s32.totalorder %s209, %s210
      %p219 = scmp.eq.s32.totalorder %s31, 0
      %p220 = por %p218, %p219
      %p221 = scmp.ne.s32.totalorder %s209, %s210
      %p222 = scmp.eq.s32.totalorder %s32, 1
      %p223 = por %p221, %p222
      %p225 = scmp.ne.s32.totalorder %s210, %s224
      %p226 = scmp.eq.s32.totalorder %s32, 0
      %p227 = por %p225, %p226
      %s229 = sadd.s32 %s228, 1
      %p232 = scmp.eq.s32.totalorder %s26, 1
      %p233 = scmp.ne.s32.totalorder %s228, %s230
      %p234 = scmp.eq.s32.totalorder %s26, 0
      %p235 = por %p233, %p234
      %p236 = scmp.ne.s32.totalorder %s228, %s230
      %p237 = scmp.eq.s32.totalorder %s31, 1
      %p238 = por %p236, %p237
      %p239 = scmp.ne.s32.totalorder %s230, %s231
      %p240 = scmp.eq.s32.totalorder %s31, 0
      %p241 = por %p239, %p240
      %p242 = scmp.ne.s32.totalorder %s230, %s231
      %p243 = scmp.eq.s32.totalorder %s32, 1
      %p244 = por %p242, %p243
      %p246 = scmp.ne.s32.totalorder %s231, %s245
      %p247 = scmp.eq.s32.totalorder %s32, 0
      %p248 = por %p246, %p247
      %s250 = sadd.s32 %s249, 1
      %p253 = scmp.eq.s32.totalorder %s26, 1
      %p254 = scmp.ne.s32.totalorder %s249, %s251
      %p255 = scmp.eq.s32.totalorder %s26, 0
      %p256 = por %p254, %p255
      %p257 = scmp.ne.s32.totalorder %s249, %s251
      %p258 = scmp.eq.s32.totalorder %s31, 1
      %p259 = por %p257, %p258
      %p260 = scmp.ne.s32.totalorder %s251, %s252
      %p261 = scmp.eq.s32.totalorder %s31, 0
      %p262 = por %p260, %p261
      %p263 = scmp.ne.s32.totalorder %s251, %s252
      %p264 = scmp.eq.s32.totalorder %s32, 1
      %p265 = por %p263, %p264
      %p267 = scmp.ne.s32.totalorder %s252, %s266
      %p268 = scmp.eq.s32.totalorder %s32, 0
      %p269 = por %p267, %p268
      %s270 = ssub.s32 %s26, %s33
      %p271 = scmp.eq.s32.totalorder %s270, 0
      %s273 = sadd.s32 %s272, 1
      %s274 = scalar_select %p271, %s272, %s273
      %p277 = pneg %p271
      %p278 = scmp.eq.s32.totalorder %s26, 1
      %p279 = por %p277, %p278
      %p280 = scmp.ne.s32.totalorder %s272, %s275
      %p281 = scmp.eq.s32.totalorder %s26, 0
      %p282 = por %p280, %p281
      %p283 = scmp.ne.s32.totalorder %s272, %s275
      %p284 = scmp.eq.s32.totalorder %s31, 1
      %p285 = por %p283, %p284
      %p286 = scmp.ne.s32.totalorder %s275, %s276
      %p287 = scmp.eq.s32.totalorder %s31, 0
      %p288 = por %p286, %p287
      %p289 = scmp.ne.s32.totalorder %s275, %s276
      %p290 = scmp.eq.s32.totalorder %s32, 1
      %p291 = por %p289, %p290
      %p293 = scmp.ne.s32.totalorder %s276, %s292
      %p294 = scmp.eq.s32.totalorder %s32, 0
      %p295 = por %p293, %p294
      %p296 = scmp.le.s32.totalorder 1, %s26
      %p297 = scmp.lt.s32.totalorder %s26, 3
      %p298 = pnand %p296, %p297
      %p299 = pneg %p298
      // Predicated region
      $region9: #{tpu_custom_call.1} parent=5 // pred_check
        _
      $region10: #{tpu_custom_call.1} parent=5 // pred_check_branch
        %301 = sbr.rel (%p298) target = $region12
      $region11: #{tpu_custom_call.1} parent=5 // pred_region
        %s302 = ssub.s32 %s26, 1
        // Predicated region
        $region13: #{tpu_custom_call.1} parent=11 // pred_check
          %p303 = pneg %p73
        $region14: #{tpu_custom_call.1} parent=11 // pred_check_branch
          %305 = sbr.rel (%p303) target = $region16
        $region15: #{tpu_custom_call.1} parent=11 // pred_region
          _
        $region16: #{tpu_custom_call.1} parent=11 // pred_fallthru
          _
        // Predicated region
        $region17: #{tpu_custom_call.1} parent=11 // pred_check
          %p306 = pneg %p94
        $region18: #{tpu_custom_call.1} parent=11 // pred_check_branch
          %308 = sbr.rel (%p306) target = $region20
        $region19: #{tpu_custom_call.1} parent=11 // pred_region
          %310 = vsyncadd [#allocation6], 0
          %s311 = sshll.u32 %s2, 4
          %s312 = int_to_ptr.hbm [resolvable:$true] %s311
          %s313 = sshll.u32 [#allocation5], 4
          %s314 = int_to_ptr.vmem [resolvable:$true] %s313
          %319 = dma.hbm_to_vmem [thread:$0]  %s312, 36864, %s314, [#allocation6], 512, 512, 32
        $region20: #{tpu_custom_call.1} parent=11 // pred_fallthru
          _
        // Predicated region
        $region21: #{tpu_custom_call.1} parent=11 // pred_check
          %p320 = pneg %p115
        $region22: #{tpu_custom_call.1} parent=11 // pred_check_branch
          %322 = sbr.rel (%p320) target = $region24
        $region23: #{tpu_custom_call.1} parent=11 // pred_region
          %324 = vsyncadd [#allocation6], 0
          %s325 = sshll.u32 %s3, 4
          %s326 = int_to_ptr.hbm [resolvable:$true] %s325
          %s327 = sshll.u32 [#allocation7], 4
          %s328 = int_to_ptr.vmem [resolvable:$true] %s327
          %333 = dma.hbm_to_vmem [thread:$0]  %s326, 18432, %s328, [#allocation6], 512, 512, 32
        $region24: #{tpu_custom_call.1} parent=11 // pred_fallthru
          _
        // Predicated region
        $region25: #{tpu_custom_call.1} parent=11 // pred_check
          %p334 = pneg %p136
        $region26: #{tpu_custom_call.1} parent=11 // pred_check_branch
          %336 = sbr.rel (%p334) target = $region28
        $region27: #{tpu_custom_call.1} parent=11 // pred_region
          %338 = vsyncadd [#allocation9], 0
          %s339 = sshll.u32 %s4, 4
          %s340 = int_to_ptr.hbm [resolvable:$true] %s339
          %s341 = sshll.u32 [#allocation8], 4
          %s342 = int_to_ptr.vmem [resolvable:$true] %s341
          %347 = dma.hbm_to_vmem [thread:$0]  %s340, 18432, %s342, [#allocation9], 512, 512, 32
        $region28: #{tpu_custom_call.1} parent=11 // pred_fallthru
          _
        // Predicated region
        $region29: #{tpu_custom_call.1} parent=11 // pred_check
          %p348 = pneg %p157
        $region30: #{tpu_custom_call.1} parent=11 // pred_check_branch
          %350 = sbr.rel (%p348) target = $region32
        $region31: #{tpu_custom_call.1} parent=11 // pred_region
          _
        $region32: #{tpu_custom_call.1} parent=11 // pred_fallthru
          _
        // Predicated region
        $region33: #{tpu_custom_call.1} parent=11 // pred_check
          %p351 = pneg %p178
        $region34: #{tpu_custom_call.1} parent=11 // pred_check_branch
          %353 = sbr.rel (%p351) target = $region36
        $region35: #{tpu_custom_call.1} parent=11 // pred_region
          %355 = vsyncadd [#allocation9], 0
          %s357 = sshll.u32 %s6, 4
          %s358 = int_to_ptr.hbm [resolvable:$true] %s357
          %s359 = sshll.u32 [#allocation10], 4
          %s360 = int_to_ptr.vmem [resolvable:$true] %s359
          %362 = dma.hbm_to_vmem [thread:$0]  %s358, 32, %s360, [#allocation9]
        $region36: #{tpu_custom_call.1} parent=11 // pred_fallthru
          _
        // Predicated region
        $region37: #{tpu_custom_call.1} parent=11 // pred_check
          %p363 = pneg %p199
        $region38: #{tpu_custom_call.1} parent=11 // pred_check_branch
          %365 = sbr.rel (%p363) target = $region40
        $region39: #{tpu_custom_call.1} parent=11 // pred_region
          _
        $region40: #{tpu_custom_call.1} parent=11 // pred_fallthru
          _
        // Predicated region
        $region41: #{tpu_custom_call.1} parent=11 // pred_check
          %p366 = pneg %p220
        $region42: #{tpu_custom_call.1} parent=11 // pred_check_branch
          %368 = sbr.rel (%p366) target = $region44
        $region43: #{tpu_custom_call.1} parent=11 // pred_region
          %370 = vsyncadd [#allocation12], 0
          %s371 = sshll.u32 %s8, 4
          %s372 = int_to_ptr.hbm [resolvable:$true] %s371
          %s373 = sshll.u32 [#allocation11], 4
          %s374 = int_to_ptr.vmem [resolvable:$true] %s373
          %379 = dma.hbm_to_vmem [thread:$0]  %s372, 1024, %s374, [#allocation12], 128, 128, 8
        $region44: #{tpu_custom_call.1} parent=11 // pred_fallthru
          _
        // Predicated region
        $region45: #{tpu_custom_call.1} parent=11 // pred_check
          %p380 = pneg %p241
        $region46: #{tpu_custom_call.1} parent=11 // pred_check_branch
          %382 = sbr.rel (%p380) target = $region48
        $region47: #{tpu_custom_call.1} parent=11 // pred_region
          _
        $region48: #{tpu_custom_call.1} parent=11 // pred_fallthru
          _
        // Predicated region
        $region49: #{tpu_custom_call.1} parent=11 // pred_check
          %p383 = pneg %p262
        $region50: #{tpu_custom_call.1} parent=11 // pred_check_branch
          %385 = sbr.rel (%p383) target = $region52
        $region51: #{tpu_custom_call.1} parent=11 // pred_region
          %387 = vsyncadd [#allocation12], 0
          %s389 = sshll.u32 %s10, 4
          %s390 = int_to_ptr.hbm [resolvable:$true] %s389
          %s391 = sshll.u32 [#allocation13], 4
          %s392 = int_to_ptr.vmem [resolvable:$true] %s391
          %394 = dma.hbm_to_vmem [thread:$0]  %s390, 128, %s392, [#allocation12]
        $region52: #{tpu_custom_call.1} parent=11 // pred_fallthru
          _
      $region12: #{tpu_custom_call.1} parent=5 // pred_fallthru
        _
      %p395 = scmp.lt.s32.totalorder %s26, 2
      // Predicated region
      $region53: #{tpu_custom_call.1} parent=5 // pred_check
        %p396 = pneg %p395
      $region54: #{tpu_custom_call.1} parent=5 // pred_check_branch
        %398 = sbr.rel (%p396) target = $region56
      $region55: #{tpu_custom_call.1} parent=5 // pred_region
        // Predicated region
        $region57: #{tpu_custom_call.1} parent=55 // pred_check
          %p399 = pneg %p46
        $region58: #{tpu_custom_call.1} parent=55 // pred_check_branch
          %401 = sbr.rel (%p399) target = $region60
        $region59: #{tpu_custom_call.1} parent=55 // pred_region
          %s402 = sand.u32 %s36, 1
          %s403 = scalar_lea.sflag [#allocation3], %s402
          %s404 = sand.u32 %s36, 1
          %s405 = smul.addr %s404, 128
          %s406 = scalar_lea.vmem [#allocation2], %s405
          %s407 = smul.u32 4, %s26
          %409 = vsyncadd %s403, 0
          %s410 = smul.addr %s407, 8
          %s411 = scalar_lea.hbm %s0, %s410
          %s412 = sshll.u32 %s411, 4
          %s413 = int_to_ptr.hbm [resolvable:$true] %s412
          %s414 = sshll.u32 %s406, 4
          %s415 = int_to_ptr.vmem [resolvable:$true] %s414
          %420 = dma.hbm_to_vmem [thread:$0]  %s413, 2048, %s415, %s403, 1024, 512, 32
        $region60: #{tpu_custom_call.1} parent=55 // pred_fallthru
          _
      $region56: #{tpu_custom_call.1} parent=5 // pred_fallthru
        _
      %p421 = scmp.le.s32.totalorder 1, %s26
      %p422 = scmp.lt.s32.totalorder %s26, 3
      %p423 = pnand %p421, %p422
      %p424 = pneg %p423
      // Predicated region
      $region61: #{tpu_custom_call.1} parent=5 // pred_check
        _
      $region62: #{tpu_custom_call.1} parent=5 // pred_check_branch
        %426 = sbr.rel (%p423) target = $region64
      $region63: #{tpu_custom_call.1} parent=5 // pred_region
        %s427 = ssub.s32 %s26, 1
        %s428 = sand.u32 %s39, 1
        %s429 = scalar_lea.sflag [#allocation3], %s428
        %s430 = sand.u32 %s39, 1
        %s431 = smul.addr %s430, 128
        %s432 = scalar_lea.vmem [#allocation2], %s431
        // Predicated region
        $region65: #{tpu_custom_call.1} parent=63 // pred_check
          %p433 = pneg %p52
        $region66: #{tpu_custom_call.1} parent=63 // pred_check_branch
          %435 = sbr.rel (%p433) target = $region68
        $region67: #{tpu_custom_call.1} parent=63 // pred_region
          %437 = dma.done %s429, 2048
        $region68: #{tpu_custom_call.1} parent=63 // pred_fallthru
          _
        // Predicated region
        $region69: #{tpu_custom_call.1} parent=63 // pred_check
          %p438 = pneg %p94
        $region70: #{tpu_custom_call.1} parent=63 // pred_check_branch
          %440 = sbr.rel (%p438) target = $region72
        $region71: #{tpu_custom_call.1} parent=63 // pred_region
          %442 = dma.done [#allocation6], 36864
        $region72: #{tpu_custom_call.1} parent=63 // pred_fallthru
          _
        // Predicated region
        $region73: #{tpu_custom_call.1} parent=63 // pred_check
          %p443 = pneg %p115
        $region74: #{tpu_custom_call.1} parent=63 // pred_check_branch
          %445 = sbr.rel (%p443) target = $region76
        $region75: #{tpu_custom_call.1} parent=63 // pred_region
          %447 = dma.done [#allocation6], 18432
        $region76: #{tpu_custom_call.1} parent=63 // pred_fallthru
          _
        // Predicated region
        $region77: #{tpu_custom_call.1} parent=63 // pred_check
          %p448 = pneg %p136
        $region78: #{tpu_custom_call.1} parent=63 // pred_check_branch
          %450 = sbr.rel (%p448) target = $region80
        $region79: #{tpu_custom_call.1} parent=63 // pred_region
          %452 = dma.done [#allocation9], 18432
        $region80: #{tpu_custom_call.1} parent=63 // pred_fallthru
          _
        // Predicated region
        $region81: #{tpu_custom_call.1} parent=63 // pred_check
          %p453 = pneg %p178
        $region82: #{tpu_custom_call.1} parent=63 // pred_check_branch
          %455 = sbr.rel (%p453) target = $region84
        $region83: #{tpu_custom_call.1} parent=63 // pred_region
          %457 = dma.done [#allocation9], 32
        $region84: #{tpu_custom_call.1} parent=63 // pred_fallthru
          _
        // Predicated region
        $region85: #{tpu_custom_call.1} parent=63 // pred_check
          %p458 = pneg %p220
        $region86: #{tpu_custom_call.1} parent=63 // pred_check_branch
          %460 = sbr.rel (%p458) target = $region88
        $region87: #{tpu_custom_call.1} parent=63 // pred_region
          %462 = dma.done [#allocation12], 1024
        $region88: #{tpu_custom_call.1} parent=63 // pred_fallthru
          _
        // Predicated region
        $region89: #{tpu_custom_call.1} parent=63 // pred_check
          %p463 = pneg %p262
        $region90: #{tpu_custom_call.1} parent=63 // pred_check_branch
          %465 = sbr.rel (%p463) target = $region92
        $region91: #{tpu_custom_call.1} parent=63 // pred_region
          %467 = dma.done [#allocation12], 128
        $region92: #{tpu_custom_call.1} parent=63 // pred_fallthru
          _
        %s468 = sand.u32 %s39, 1
        %s469 = scalar_lea.sflag [#allocation3], %s468
        %s470 = sand.u32 %s39, 1
        %s471 = smul.addr %s470, 128
        %s472 = scalar_lea.vmem [#allocation2], %s471
        %p473 = pneg %p52
        %p474 = pneg %p49
        %p475 = pneg %p73
        %p476 = pneg %p70
        %p477 = pneg %p94
        %p478 = pneg %p91
        %p479 = pneg %p115
        %p480 = pneg %p112
        %p481 = pneg %p136
        %p482 = pneg %p133
        %p483 = pneg %p157
        %p484 = pneg %p154
        %p485 = pneg %p178
        %p486 = pneg %p175
        %p487 = pneg %p199
        %p488 = pneg %p196
        %p489 = pneg %p220
        %p490 = pneg %p217
        %p491 = pneg %p241
        %p492 = pneg %p238
        %p493 = pneg %p262
        %p494 = pneg %p259
        %p495 = pneg %p288
        %p496 = pneg %p285
        %s497 = sand.u32 %s275, 1
        %s498 = scalar_lea.sflag [#allocation4], %s497
        %s499 = sand.u32 %s275, 1
        %s500 = smul.addr %s499, 128
        %s501 = scalar_lea.vmem [#allocation14], %s500
        %s502 = smul.u32 4, %s31
        %s503 = smul.u32 4, %s31
        %v504 = vld [vmem:[%s432] sm:$0xff]
        %v505 = vld [vmem:[%s432 + $0x8] sm:$0xff]
        %v506 = vld [vmem:[%s432 + $0x10] sm:$0xff]
        %v507 = vld [vmem:[%s432 + $0x18] sm:$0xff]
        %v508 = vld [vmem:[%s432 + $0x20] sm:$0xff]
        %v509 = vld [vmem:[%s432 + $0x28] sm:$0xff]
        %v510 = vld [vmem:[%s432 + $0x30] sm:$0xff]
        %v511 = vld [vmem:[%s432 + $0x38] sm:$0xff]
        %v512 = vld [vmem:[%s432 + $0x40] sm:$0xff]
        %v513 = vld [vmem:[%s432 + $0x48] sm:$0xff]
        %v514 = vld [vmem:[%s432 + $0x50] sm:$0xff]
        %v515 = vld [vmem:[%s432 + $0x58] sm:$0xff]
        %v516 = vld [vmem:[%s432 + $0x60] sm:$0xff]
        %v517 = vld [vmem:[%s432 + $0x68] sm:$0xff]
        %v518 = vld [vmem:[%s432 + $0x70] sm:$0xff]
        %v519 = vld [vmem:[%s432 + $0x78] sm:$0xff]
        %v520 = vld [vmem:[%s1] sm:$0xff]
        %v521 = vld [vmem:[%s1 + $0x8] sm:$0xff]
        %v522 = vld [vmem:[%s1 + $0x10] sm:$0xff]
        %v523 = vld [vmem:[%s1 + $0x18] sm:$0xff]
        %v524 = vld [vmem:[%s1 + $0x20] sm:$0xff]
        %v525 = vld [vmem:[%s1 + $0x28] sm:$0xff]
        %v526 = vld [vmem:[%s1 + $0x30] sm:$0xff]
        %v527 = vld [vmem:[%s1 + $0x38] sm:$0xff]
        %v528 = vld [vmem:[%s1 + $0x40] sm:$0xff]
        %v529 = vld [vmem:[%s1 + $0x48] sm:$0xff]
        %v530 = vld [vmem:[%s1 + $0x50] sm:$0xff]
        %v531 = vld [vmem:[%s1 + $0x58] sm:$0xff]
        %vm532 = vcmask 261120
        %v534 = vsel %vm532, %v520, 0
        %v537 = vsel %vm532, %v521, 0
        %v540 = vsel %vm532, %v522, 0
        %v543 = vsel %vm532, %v523, 0
        %v546 = vsel %vm532, %v524, 0
        %v549 = vsel %vm532, %v525, 0
        %v552 = vsel %vm532, %v526, 0
        %v555 = vsel %vm532, %v527, 0
        %v558 = vsel %vm532, %v528, 0
        %v561 = vsel %vm532, %v529, 0
        %v564 = vsel %vm532, %v530, 0
        %v567 = vsel %vm532, %v531, 0
        %569 = vmatpush.msra.mxu0 0.0
        %570 = vmatpush.msra.mxu0 0.0
        %571 = vmatpush.msra.mxu0 0.0
        %572 = vmatpush.msra.mxu0 0.0
        %573 = vmatpush.msra.mxu0 0.0
        %574 = vmatpush.msra.mxu0 0.0
        %575 = vmatpush.msra.mxu0 0.0
        %576 = vmatpush.msra.mxu0 0.0
        %577 = vmatpush.msra.mxu0 0.0
        %578 = vmatpush.msra.mxu0 0.0
        %579 = vmatpush.msra.mxu0 0.0
        %580 = vmatpush.msra.mxu0 0.0
        %581 = vmatpush.msra.mxu0 %v516
        %582 = vmatpush.msra.mxu0 %v512
        %583 = vmatpush.msra.mxu0 %v508
        %584 = vmatpush.msra.mxu0 %v504
        %585 = vmatmul.f32.gmra.mxu0 %v534
        %v586 = vpop.f32.mrf.mxu0
        %v587 = vadd.f32 0.0, %v586
        %588 = vmatmul.f32.gmra.mxu0 %v537
        %v589 = vpop.f32.mrf.mxu0
        %v590 = vadd.f32 0.0, %v589
        %591 = vmatmul.f32.gmra.mxu0 %v540
        %v592 = vpop.f32.mrf.mxu0
        %v593 = vadd.f32 0.0, %v592
        %594 = vmatmul.f32.gmra.mxu0 %v543
        %v595 = vpop.f32.mrf.mxu0
        %v596 = vadd.f32 0.0, %v595
        %597 = vmatmul.f32.gmra.mxu0 %v546
        %v598 = vpop.f32.mrf.mxu0
        %v599 = vadd.f32 0.0, %v598
        %600 = vmatmul.f32.gmra.mxu0 %v549
        %v601 = vpop.f32.mrf.mxu0
        %v602 = vadd.f32 0.0, %v601
        %603 = vmatmul.f32.gmra.mxu0 %v552
        %v604 = vpop.f32.mrf.mxu0
        %v605 = vadd.f32 0.0, %v604
        %606 = vmatmul.f32.gmra.mxu0 %v555
        %v607 = vpop.f32.mrf.mxu0
        %v608 = vadd.f32 0.0, %v607
        %609 = vmatmul.f32.gmra.mxu0 %v558
        %v610 = vpop.f32.mrf.mxu0
        %v611 = vadd.f32 0.0, %v610
        %612 = vmatmul.f32.gmra.mxu0 %v561
        %v613 = vpop.f32.mrf.mxu0
        %v614 = vadd.f32 0.0, %v613
        %615 = vmatmul.f32.gmra.mxu0 %v564
        %v616 = vpop.f32.mrf.mxu0
        %v617 = vadd.f32 0.0, %v616
        %618 = vmatmul.f32.gmra.mxu0 %v567
        %v619 = vpop.f32.mrf.mxu0
        %v620 = vadd.f32 0.0, %v619
        %621 = vdwg.mxu0
        %622 = vmatpush.msra.mxu0 0.0
        %623 = vmatpush.msra.mxu0 0.0
        %624 = vmatpush.msra.mxu0 0.0
        %625 = vmatpush.msra.mxu0 0.0
        %626 = vmatpush.msra.mxu0 0.0
        %627 = vmatpush.msra.mxu0 0.0
        %628 = vmatpush.msra.mxu0 0.0
        %629 = vmatpush.msra.mxu0 0.0
        %630 = vmatpush.msra.mxu0 0.0
        %631 = vmatpush.msra.mxu0 0.0
        %632 = vmatpush.msra.mxu0 0.0
        %633 = vmatpush.msra.mxu0 0.0
        %634 = vmatpush.msra.mxu0 %v517
        %635 = vmatpush.msra.mxu0 %v513
        %636 = vmatpush.msra.mxu0 %v509
        %637 = vmatpush.msra.mxu0 %v505
        %638 = vmatmul.f32.gmra.mxu0 %v534
        %v639 = vpop.f32.mrf.mxu0
        %v640 = vadd.f32 0.0, %v639
        %641 = vmatmul.f32.gmra.mxu0 %v537
        %v642 = vpop.f32.mrf.mxu0
        %v643 = vadd.f32 0.0, %v642
        %644 = vmatmul.f32.gmra.mxu0 %v540
        %v645 = vpop.f32.mrf.mxu0
        %v646 = vadd.f32 0.0, %v645
        %647 = vmatmul.f32.gmra.mxu0 %v543
        %v648 = vpop.f32.mrf.mxu0
        %v649 = vadd.f32 0.0, %v648
        %650 = vmatmul.f32.gmra.mxu0 %v546
        %v651 = vpop.f32.mrf.mxu0
        %v652 = vadd.f32 0.0, %v651
        %653 = vmatmul.f32.gmra.mxu0 %v549
        %v654 = vpop.f32.mrf.mxu0
        %v655 = vadd.f32 0.0, %v654
        %656 = vmatmul.f32.gmra.mxu0 %v552
        %v657 = vpop.f32.mrf.mxu0
        %v658 = vadd.f32 0.0, %v657
        %659 = vmatmul.f32.gmra.mxu0 %v555
        %v660 = vpop.f32.mrf.mxu0
        %v661 = vadd.f32 0.0, %v660
        %662 = vmatmul.f32.gmra.mxu0 %v558
        %v663 = vpop.f32.mrf.mxu0
        %v664 = vadd.f32 0.0, %v663
        %665 = vmatmul.f32.gmra.mxu0 %v561
        %v666 = vpop.f32.mrf.mxu0
        %v667 = vadd.f32 0.0, %v666
        %668 = vmatmul.f32.gmra.mxu0 %v564
        %v669 = vpop.f32.mrf.mxu0
        %v670 = vadd.f32 0.0, %v669
        %671 = vmatmul.f32.gmra.mxu0 %v567
        %v672 = vpop.f32.mrf.mxu0
        %v673 = vadd.f32 0.0, %v672
        %674 = vdwg.mxu0
        %675 = vmatpush.msra.mxu0 0.0
        %676 = vmatpush.msra.mxu0 0.0
        %677 = vmatpush.msra.mxu0 0.0
        %678 = vmatpush.msra.mxu0 0.0
        %679 = vmatpush.msra.mxu0 0.0
        %680 = vmatpush.msra.mxu0 0.0
        %681 = vmatpush.msra.mxu0 0.0
        %682 = vmatpush.msra.mxu0 0.0
        %683 = vmatpush.msra.mxu0 0.0
        %684 = vmatpush.msra.mxu0 0.0
        %685 = vmatpush.msra.mxu0 0.0
        %686 = vmatpush.msra.mxu0 0.0
        %687 = vmatpush.msra.mxu0 %v518
        %688 = vmatpush.msra.mxu0 %v514
        %689 = vmatpush.msra.mxu0 %v510
        %690 = vmatpush.msra.mxu0 %v506
        %691 = vmatmul.f32.gmra.mxu0 %v534
        %v692 = vpop.f32.mrf.mxu0
        %v693 = vadd.f32 0.0, %v692
        %694 = vmatmul.f32.gmra.mxu0 %v537
        %v695 = vpop.f32.mrf.mxu0
        %v696 = vadd.f32 0.0, %v695
        %697 = vmatmul.f32.gmra.mxu0 %v540
        %v698 = vpop.f32.mrf.mxu0
        %v699 = vadd.f32 0.0, %v698
        %700 = vmatmul.f32.gmra.mxu0 %v543
        %v701 = vpop.f32.mrf.mxu0
        %v702 = vadd.f32 0.0, %v701
        %703 = vmatmul.f32.gmra.mxu0 %v546
        %v704 = vpop.f32.mrf.mxu0
        %v705 = vadd.f32 0.0, %v704
        %706 = vmatmul.f32.gmra.mxu0 %v549
        %v707 = vpop.f32.mrf.mxu0
        %v708 = vadd.f32 0.0, %v707
        %709 = vmatmul.f32.gmra.mxu0 %v552
        %v710 = vpop.f32.mrf.mxu0
        %v711 = vadd.f32 0.0, %v710
        %712 = vmatmul.f32.gmra.mxu0 %v555
        %v713 = vpop.f32.mrf.mxu0
        %v714 = vadd.f32 0.0, %v713
        %715 = vmatmul.f32.gmra.mxu0 %v558
        %v716 = vpop.f32.mrf.mxu0
        %v717 = vadd.f32 0.0, %v716
        %718 = vmatmul.f32.gmra.mxu0 %v561
        %v719 = vpop.f32.mrf.mxu0
        %v720 = vadd.f32 0.0, %v719
        %721 = vmatmul.f32.gmra.mxu0 %v564
        %v722 = vpop.f32.mrf.mxu0
        %v723 = vadd.f32 0.0, %v722
        %724 = vmatmul.f32.gmra.mxu0 %v567
        %v725 = vpop.f32.mrf.mxu0
        %v726 = vadd.f32 0.0, %v725
        %727 = vdwg.mxu0
        %728 = vmatpush.msra.mxu0 0.0
        %729 = vmatpush.msra.mxu0 0.0
        %730 = vmatpush.msra.mxu0 0.0
        %731 = vmatpush.msra.mxu0 0.0
        %732 = vmatpush.msra.mxu0 0.0
        %733 = vmatpush.msra.mxu0 0.0
        %734 = vmatpush.msra.mxu0 0.0
        %735 = vmatpush.msra.mxu0 0.0
        %736 = vmatpush.msra.mxu0 0.0
        %737 = vmatpush.msra.mxu0 0.0
        %738 = vmatpush.msra.mxu0 0.0
        %739 = vmatpush.msra.mxu0 0.0
        %740 = vmatpush.msra.mxu0 %v519
        %741 = vmatpush.msra.mxu0 %v515
        %742 = vmatpush.msra.mxu0 %v511
        %743 = vmatpush.msra.mxu0 %v507
        %744 = vmatmul.f32.gmra.mxu0 %v534
        %v745 = vpop.f32.mrf.mxu0
        %v746 = vadd.f32 0.0, %v745
        %747 = vmatmul.f32.gmra.mxu0 %v537
        %v748 = vpop.f32.mrf.mxu0
        %v749 = vadd.f32 0.0, %v748
        %750 = vmatmul.f32.gmra.mxu0 %v540
        %v751 = vpop.f32.mrf.mxu0
        %v752 = vadd.f32 0.0, %v751
        %753 = vmatmul.f32.gmra.mxu0 %v543
        %v754 = vpop.f32.mrf.mxu0
        %v755 = vadd.f32 0.0, %v754
        %756 = vmatmul.f32.gmra.mxu0 %v546
        %v757 = vpop.f32.mrf.mxu0
        %v758 = vadd.f32 0.0, %v757
        %759 = vmatmul.f32.gmra.mxu0 %v549
        %v760 = vpop.f32.mrf.mxu0
        %v761 = vadd.f32 0.0, %v760
        %762 = vmatmul.f32.gmra.mxu0 %v552
        %v763 = vpop.f32.mrf.mxu0
        %v764 = vadd.f32 0.0, %v763
        %765 = vmatmul.f32.gmra.mxu0 %v555
        %v766 = vpop.f32.mrf.mxu0
        %v767 = vadd.f32 0.0, %v766
        %768 = vmatmul.f32.gmra.mxu0 %v558
        %v769 = vpop.f32.mrf.mxu0
        %v770 = vadd.f32 0.0, %v769
        %771 = vmatmul.f32.gmra.mxu0 %v561
        %v772 = vpop.f32.mrf.mxu0
        %v773 = vadd.f32 0.0, %v772
        %774 = vmatmul.f32.gmra.mxu0 %v564
        %v775 = vpop.f32.mrf.mxu0
        %v776 = vadd.f32 0.0, %v775
        %777 = vmatmul.f32.gmra.mxu0 %v567
        %v778 = vpop.f32.mrf.mxu0
        %v779 = vadd.f32 0.0, %v778
        %780 = vdwg.mxu0
        %v781 = vld [vmem:[%s5] sm:$0xff]
        %v782 = vld [vmem:[%s5 + $0x8] sm:$0xff]
        %v783 = vld [vmem:[%s5 + $0x10] sm:$0xff]
        %v784 = vld [vmem:[%s5 + $0x18] sm:$0xff]
        %v785 = vld [vmem:[%s5 + $0x20] sm:$0xff]
        %v786 = vld [vmem:[%s5 + $0x28] sm:$0xff]
        %v787 = vld [vmem:[%s5 + $0x30] sm:$0xff]
        %v788 = vld [vmem:[%s5 + $0x38] sm:$0xff]
        %v789 = vld [vmem:[#allocation5] sm:$0xff]
        %v790 = vld [vmem:[#allocation5 + $0x8] sm:$0xff]
        %v791 = vld [vmem:[#allocation5 + $0x10] sm:$0xff]
        %v792 = vld [vmem:[#allocation5 + $0x18] sm:$0xff]
        %v793 = vld [vmem:[#allocation5 + $0x20] sm:$0xff]
        %v794 = vld [vmem:[#allocation5 + $0x28] sm:$0xff]
        %v795 = vld [vmem:[#allocation5 + $0x30] sm:$0xff]
        %v796 = vld [vmem:[#allocation5 + $0x38] sm:$0xff]
        %v797 = vld [vmem:[#allocation5 + $0x40] sm:$0xff]
        %v798 = vld [vmem:[#allocation5 + $0x48] sm:$0xff]
        %v799 = vld [vmem:[#allocation5 + $0x50] sm:$0xff]
        %v800 = vld [vmem:[#allocation5 + $0x58] sm:$0xff]
        %v801 = vld [vmem:[#allocation5 + $0x60] sm:$0xff]
        %v802 = vld [vmem:[#allocation5 + $0x68] sm:$0xff]
        %v803 = vld [vmem:[#allocation5 + $0x70] sm:$0xff]
        %v804 = vld [vmem:[#allocation5 + $0x78] sm:$0xff]
        %v805 = vld [vmem:[#allocation5 + $0x80] sm:$0xff]
        %v806 = vld [vmem:[#allocation5 + $0x88] sm:$0xff]
        %v807 = vld [vmem:[#allocation5 + $0x90] sm:$0xff]
        %v808 = vld [vmem:[#allocation5 + $0x98] sm:$0xff]
        %v809 = vld [vmem:[#allocation5 + $0xa0] sm:$0xff]
        %v810 = vld [vmem:[#allocation5 + $0xa8] sm:$0xff]
        %v811 = vld [vmem:[#allocation5 + $0xb0] sm:$0xff]
        %v812 = vld [vmem:[#allocation5 + $0xb8] sm:$0xff]
        %v813 = vld [vmem:[#allocation5 + $0xc0] sm:$0xff]
        %v814 = vld [vmem:[#allocation5 + $0xc8] sm:$0xff]
        %v815 = vld [vmem:[#allocation5 + $0xd0] sm:$0xff]
        %v816 = vld [vmem:[#allocation5 + $0xd8] sm:$0xff]
        %v817 = vld [vmem:[#allocation5 + $0xe0] sm:$0xff]
        %v818 = vld [vmem:[#allocation5 + $0xe8] sm:$0xff]
        %v819 = vld [vmem:[#allocation5 + $0xf0] sm:$0xff]
        %v820 = vld [vmem:[#allocation5 + $0xf8] sm:$0xff]
        %821 = vrot.lane.b32.xlu0 %v587, 17
        %v822 = vpop.permute.xlu0 %821
        %823 = vrot.lane.b32.xlu0 %v590, 17
        %v824 = vpop.permute.xlu0 %823
        %825 = vrot.lane.b32.xlu0 %v593, 17
        %v826 = vpop.permute.xlu0 %825
        %827 = vrot.lane.b32.xlu0 %v596, 17
        %v828 = vpop.permute.xlu0 %827
        %829 = vrot.lane.b32.xlu0 %v599, 17
        %v830 = vpop.permute.xlu0 %829
        %831 = vrot.lane.b32.xlu0 %v602, 17
        %v832 = vpop.permute.xlu0 %831
        %833 = vrot.lane.b32.xlu0 %v605, 17
        %v834 = vpop.permute.xlu0 %833
        %835 = vrot.lane.b32.xlu0 %v608, 17
        %v836 = vpop.permute.xlu0 %835
        %837 = vrot.lane.b32.xlu0 %v640, 17
        %v838 = vpop.permute.xlu0 %837
        %839 = vrot.lane.b32.xlu0 %v643, 17
        %v840 = vpop.permute.xlu0 %839
        %841 = vrot.lane.b32.xlu0 %v646, 17
        %v842 = vpop.permute.xlu0 %841
        %843 = vrot.lane.b32.xlu0 %v649, 17
        %v844 = vpop.permute.xlu0 %843
        %845 = vrot.lane.b32.xlu0 %v652, 17
        %v846 = vpop.permute.xlu0 %845
        %847 = vrot.lane.b32.xlu0 %v655, 17
        %v848 = vpop.permute.xlu0 %847
        %849 = vrot.lane.b32.xlu0 %v658, 17
        %v850 = vpop.permute.xlu0 %849
        %851 = vrot.lane.b32.xlu0 %v661, 17
        %v852 = vpop.permute.xlu0 %851
        %853 = vrot.lane.b32.xlu0 %v693, 17
        %v854 = vpop.permute.xlu0 %853
        %855 = vrot.lane.b32.xlu0 %v696, 17
        %v856 = vpop.permute.xlu0 %855
        %857 = vrot.lane.b32.xlu0 %v699, 17
        %v858 = vpop.permute.xlu0 %857
        %859 = vrot.lane.b32.xlu0 %v702, 17
        %v860 = vpop.permute.xlu0 %859
        %861 = vrot.lane.b32.xlu0 %v705, 17
        %v862 = vpop.permute.xlu0 %861
        %863 = vrot.lane.b32.xlu0 %v708, 17
        %v864 = vpop.permute.xlu0 %863
        %865 = vrot.lane.b32.xlu0 %v711, 17
        %v866 = vpop.permute.xlu0 %865
        %867 = vrot.lane.b32.xlu0 %v714, 17
        %v868 = vpop.permute.xlu0 %867
        %869 = vrot.lane.b32.xlu0 %v746, 17
        %v870 = vpop.permute.xlu0 %869
        %871 = vrot.lane.b32.xlu0 %v749, 17
        %v872 = vpop.permute.xlu0 %871
        %873 = vrot.lane.b32.xlu0 %v752, 17
        %v874 = vpop.permute.xlu0 %873
        %875 = vrot.lane.b32.xlu0 %v755, 17
        %v876 = vpop.permute.xlu0 %875
        %877 = vrot.lane.b32.xlu0 %v758, 17
        %v878 = vpop.permute.xlu0 %877
        %879 = vrot.lane.b32.xlu0 %v761, 17
        %v880 = vpop.permute.xlu0 %879
        %881 = vrot.lane.b32.xlu0 %v764, 17
        %v882 = vpop.permute.xlu0 %881
        %883 = vrot.lane.b32.xlu0 %v767, 17
        %v884 = vpop.permute.xlu0 %883
        %v885 = vlaneseq
        %v886 = vand.u32 %v885, 127
        %vm887 = vcmp.lt.s32.totalorder %v886, 17
        %v888 = vsel %vm887, %v854, %v870
        %v889 = vsel %vm887, %v856, %v872
        %v890 = vsel %vm887, %v858, %v874
        %v891 = vsel %vm887, %v860, %v876
        %v892 = vsel %vm887, %v862, %v878
        %v893 = vsel %vm887, %v864, %v880
        %v894 = vsel %vm887, %v866, %v882
        %v895 = vsel %vm887, %v868, %v884
        %v896 = vsel %vm887, %v838, %v854
        %v897 = vsel %vm887, %v840, %v856
        %v898 = vsel %vm887, %v842, %v858
        %v899 = vsel %vm887, %v844, %v860
        %v900 = vsel %vm887, %v846, %v862
        %v901 = vsel %vm887, %v848, %v864
        %v902 = vsel %vm887, %v850, %v866
        %v903 = vsel %vm887, %v852, %v868
        %v904 = vsel %vm887, %v822, %v838
        %v905 = vsel %vm887, %v824, %v840
        %v906 = vsel %vm887, %v826, %v842
        %v907 = vsel %vm887, %v828, %v844
        %v908 = vsel %vm887, %v830, %v846
        %v909 = vsel %vm887, %v832, %v848
        %v910 = vsel %vm887, %v834, %v850
        %v911 = vsel %vm887, %v836, %v852
        %v912 = vsel %vm887, %v870, %v822
        %v913 = vsel %vm887, %v872, %v824
        %v914 = vsel %vm887, %v874, %v826
        %v915 = vsel %vm887, %v876, %v828
        %v916 = vsel %vm887, %v878, %v830
        %v917 = vsel %vm887, %v880, %v832
        %v918 = vsel %vm887, %v882, %v834
        %v919 = vsel %vm887, %v884, %v836
        %v920 = vmul.f32 %v912, %v789
        %v921 = vmul.f32 %v904, %v790
        %v922 = vmul.f32 %v896, %v791
        %v923 = vmul.f32 %v888, %v792
        %v924 = vmul.f32 %v913, %v793
        %v925 = vmul.f32 %v905, %v794
        %v926 = vmul.f32 %v897, %v795
        %v927 = vmul.f32 %v889, %v796
        %v928 = vmul.f32 %v914, %v797
        %v929 = vmul.f32 %v906, %v798
        %v930 = vmul.f32 %v898, %v799
        %v931 = vmul.f32 %v890, %v800
        %v932 = vmul.f32 %v915, %v801
        %v933 = vmul.f32 %v907, %v802
        %v934 = vmul.f32 %v899, %v803
        %v935 = vmul.f32 %v891, %v804
        %v936 = vmul.f32 %v916, %v805
        %v937 = vmul.f32 %v908, %v806
        %v938 = vmul.f32 %v900, %v807
        %v939 = vmul.f32 %v892, %v808
        %v940 = vmul.f32 %v917, %v809
        %v941 = vmul.f32 %v909, %v810
        %v942 = vmul.f32 %v901, %v811
        %v943 = vmul.f32 %v893, %v812
        %v944 = vmul.f32 %v918, %v813
        %v945 = vmul.f32 %v910, %v814
        %v946 = vmul.f32 %v902, %v815
        %v947 = vmul.f32 %v894, %v816
        %v948 = vmul.f32 %v919, %v817
        %v949 = vmul.f32 %v911, %v818
        %v950 = vmul.f32 %v903, %v819
        %v951 = vmul.f32 %v895, %v820
        %s952 = scalar_lea.vmem [#allocation5], 256
        %v953 = vld [vmem:[%s952] sm:$0xff]
        %v954 = vld [vmem:[%s952 + $0x8] sm:$0xff]
        %v955 = vld [vmem:[%s952 + $0x10] sm:$0xff]
        %v956 = vld [vmem:[%s952 + $0x18] sm:$0xff]
        %v957 = vld [vmem:[%s952 + $0x20] sm:$0xff]
        %v958 = vld [vmem:[%s952 + $0x28] sm:$0xff]
        %v959 = vld [vmem:[%s952 + $0x30] sm:$0xff]
        %v960 = vld [vmem:[%s952 + $0x38] sm:$0xff]
        %v961 = vld [vmem:[%s952 + $0x40] sm:$0xff]
        %v962 = vld [vmem:[%s952 + $0x48] sm:$0xff]
        %v963 = vld [vmem:[%s952 + $0x50] sm:$0xff]
        %v964 = vld [vmem:[%s952 + $0x58] sm:$0xff]
        %v965 = vld [vmem:[%s952 + $0x60] sm:$0xff]
        %v966 = vld [vmem:[%s952 + $0x68] sm:$0xff]
        %v967 = vld [vmem:[%s952 + $0x70] sm:$0xff]
        %v968 = vld [vmem:[%s952 + $0x78] sm:$0xff]
        %v969 = vld [vmem:[%s952 + $0x80] sm:$0xff]
        %v970 = vld [vmem:[%s952 + $0x88] sm:$0xff]
        %v971 = vld [vmem:[%s952 + $0x90] sm:$0xff]
        %v972 = vld [vmem:[%s952 + $0x98] sm:$0xff]
        %v973 = vld [vmem:[%s952 + $0xa0] sm:$0xff]
        %v974 = vld [vmem:[%s952 + $0xa8] sm:$0xff]
        %v975 = vld [vmem:[%s952 + $0xb0] sm:$0xff]
        %v976 = vld [vmem:[%s952 + $0xb8] sm:$0xff]
        %v977 = vld [vmem:[%s952 + $0xc0] sm:$0xff]
        %v978 = vld [vmem:[%s952 + $0xc8] sm:$0xff]
        %v979 = vld [vmem:[%s952 + $0xd0] sm:$0xff]
        %v980 = vld [vmem:[%s952 + $0xd8] sm:$0xff]
        %v981 = vld [vmem:[%s952 + $0xe0] sm:$0xff]
        %v982 = vld [vmem:[%s952 + $0xe8] sm:$0xff]
        %v983 = vld [vmem:[%s952 + $0xf0] sm:$0xff]
        %v984 = vld [vmem:[%s952 + $0xf8] sm:$0xff]
        %985 = vrot.lane.b32.xlu0 %v587, 16
        %v986 = vpop.permute.xlu0 %985
        %987 = vrot.lane.b32.xlu0 %v590, 16
        %v988 = vpop.permute.xlu0 %987
        %989 = vrot.lane.b32.xlu0 %v593, 16
        %v990 = vpop.permute.xlu0 %989
        %991 = vrot.lane.b32.xlu0 %v596, 16
        %v992 = vpop.permute.xlu0 %991
        %993 = vrot.lane.b32.xlu0 %v599, 16
        %v994 = vpop.permute.xlu0 %993
        %995 = vrot.lane.b32.xlu0 %v602, 16
        %v996 = vpop.permute.xlu0 %995
        %997 = vrot.lane.b32.xlu0 %v605, 16
        %v998 = vpop.permute.xlu0 %997
        %999 = vrot.lane.b32.xlu0 %v608, 16
        %v1000 = vpop.permute.xlu0 %999
        %1001 = vrot.lane.b32.xlu0 %v640, 16
        %v1002 = vpop.permute.xlu0 %1001
        %1003 = vrot.lane.b32.xlu0 %v643, 16
        %v1004 = vpop.permute.xlu0 %1003
        %1005 = vrot.lane.b32.xlu0 %v646, 16
        %v1006 = vpop.permute.xlu0 %1005
        %1007 = vrot.lane.b32.xlu0 %v649, 16
        %v1008 = vpop.permute.xlu0 %1007
        %1009 = vrot.lane.b32.xlu0 %v652, 16
        %v1010 = vpop.permute.xlu0 %1009
        %1011 = vrot.lane.b32.xlu0 %v655, 16
        %v1012 = vpop.permute.xlu0 %1011
        %1013 = vrot.lane.b32.xlu0 %v658, 16
        %v1014 = vpop.permute.xlu0 %1013
        %1015 = vrot.lane.b32.xlu0 %v661, 16
        %v1016 = vpop.permute.xlu0 %1015
        %1017 = vrot.lane.b32.xlu0 %v693, 16
        %v1018 = vpop.permute.xlu0 %1017
        %1019 = vrot.lane.b32.xlu0 %v696, 16
        %v1020 = vpop.permute.xlu0 %1019
        %1021 = vrot.lane.b32.xlu0 %v699, 16
        %v1022 = vpop.permute.xlu0 %1021
        %1023 = vrot.lane.b32.xlu0 %v702, 16
        %v1024 = vpop.permute.xlu0 %1023
        %1025 = vrot.lane.b32.xlu0 %v705, 16
        %v1026 = vpop.permute.xlu0 %1025
        %1027 = vrot.lane.b32.xlu0 %v708, 16
        %v1028 = vpop.permute.xlu0 %1027
        %1029 = vrot.lane.b32.xlu0 %v711, 16
        %v1030 = vpop.permute.xlu0 %1029
        %1031 = vrot.lane.b32.xlu0 %v714, 16
        %v1032 = vpop.permute.xlu0 %1031
        %1033 = vrot.lane.b32.xlu0 %v746, 16
        %v1034 = vpop.permute.xlu0 %1033
        %1035 = vrot.lane.b32.xlu0 %v749, 16
        %v1036 = vpop.permute.xlu0 %1035
        %1037 = vrot.lane.b32.xlu0 %v752, 16
        %v1038 = vpop.permute.xlu0 %1037
        %1039 = vrot.lane.b32.xlu0 %v755, 16
        %v1040 = vpop.permute.xlu0 %1039
        %1041 = vrot.lane.b32.xlu0 %v758, 16
        %v1042 = vpop.permute.xlu0 %1041
        %1043 = vrot.lane.b32.xlu0 %v761, 16
        %v1044 = vpop.permute.xlu0 %1043
        %1045 = vrot.lane.b32.xlu0 %v764, 16
        %v1046 = vpop.permute.xlu0 %1045
        %1047 = vrot.lane.b32.xlu0 %v767, 16
        %v1048 = vpop.permute.xlu0 %1047
        %vm1049 = vcmp.lt.s32.totalorder %v886, 16
        %v1050 = vsel %vm1049, %v1018, %v1034
        %v1051 = vsel %vm1049, %v1020, %v1036
        %v1052 = vsel %vm1049, %v1022, %v1038
        %v1053 = vsel %vm1049, %v1024, %v1040
        %v1054 = vsel %vm1049, %v1026, %v1042
        %v1055 = vsel %vm1049, %v1028, %v1044
        %v1056 = vsel %vm1049, %v1030, %v1046
        %v1057 = vsel %vm1049, %v1032, %v1048
        %v1058 = vsel %vm1049, %v1002, %v1018
        %v1059 = vsel %vm1049, %v1004, %v1020
        %v1060 = vsel %vm1049, %v1006, %v1022
        %v1061 = vsel %vm1049, %v1008, %v1024
        %v1062 = vsel %vm1049, %v1010, %v1026
        %v1063 = vsel %vm1049, %v1012, %v1028
        %v1064 = vsel %vm1049, %v1014, %v1030
        %v1065 = vsel %vm1049, %v1016, %v1032
        %v1066 = vsel %vm1049, %v986, %v1002
        %v1067 = vsel %vm1049, %v988, %v1004
        %v1068 = vsel %vm1049, %v990, %v1006
        %v1069 = vsel %vm1049, %v992, %v1008
        %v1070 = vsel %vm1049, %v994, %v1010
        %v1071 = vsel %vm1049, %v996, %v1012
        %v1072 = vsel %vm1049, %v998, %v1014
        %v1073 = vsel %vm1049, %v1000, %v1016
        %v1074 = vsel %vm1049, %v1034, %v986
        %v1075 = vsel %vm1049, %v1036, %v988
        %v1076 = vsel %vm1049, %v1038, %v990
        %v1077 = vsel %vm1049, %v1040, %v992
        %v1078 = vsel %vm1049, %v1042, %v994
        %v1079 = vsel %vm1049, %v1044, %v996
        %v1080 = vsel %vm1049, %v1046, %v998
        %v1081 = vsel %vm1049, %v1048, %v1000
        %v1082 = vmul.f32 %v1074, %v953
        %v1083 = vmul.f32 %v1066, %v954
        %v1084 = vmul.f32 %v1058, %v955
        %v1085 = vmul.f32 %v1050, %v956
        %v1086 = vmul.f32 %v1075, %v957
        %v1087 = vmul.f32 %v1067, %v958
        %v1088 = vmul.f32 %v1059, %v959
        %v1089 = vmul.f32 %v1051, %v960
        %v1090 = vmul.f32 %v1076, %v961
        %v1091 = vmul.f32 %v1068, %v962
        %v1092 = vmul.f32 %v1060, %v963
        %v1093 = vmul.f32 %v1052, %v964
        %v1094 = vmul.f32 %v1077, %v965
        %v1095 = vmul.f32 %v1069, %v966
        %v1096 = vmul.f32 %v1061, %v967
        %v1097 = vmul.f32 %v1053, %v968
        %v1098 = vmul.f32 %v1078, %v969
        %v1099 = vmul.f32 %v1070, %v970
        %v1100 = vmul.f32 %v1062, %v971
        %v1101 = vmul.f32 %v1054, %v972
        %v1102 = vmul.f32 %v1079, %v973
        %v1103 = vmul.f32 %v1071, %v974
        %v1104 = vmul.f32 %v1063, %v975
        %v1105 = vmul.f32 %v1055, %v976
        %v1106 = vmul.f32 %v1080, %v977
        %v1107 = vmul.f32 %v1072, %v978
        %v1108 = vmul.f32 %v1064, %v979
        %v1109 = vmul.f32 %v1056, %v980
        %v1110 = vmul.f32 %v1081, %v981
        %v1111 = vmul.f32 %v1073, %v982
        %v1112 = vmul.f32 %v1065, %v983
        %v1113 = vmul.f32 %v1057, %v984
        %s1114 = scalar_lea.vmem [#allocation5], 512
        %v1115 = vld [vmem:[%s1114] sm:$0xff]
        %v1116 = vld [vmem:[%s1114 + $0x8] sm:$0xff]
        %v1117 = vld [vmem:[%s1114 + $0x10] sm:$0xff]
        %v1118 = vld [vmem:[%s1114 + $0x18] sm:$0xff]
        %v1119 = vld [vmem:[%s1114 + $0x20] sm:$0xff]
        %v1120 = vld [vmem:[%s1114 + $0x28] sm:$0xff]
        %v1121 = vld [vmem:[%s1114 + $0x30] sm:$0xff]
        %v1122 = vld [vmem:[%s1114 + $0x38] sm:$0xff]
        %v1123 = vld [vmem:[%s1114 + $0x40] sm:$0xff]
        %v1124 = vld [vmem:[%s1114 + $0x48] sm:$0xff]
        %v1125 = vld [vmem:[%s1114 + $0x50] sm:$0xff]
        %v1126 = vld [vmem:[%s1114 + $0x58] sm:$0xff]
        %v1127 = vld [vmem:[%s1114 + $0x60] sm:$0xff]
        %v1128 = vld [vmem:[%s1114 + $0x68] sm:$0xff]
        %v1129 = vld [vmem:[%s1114 + $0x70] sm:$0xff]
        %v1130 = vld [vmem:[%s1114 + $0x78] sm:$0xff]
        %v1131 = vld [vmem:[%s1114 + $0x80] sm:$0xff]
        %v1132 = vld [vmem:[%s1114 + $0x88] sm:$0xff]
        %v1133 = vld [vmem:[%s1114 + $0x90] sm:$0xff]
        %v1134 = vld [vmem:[%s1114 + $0x98] sm:$0xff]
        %v1135 = vld [vmem:[%s1114 + $0xa0] sm:$0xff]
        %v1136 = vld [vmem:[%s1114 + $0xa8] sm:$0xff]
        %v1137 = vld [vmem:[%s1114 + $0xb0] sm:$0xff]
        %v1138 = vld [vmem:[%s1114 + $0xb8] sm:$0xff]
        %v1139 = vld [vmem:[%s1114 + $0xc0] sm:$0xff]
        %v1140 = vld [vmem:[%s1114 + $0xc8] sm:$0xff]
        %v1141 = vld [vmem:[%s1114 + $0xd0] sm:$0xff]
        %v1142 = vld [vmem:[%s1114 + $0xd8] sm:$0xff]
        %v1143 = vld [vmem:[%s1114 + $0xe0] sm:$0xff]
        %v1144 = vld [vmem:[%s1114 + $0xe8] sm:$0xff]
        %v1145 = vld [vmem:[%s1114 + $0xf0] sm:$0xff]
        %v1146 = vld [vmem:[%s1114 + $0xf8] sm:$0xff]
        %1147 = vrot.lane.b32.xlu0 %v587, 15
        %v1148 = vpop.permute.xlu0 %1147
        %1149 = vrot.lane.b32.xlu0 %v590, 15
        %v1150 = vpop.permute.xlu0 %1149
        %1151 = vrot.lane.b32.xlu0 %v593, 15
        %v1152 = vpop.permute.xlu0 %1151
        %1153 = vrot.lane.b32.xlu0 %v596, 15
        %v1154 = vpop.permute.xlu0 %1153
        %1155 = vrot.lane.b32.xlu0 %v599, 15
        %v1156 = vpop.permute.xlu0 %1155
        %1157 = vrot.lane.b32.xlu0 %v602, 15
        %v1158 = vpop.permute.xlu0 %1157
        %1159 = vrot.lane.b32.xlu0 %v605, 15
        %v1160 = vpop.permute.xlu0 %1159
        %1161 = vrot.lane.b32.xlu0 %v608, 15
        %v1162 = vpop.permute.xlu0 %1161
        %1163 = vrot.lane.b32.xlu0 %v640, 15
        %v1164 = vpop.permute.xlu0 %1163
        %1165 = vrot.lane.b32.xlu0 %v643, 15
        %v1166 = vpop.permute.xlu0 %1165
        %1167 = vrot.lane.b32.xlu0 %v646, 15
        %v1168 = vpop.permute.xlu0 %1167
        %1169 = vrot.lane.b32.xlu0 %v649, 15
        %v1170 = vpop.permute.xlu0 %1169
        %1171 = vrot.lane.b32.xlu0 %v652, 15
        %v1172 = vpop.permute.xlu0 %1171
        %1173 = vrot.lane.b32.xlu0 %v655, 15
        %v1174 = vpop.permute.xlu0 %1173
        %1175 = vrot.lane.b32.xlu0 %v658, 15
        %v1176 = vpop.permute.xlu0 %1175
        %1177 = vrot.lane.b32.xlu0 %v661, 15
        %v1178 = vpop.permute.xlu0 %1177
        %1179 = vrot.lane.b32.xlu0 %v693, 15
        %v1180 = vpop.permute.xlu0 %1179
        %1181 = vrot.lane.b32.xlu0 %v696, 15
        %v1182 = vpop.permute.xlu0 %1181
        %1183 = vrot.lane.b32.xlu0 %v699, 15
        %v1184 = vpop.permute.xlu0 %1183
        %1185 = vrot.lane.b32.xlu0 %v702, 15
        %v1186 = vpop.permute.xlu0 %1185
        %1187 = vrot.lane.b32.xlu0 %v705, 15
        %v1188 = vpop.permute.xlu0 %1187
        %1189 = vrot.lane.b32.xlu0 %v708, 15
        %v1190 = vpop.permute.xlu0 %1189
        %1191 = vrot.lane.b32.xlu0 %v711, 15
        %v1192 = vpop.permute.xlu0 %1191
        %1193 = vrot.lane.b32.xlu0 %v714, 15
        %v1194 = vpop.permute.xlu0 %1193
        %1195 = vrot.lane.b32.xlu0 %v746, 15
        %v1196 = vpop.permute.xlu0 %1195
        %1197 = vrot.lane.b32.xlu0 %v749, 15
        %v1198 = vpop.permute.xlu0 %1197
        %1199 = vrot.lane.b32.xlu0 %v752, 15
        %v1200 = vpop.permute.xlu0 %1199
        %1201 = vrot.lane.b32.xlu0 %v755, 15
        %v1202 = vpop.permute.xlu0 %1201
        %1203 = vrot.lane.b32.xlu0 %v758, 15
        %v1204 = vpop.permute.xlu0 %1203
        %1205 = vrot.lane.b32.xlu0 %v761, 15
        %v1206 = vpop.permute.xlu0 %1205
        %1207 = vrot.lane.b32.xlu0 %v764, 15
        %v1208 = vpop.permute.xlu0 %1207
        %1209 = vrot.lane.b32.xlu0 %v767, 15
        %v1210 = vpop.permute.xlu0 %1209
        %vm1211 = vcmp.lt.s32.totalorder %v886, 15
        %v1212 = vsel %vm1211, %v1180, %v1196
        %v1213 = vsel %vm1211, %v1182, %v1198
        %v1214 = vsel %vm1211, %v1184, %v1200
        %v1215 = vsel %vm1211, %v1186, %v1202
        %v1216 = vsel %vm1211, %v1188, %v1204
        %v1217 = vsel %vm1211, %v1190, %v1206
        %v1218 = vsel %vm1211, %v1192, %v1208
        %v1219 = vsel %vm1211, %v1194, %v1210
        %v1220 = vsel %vm1211, %v1164, %v1180
        %v1221 = vsel %vm1211, %v1166, %v1182
        %v1222 = vsel %vm1211, %v1168, %v1184
        %v1223 = vsel %vm1211, %v1170, %v1186
        %v1224 = vsel %vm1211, %v1172, %v1188
        %v1225 = vsel %vm1211, %v1174, %v1190
        %v1226 = vsel %vm1211, %v1176, %v1192
        %v1227 = vsel %vm1211, %v1178, %v1194
        %v1228 = vsel %vm1211, %v1148, %v1164
        %v1229 = vsel %vm1211, %v1150, %v1166
        %v1230 = vsel %vm1211, %v1152, %v1168
        %v1231 = vsel %vm1211, %v1154, %v1170
        %v1232 = vsel %vm1211, %v1156, %v1172
        %v1233 = vsel %vm1211, %v1158, %v1174
        %v1234 = vsel %vm1211, %v1160, %v1176
        %v1235 = vsel %vm1211, %v1162, %v1178
        %v1236 = vsel %vm1211, %v1196, %v1148
        %v1237 = vsel %vm1211, %v1198, %v1150
        %v1238 = vsel %vm1211, %v1200, %v1152
        %v1239 = vsel %vm1211, %v1202, %v1154
        %v1240 = vsel %vm1211, %v1204, %v1156
        %v1241 = vsel %vm1211, %v1206, %v1158
        %v1242 = vsel %vm1211, %v1208, %v1160
        %v1243 = vsel %vm1211, %v1210, %v1162
        %v1244 = vmul.f32 %v1236, %v1115
        %v1245 = vmul.f32 %v1228, %v1116
        %v1246 = vmul.f32 %v1220, %v1117
        %v1247 = vmul.f32 %v1212, %v1118
        %v1248 = vmul.f32 %v1237, %v1119
        %v1249 = vmul.f32 %v1229, %v1120
        %v1250 = vmul.f32 %v1221, %v1121
        %v1251 = vmul.f32 %v1213, %v1122
        %v1252 = vmul.f32 %v1238, %v1123
        %v1253 = vmul.f32 %v1230, %v1124
        %v1254 = vmul.f32 %v1222, %v1125
        %v1255 = vmul.f32 %v1214, %v1126
        %v1256 = vmul.f32 %v1239, %v1127
        %v1257 = vmul.f32 %v1231, %v1128
        %v1258 = vmul.f32 %v1223, %v1129
        %v1259 = vmul.f32 %v1215, %v1130
        %v1260 = vmul.f32 %v1240, %v1131
        %v1261 = vmul.f32 %v1232, %v1132
        %v1262 = vmul.f32 %v1224, %v1133
        %v1263 = vmul.f32 %v1216, %v1134
        %v1264 = vmul.f32 %v1241, %v1135
        %v1265 = vmul.f32 %v1233, %v1136
        %v1266 = vmul.f32 %v1225, %v1137
        %v1267 = vmul.f32 %v1217, %v1138
        %v1268 = vmul.f32 %v1242, %v1139
        %v1269 = vmul.f32 %v1234, %v1140
        %v1270 = vmul.f32 %v1226, %v1141
        %v1271 = vmul.f32 %v1218, %v1142
        %v1272 = vmul.f32 %v1243, %v1143
        %v1273 = vmul.f32 %v1235, %v1144
        %v1274 = vmul.f32 %v1227, %v1145
        %v1275 = vmul.f32 %v1219, %v1146
        %v1276 = vadd.f32 %v920, %v1244
        %v1277 = vadd.f32 %v921, %v1245
        %v1278 = vadd.f32 %v922, %v1246
        %v1279 = vadd.f32 %v923, %v1247
        %v1280 = vadd.f32 %v924, %v1248
        %v1281 = vadd.f32 %v925, %v1249
        %v1282 = vadd.f32 %v926, %v1250
        %v1283 = vadd.f32 %v927, %v1251
        %v1284 = vadd.f32 %v928, %v1252
        %v1285 = vadd.f32 %v929, %v1253
        %v1286 = vadd.f32 %v930, %v1254
        %v1287 = vadd.f32 %v931, %v1255
        %v1288 = vadd.f32 %v932, %v1256
        %v1289 = vadd.f32 %v933, %v1257
        %v1290 = vadd.f32 %v934, %v1258
        %v1291 = vadd.f32 %v935, %v1259
        %v1292 = vadd.f32 %v936, %v1260
        %v1293 = vadd.f32 %v937, %v1261
        %v1294 = vadd.f32 %v938, %v1262
        %v1295 = vadd.f32 %v939, %v1263
        %v1296 = vadd.f32 %v940, %v1264
        %v1297 = vadd.f32 %v941, %v1265
        %v1298 = vadd.f32 %v942, %v1266
        %v1299 = vadd.f32 %v943, %v1267
        %v1300 = vadd.f32 %v944, %v1268
        %v1301 = vadd.f32 %v945, %v1269
        %v1302 = vadd.f32 %v946, %v1270
        %v1303 = vadd.f32 %v947, %v1271
        %v1304 = vadd.f32 %v948, %v1272
        %v1305 = vadd.f32 %v949, %v1273
        %v1306 = vadd.f32 %v950, %v1274
        %v1307 = vadd.f32 %v951, %v1275
        %s1308 = scalar_lea.vmem [#allocation5], 768
        %v1309 = vld [vmem:[%s1308] sm:$0xff]
        %v1310 = vld [vmem:[%s1308 + $0x8] sm:$0xff]
        %v1311 = vld [vmem:[%s1308 + $0x10] sm:$0xff]
        %v1312 = vld [vmem:[%s1308 + $0x18] sm:$0xff]
        %v1313 = vld [vmem:[%s1308 + $0x20] sm:$0xff]
        %v1314 = vld [vmem:[%s1308 + $0x28] sm:$0xff]
        %v1315 = vld [vmem:[%s1308 + $0x30] sm:$0xff]
        %v1316 = vld [vmem:[%s1308 + $0x38] sm:$0xff]
        %v1317 = vld [vmem:[%s1308 + $0x40] sm:$0xff]
        %v1318 = vld [vmem:[%s1308 + $0x48] sm:$0xff]
        %v1319 = vld [vmem:[%s1308 + $0x50] sm:$0xff]
        %v1320 = vld [vmem:[%s1308 + $0x58] sm:$0xff]
        %v1321 = vld [vmem:[%s1308 + $0x60] sm:$0xff]
        %v1322 = vld [vmem:[%s1308 + $0x68] sm:$0xff]
        %v1323 = vld [vmem:[%s1308 + $0x70] sm:$0xff]
        %v1324 = vld [vmem:[%s1308 + $0x78] sm:$0xff]
        %v1325 = vld [vmem:[%s1308 + $0x80] sm:$0xff]
        %v1326 = vld [vmem:[%s1308 + $0x88] sm:$0xff]
        %v1327 = vld [vmem:[%s1308 + $0x90] sm:$0xff]
        %v1328 = vld [vmem:[%s1308 + $0x98] sm:$0xff]
        %v1329 = vld [vmem:[%s1308 + $0xa0] sm:$0xff]
        %v1330 = vld [vmem:[%s1308 + $0xa8] sm:$0xff]
        %v1331 = vld [vmem:[%s1308 + $0xb0] sm:$0xff]
        %v1332 = vld [vmem:[%s1308 + $0xb8] sm:$0xff]
        %v1333 = vld [vmem:[%s1308 + $0xc0] sm:$0xff]
        %v1334 = vld [vmem:[%s1308 + $0xc8] sm:$0xff]
        %v1335 = vld [vmem:[%s1308 + $0xd0] sm:$0xff]
        %v1336 = vld [vmem:[%s1308 + $0xd8] sm:$0xff]
        %v1337 = vld [vmem:[%s1308 + $0xe0] sm:$0xff]
        %v1338 = vld [vmem:[%s1308 + $0xe8] sm:$0xff]
        %v1339 = vld [vmem:[%s1308 + $0xf0] sm:$0xff]
        %v1340 = vld [vmem:[%s1308 + $0xf8] sm:$0xff]
        %1341 = vrot.lane.b32.xlu0 %v587, 1
        %v1342 = vpop.permute.xlu0 %1341
        %1343 = vrot.lane.b32.xlu0 %v590, 1
        %v1344 = vpop.permute.xlu0 %1343
        %1345 = vrot.lane.b32.xlu0 %v593, 1
        %v1346 = vpop.permute.xlu0 %1345
        %1347 = vrot.lane.b32.xlu0 %v596, 1
        %v1348 = vpop.permute.xlu0 %1347
        %1349 = vrot.lane.b32.xlu0 %v599, 1
        %v1350 = vpop.permute.xlu0 %1349
        %1351 = vrot.lane.b32.xlu0 %v602, 1
        %v1352 = vpop.permute.xlu0 %1351
        %1353 = vrot.lane.b32.xlu0 %v605, 1
        %v1354 = vpop.permute.xlu0 %1353
        %1355 = vrot.lane.b32.xlu0 %v608, 1
        %v1356 = vpop.permute.xlu0 %1355
        %1357 = vrot.lane.b32.xlu0 %v640, 1
        %v1358 = vpop.permute.xlu0 %1357
        %1359 = vrot.lane.b32.xlu0 %v643, 1
        %v1360 = vpop.permute.xlu0 %1359
        %1361 = vrot.lane.b32.xlu0 %v646, 1
        %v1362 = vpop.permute.xlu0 %1361
        %1363 = vrot.lane.b32.xlu0 %v649, 1
        %v1364 = vpop.permute.xlu0 %1363
        %1365 = vrot.lane.b32.xlu0 %v652, 1
        %v1366 = vpop.permute.xlu0 %1365
        %1367 = vrot.lane.b32.xlu0 %v655, 1
        %v1368 = vpop.permute.xlu0 %1367
        %1369 = vrot.lane.b32.xlu0 %v658, 1
        %v1370 = vpop.permute.xlu0 %1369
        %1371 = vrot.lane.b32.xlu0 %v661, 1
        %v1372 = vpop.permute.xlu0 %1371
        %1373 = vrot.lane.b32.xlu0 %v693, 1
        %v1374 = vpop.permute.xlu0 %1373
        %1375 = vrot.lane.b32.xlu0 %v696, 1
        %v1376 = vpop.permute.xlu0 %1375
        %1377 = vrot.lane.b32.xlu0 %v699, 1
        %v1378 = vpop.permute.xlu0 %1377
        %1379 = vrot.lane.b32.xlu0 %v702, 1
        %v1380 = vpop.permute.xlu0 %1379
        %1381 = vrot.lane.b32.xlu0 %v705, 1
        %v1382 = vpop.permute.xlu0 %1381
        %1383 = vrot.lane.b32.xlu0 %v708, 1
        %v1384 = vpop.permute.xlu0 %1383
        %1385 = vrot.lane.b32.xlu0 %v711, 1
        %v1386 = vpop.permute.xlu0 %1385
        %1387 = vrot.lane.b32.xlu0 %v714, 1
        %v1388 = vpop.permute.xlu0 %1387
        %1389 = vrot.lane.b32.xlu0 %v746, 1
        %v1390 = vpop.permute.xlu0 %1389
        %1391 = vrot.lane.b32.xlu0 %v749, 1
        %v1392 = vpop.permute.xlu0 %1391
        %1393 = vrot.lane.b32.xlu0 %v752, 1
        %v1394 = vpop.permute.xlu0 %1393
        %1395 = vrot.lane.b32.xlu0 %v755, 1
        %v1396 = vpop.permute.xlu0 %1395
        %1397 = vrot.lane.b32.xlu0 %v758, 1
        %v1398 = vpop.permute.xlu0 %1397
        %1399 = vrot.lane.b32.xlu0 %v761, 1
        %v1400 = vpop.permute.xlu0 %1399
        %1401 = vrot.lane.b32.xlu0 %v764, 1
        %v1402 = vpop.permute.xlu0 %1401
        %1403 = vrot.lane.b32.xlu0 %v767, 1
        %v1404 = vpop.permute.xlu0 %1403
        %vm1405 = vcmp.lt.s32.totalorder %v886, 1
        %v1406 = vsel %vm1405, %v1374, %v1390
        %v1407 = vsel %vm1405, %v1376, %v1392
        %v1408 = vsel %vm1405, %v1378, %v1394
        %v1409 = vsel %vm1405, %v1380, %v1396
        %v1410 = vsel %vm1405, %v1382, %v1398
        %v1411 = vsel %vm1405, %v1384, %v1400
        %v1412 = vsel %vm1405, %v1386, %v1402
        %v1413 = vsel %vm1405, %v1388, %v1404
        %v1414 = vsel %vm1405, %v1358, %v1374
        %v1415 = vsel %vm1405, %v1360, %v1376
        %v1416 = vsel %vm1405, %v1362, %v1378
        %v1417 = vsel %vm1405, %v1364, %v1380
        %v1418 = vsel %vm1405, %v1366, %v1382
        %v1419 = vsel %vm1405, %v1368, %v1384
        %v1420 = vsel %vm1405, %v1370, %v1386
        %v1421 = vsel %vm1405, %v1372, %v1388
        %v1422 = vsel %vm1405, %v1342, %v1358
        %v1423 = vsel %vm1405, %v1344, %v1360
        %v1424 = vsel %vm1405, %v1346, %v1362
        %v1425 = vsel %vm1405, %v1348, %v1364
        %v1426 = vsel %vm1405, %v1350, %v1366
        %v1427 = vsel %vm1405, %v1352, %v1368
        %v1428 = vsel %vm1405, %v1354, %v1370
        %v1429 = vsel %vm1405, %v1356, %v1372
        %v1430 = vsel %vm1405, %v1390, %v1342
        %v1431 = vsel %vm1405, %v1392, %v1344
        %v1432 = vsel %vm1405, %v1394, %v1346
        %v1433 = vsel %vm1405, %v1396, %v1348
        %v1434 = vsel %vm1405, %v1398, %v1350
        %v1435 = vsel %vm1405, %v1400, %v1352
        %v1436 = vsel %vm1405, %v1402, %v1354
        %v1437 = vsel %vm1405, %v1404, %v1356
        %v1438 = vmul.f32 %v1430, %v1309
        %v1439 = vmul.f32 %v1422, %v1310
        %v1440 = vmul.f32 %v1414, %v1311
        %v1441 = vmul.f32 %v1406, %v1312
        %v1442 = vmul.f32 %v1431, %v1313
        %v1443 = vmul.f32 %v1423, %v1314
        %v1444 = vmul.f32 %v1415, %v1315
        %v1445 = vmul.f32 %v1407, %v1316
        %v1446 = vmul.f32 %v1432, %v1317
        %v1447 = vmul.f32 %v1424, %v1318
        %v1448 = vmul.f32 %v1416, %v1319
        %v1449 = vmul.f32 %v1408, %v1320
        %v1450 = vmul.f32 %v1433, %v1321
        %v1451 = vmul.f32 %v1425, %v1322
        %v1452 = vmul.f32 %v1417, %v1323
        %v1453 = vmul.f32 %v1409, %v1324
        %v1454 = vmul.f32 %v1434, %v1325
        %v1455 = vmul.f32 %v1426, %v1326
        %v1456 = vmul.f32 %v1418, %v1327
        %v1457 = vmul.f32 %v1410, %v1328
        %v1458 = vmul.f32 %v1435, %v1329
        %v1459 = vmul.f32 %v1427, %v1330
        %v1460 = vmul.f32 %v1419, %v1331
        %v1461 = vmul.f32 %v1411, %v1332
        %v1462 = vmul.f32 %v1436, %v1333
        %v1463 = vmul.f32 %v1428, %v1334
        %v1464 = vmul.f32 %v1420, %v1335
        %v1465 = vmul.f32 %v1412, %v1336
        %v1466 = vmul.f32 %v1437, %v1337
        %v1467 = vmul.f32 %v1429, %v1338
        %v1468 = vmul.f32 %v1421, %v1339
        %v1469 = vmul.f32 %v1413, %v1340
        %v1470 = vadd.f32 %v1082, %v1438
        %v1471 = vadd.f32 %v1083, %v1439
        %v1472 = vadd.f32 %v1084, %v1440
        %v1473 = vadd.f32 %v1085, %v1441
        %v1474 = vadd.f32 %v1086, %v1442
        %v1475 = vadd.f32 %v1087, %v1443
        %v1476 = vadd.f32 %v1088, %v1444
        %v1477 = vadd.f32 %v1089, %v1445
        %v1478 = vadd.f32 %v1090, %v1446
        %v1479 = vadd.f32 %v1091, %v1447
        %v1480 = vadd.f32 %v1092, %v1448
        %v1481 = vadd.f32 %v1093, %v1449
        %v1482 = vadd.f32 %v1094, %v1450
        %v1483 = vadd.f32 %v1095, %v1451
        %v1484 = vadd.f32 %v1096, %v1452
        %v1485 = vadd.f32 %v1097, %v1453
        %v1486 = vadd.f32 %v1098, %v1454
        %v1487 = vadd.f32 %v1099, %v1455
        %v1488 = vadd.f32 %v1100, %v1456
        %v1489 = vadd.f32 %v1101, %v1457
        %v1490 = vadd.f32 %v1102, %v1458
        %v1491 = vadd.f32 %v1103, %v1459
        %v1492 = vadd.f32 %v1104, %v1460
        %v1493 = vadd.f32 %v1105, %v1461
        %v1494 = vadd.f32 %v1106, %v1462
        %v1495 = vadd.f32 %v1107, %v1463
        %v1496 = vadd.f32 %v1108, %v1464
        %v1497 = vadd.f32 %v1109, %v1465
        %v1498 = vadd.f32 %v1110, %v1466
        %v1499 = vadd.f32 %v1111, %v1467
        %v1500 = vadd.f32 %v1112, %v1468
        %v1501 = vadd.f32 %v1113, %v1469
        %s1502 = scalar_lea.vmem [#allocation5], 1024
        %v1503 = vld [vmem:[%s1502] sm:$0xff]
        %v1504 = vld [vmem:[%s1502 + $0x8] sm:$0xff]
        %v1505 = vld [vmem:[%s1502 + $0x10] sm:$0xff]
        %v1506 = vld [vmem:[%s1502 + $0x18] sm:$0xff]
        %v1507 = vld [vmem:[%s1502 + $0x20] sm:$0xff]
        %v1508 = vld [vmem:[%s1502 + $0x28] sm:$0xff]
        %v1509 = vld [vmem:[%s1502 + $0x30] sm:$0xff]
        %v1510 = vld [vmem:[%s1502 + $0x38] sm:$0xff]
        %v1511 = vld [vmem:[%s1502 + $0x40] sm:$0xff]
        %v1512 = vld [vmem:[%s1502 + $0x48] sm:$0xff]
        %v1513 = vld [vmem:[%s1502 + $0x50] sm:$0xff]
        %v1514 = vld [vmem:[%s1502 + $0x58] sm:$0xff]
        %v1515 = vld [vmem:[%s1502 + $0x60] sm:$0xff]
        %v1516 = vld [vmem:[%s1502 + $0x68] sm:$0xff]
        %v1517 = vld [vmem:[%s1502 + $0x70] sm:$0xff]
        %v1518 = vld [vmem:[%s1502 + $0x78] sm:$0xff]
        %v1519 = vld [vmem:[%s1502 + $0x80] sm:$0xff]
        %v1520 = vld [vmem:[%s1502 + $0x88] sm:$0xff]
        %v1521 = vld [vmem:[%s1502 + $0x90] sm:$0xff]
        %v1522 = vld [vmem:[%s1502 + $0x98] sm:$0xff]
        %v1523 = vld [vmem:[%s1502 + $0xa0] sm:$0xff]
        %v1524 = vld [vmem:[%s1502 + $0xa8] sm:$0xff]
        %v1525 = vld [vmem:[%s1502 + $0xb0] sm:$0xff]
        %v1526 = vld [vmem:[%s1502 + $0xb8] sm:$0xff]
        %v1527 = vld [vmem:[%s1502 + $0xc0] sm:$0xff]
        %v1528 = vld [vmem:[%s1502 + $0xc8] sm:$0xff]
        %v1529 = vld [vmem:[%s1502 + $0xd0] sm:$0xff]
        %v1530 = vld [vmem:[%s1502 + $0xd8] sm:$0xff]
        %v1531 = vld [vmem:[%s1502 + $0xe0] sm:$0xff]
        %v1532 = vld [vmem:[%s1502 + $0xe8] sm:$0xff]
        %v1533 = vld [vmem:[%s1502 + $0xf0] sm:$0xff]
        %v1534 = vld [vmem:[%s1502 + $0xf8] sm:$0xff]
        %v1535 = vmul.f32 %v587, %v1503
        %v1536 = vmul.f32 %v640, %v1504
        %v1537 = vmul.f32 %v693, %v1505
        %v1538 = vmul.f32 %v746, %v1506
        %v1539 = vmul.f32 %v590, %v1507
        %v1540 = vmul.f32 %v643, %v1508
        %v1541 = vmul.f32 %v696, %v1509
        %v1542 = vmul.f32 %v749, %v1510
        %v1543 = vmul.f32 %v593, %v1511
        %v1544 = vmul.f32 %v646, %v1512
        %v1545 = vmul.f32 %v699, %v1513
        %v1546 = vmul.f32 %v752, %v1514
        %v1547 = vmul.f32 %v596, %v1515
        %v1548 = vmul.f32 %v649, %v1516
        %v1549 = vmul.f32 %v702, %v1517
        %v1550 = vmul.f32 %v755, %v1518
        %v1551 = vmul.f32 %v599, %v1519
        %v1552 = vmul.f32 %v652, %v1520
        %v1553 = vmul.f32 %v705, %v1521
        %v1554 = vmul.f32 %v758, %v1522
        %v1555 = vmul.f32 %v602, %v1523
        %v1556 = vmul.f32 %v655, %v1524
        %v1557 = vmul.f32 %v708, %v1525
        %v1558 = vmul.f32 %v761, %v1526
        %v1559 = vmul.f32 %v605, %v1527
        %v1560 = vmul.f32 %v658, %v1528
        %v1561 = vmul.f32 %v711, %v1529
        %v1562 = vmul.f32 %v764, %v1530
        %v1563 = vmul.f32 %v608, %v1531
        %v1564 = vmul.f32 %v661, %v1532
        %v1565 = vmul.f32 %v714, %v1533
        %v1566 = vmul.f32 %v767, %v1534
        %v1567 = vadd.f32 %v1276, %v1535
        %v1568 = vadd.f32 %v1277, %v1536
        %v1569 = vadd.f32 %v1278, %v1537
        %v1570 = vadd.f32 %v1279, %v1538
        %v1571 = vadd.f32 %v1280, %v1539
        %v1572 = vadd.f32 %v1281, %v1540
        %v1573 = vadd.f32 %v1282, %v1541
        %v1574 = vadd.f32 %v1283, %v1542
        %v1575 = vadd.f32 %v1284, %v1543
        %v1576 = vadd.f32 %v1285, %v1544
        %v1577 = vadd.f32 %v1286, %v1545
        %v1578 = vadd.f32 %v1287, %v1546
        %v1579 = vadd.f32 %v1288, %v1547
        %v1580 = vadd.f32 %v1289, %v1548
        %v1581 = vadd.f32 %v1290, %v1549
        %v1582 = vadd.f32 %v1291, %v1550
        %v1583 = vadd.f32 %v1292, %v1551
        %v1584 = vadd.f32 %v1293, %v1552
        %v1585 = vadd.f32 %v1294, %v1553
        %v1586 = vadd.f32 %v1295, %v1554
        %v1587 = vadd.f32 %v1296, %v1555
        %v1588 = vadd.f32 %v1297, %v1556
        %v1589 = vadd.f32 %v1298, %v1557
        %v1590 = vadd.f32 %v1299, %v1558
        %v1591 = vadd.f32 %v1300, %v1559
        %v1592 = vadd.f32 %v1301, %v1560
        %v1593 = vadd.f32 %v1302, %v1561
        %v1594 = vadd.f32 %v1303, %v1562
        %v1595 = vadd.f32 %v1304, %v1563
        %v1596 = vadd.f32 %v1305, %v1564
        %v1597 = vadd.f32 %v1306, %v1565
        %v1598 = vadd.f32 %v1307, %v1566
        %s1599 = scalar_lea.vmem [#allocation5], 1280
        %v1600 = vld [vmem:[%s1599] sm:$0xff]
        %v1601 = vld [vmem:[%s1599 + $0x8] sm:$0xff]
        %v1602 = vld [vmem:[%s1599 + $0x10] sm:$0xff]
        %v1603 = vld [vmem:[%s1599 + $0x18] sm:$0xff]
        %v1604 = vld [vmem:[%s1599 + $0x20] sm:$0xff]
        %v1605 = vld [vmem:[%s1599 + $0x28] sm:$0xff]
        %v1606 = vld [vmem:[%s1599 + $0x30] sm:$0xff]
        %v1607 = vld [vmem:[%s1599 + $0x38] sm:$0xff]
        %v1608 = vld [vmem:[%s1599 + $0x40] sm:$0xff]
        %v1609 = vld [vmem:[%s1599 + $0x48] sm:$0xff]
        %v1610 = vld [vmem:[%s1599 + $0x50] sm:$0xff]
        %v1611 = vld [vmem:[%s1599 + $0x58] sm:$0xff]
        %v1612 = vld [vmem:[%s1599 + $0x60] sm:$0xff]
        %v1613 = vld [vmem:[%s1599 + $0x68] sm:$0xff]
        %v1614 = vld [vmem:[%s1599 + $0x70] sm:$0xff]
        %v1615 = vld [vmem:[%s1599 + $0x78] sm:$0xff]
        %v1616 = vld [vmem:[%s1599 + $0x80] sm:$0xff]
        %v1617 = vld [vmem:[%s1599 + $0x88] sm:$0xff]
        %v1618 = vld [vmem:[%s1599 + $0x90] sm:$0xff]
        %v1619 = vld [vmem:[%s1599 + $0x98] sm:$0xff]
        %v1620 = vld [vmem:[%s1599 + $0xa0] sm:$0xff]
        %v1621 = vld [vmem:[%s1599 + $0xa8] sm:$0xff]
        %v1622 = vld [vmem:[%s1599 + $0xb0] sm:$0xff]
        %v1623 = vld [vmem:[%s1599 + $0xb8] sm:$0xff]
        %v1624 = vld [vmem:[%s1599 + $0xc0] sm:$0xff]
        %v1625 = vld [vmem:[%s1599 + $0xc8] sm:$0xff]
        %v1626 = vld [vmem:[%s1599 + $0xd0] sm:$0xff]
        %v1627 = vld [vmem:[%s1599 + $0xd8] sm:$0xff]
        %v1628 = vld [vmem:[%s1599 + $0xe0] sm:$0xff]
        %v1629 = vld [vmem:[%s1599 + $0xe8] sm:$0xff]
        %v1630 = vld [vmem:[%s1599 + $0xf0] sm:$0xff]
        %v1631 = vld [vmem:[%s1599 + $0xf8] sm:$0xff]
        %1632 = vrot.lane.b32.xlu0 %v587, 127
        %v1633 = vpop.permute.xlu0 %1632
        %1634 = vrot.lane.b32.xlu0 %v590, 127
        %v1635 = vpop.permute.xlu0 %1634
        %1636 = vrot.lane.b32.xlu0 %v593, 127
        %v1637 = vpop.permute.xlu0 %1636
        %1638 = vrot.lane.b32.xlu0 %v596, 127
        %v1639 = vpop.permute.xlu0 %1638
        %1640 = vrot.lane.b32.xlu0 %v599, 127
        %v1641 = vpop.permute.xlu0 %1640
        %1642 = vrot.lane.b32.xlu0 %v602, 127
        %v1643 = vpop.permute.xlu0 %1642
        %1644 = vrot.lane.b32.xlu0 %v605, 127
        %v1645 = vpop.permute.xlu0 %1644
        %1646 = vrot.lane.b32.xlu0 %v608, 127
        %v1647 = vpop.permute.xlu0 %1646
        %1648 = vrot.lane.b32.xlu0 %v640, 127
        %v1649 = vpop.permute.xlu0 %1648
        %1650 = vrot.lane.b32.xlu0 %v643, 127
        %v1651 = vpop.permute.xlu0 %1650
        %1652 = vrot.lane.b32.xlu0 %v646, 127
        %v1653 = vpop.permute.xlu0 %1652
        %1654 = vrot.lane.b32.xlu0 %v649, 127
        %v1655 = vpop.permute.xlu0 %1654
        %1656 = vrot.lane.b32.xlu0 %v652, 127
        %v1657 = vpop.permute.xlu0 %1656
        %1658 = vrot.lane.b32.xlu0 %v655, 127
        %v1659 = vpop.permute.xlu0 %1658
        %1660 = vrot.lane.b32.xlu0 %v658, 127
        %v1661 = vpop.permute.xlu0 %1660
        %1662 = vrot.lane.b32.xlu0 %v661, 127
        %v1663 = vpop.permute.xlu0 %1662
        %1664 = vrot.lane.b32.xlu0 %v693, 127
        %v1665 = vpop.permute.xlu0 %1664
        %1666 = vrot.lane.b32.xlu0 %v696, 127
        %v1667 = vpop.permute.xlu0 %1666
        %1668 = vrot.lane.b32.xlu0 %v699, 127
        %v1669 = vpop.permute.xlu0 %1668
        %1670 = vrot.lane.b32.xlu0 %v702, 127
        %v1671 = vpop.permute.xlu0 %1670
        %1672 = vrot.lane.b32.xlu0 %v705, 127
        %v1673 = vpop.permute.xlu0 %1672
        %1674 = vrot.lane.b32.xlu0 %v708, 127
        %v1675 = vpop.permute.xlu0 %1674
        %1676 = vrot.lane.b32.xlu0 %v711, 127
        %v1677 = vpop.permute.xlu0 %1676
        %1678 = vrot.lane.b32.xlu0 %v714, 127
        %v1679 = vpop.permute.xlu0 %1678
        %1680 = vrot.lane.b32.xlu0 %v746, 127
        %v1681 = vpop.permute.xlu0 %1680
        %1682 = vrot.lane.b32.xlu0 %v749, 127
        %v1683 = vpop.permute.xlu0 %1682
        %1684 = vrot.lane.b32.xlu0 %v752, 127
        %v1685 = vpop.permute.xlu0 %1684
        %1686 = vrot.lane.b32.xlu0 %v755, 127
        %v1687 = vpop.permute.xlu0 %1686
        %1688 = vrot.lane.b32.xlu0 %v758, 127
        %v1689 = vpop.permute.xlu0 %1688
        %1690 = vrot.lane.b32.xlu0 %v761, 127
        %v1691 = vpop.permute.xlu0 %1690
        %1692 = vrot.lane.b32.xlu0 %v764, 127
        %v1693 = vpop.permute.xlu0 %1692
        %1694 = vrot.lane.b32.xlu0 %v767, 127
        %v1695 = vpop.permute.xlu0 %1694
        %vm1696 = vcmp.lt.s32.totalorder %v886, 127
        %v1697 = vsel %vm1696, %v1665, %v1681
        %v1698 = vsel %vm1696, %v1667, %v1683
        %v1699 = vsel %vm1696, %v1669, %v1685
        %v1700 = vsel %vm1696, %v1671, %v1687
        %v1701 = vsel %vm1696, %v1673, %v1689
        %v1702 = vsel %vm1696, %v1675, %v1691
        %v1703 = vsel %vm1696, %v1677, %v1693
        %v1704 = vsel %vm1696, %v1679, %v1695
        %v1705 = vsel %vm1696, %v1649, %v1665
        %v1706 = vsel %vm1696, %v1651, %v1667
        %v1707 = vsel %vm1696, %v1653, %v1669
        %v1708 = vsel %vm1696, %v1655, %v1671
        %v1709 = vsel %vm1696, %v1657, %v1673
        %v1710 = vsel %vm1696, %v1659, %v1675
        %v1711 = vsel %vm1696, %v1661, %v1677
        %v1712 = vsel %vm1696, %v1663, %v1679
        %v1713 = vsel %vm1696, %v1633, %v1649
        %v1714 = vsel %vm1696, %v1635, %v1651
        %v1715 = vsel %vm1696, %v1637, %v1653
        %v1716 = vsel %vm1696, %v1639, %v1655
        %v1717 = vsel %vm1696, %v1641, %v1657
        %v1718 = vsel %vm1696, %v1643, %v1659
        %v1719 = vsel %vm1696, %v1645, %v1661
        %v1720 = vsel %vm1696, %v1647, %v1663
        %v1721 = vsel %vm1696, %v1681, %v1633
        %v1722 = vsel %vm1696, %v1683, %v1635
        %v1723 = vsel %vm1696, %v1685, %v1637
        %v1724 = vsel %vm1696, %v1687, %v1639
        %v1725 = vsel %vm1696, %v1689, %v1641
        %v1726 = vsel %vm1696, %v1691, %v1643
        %v1727 = vsel %vm1696, %v1693, %v1645
        %v1728 = vsel %vm1696, %v1695, %v1647
        %v1729 = vmul.f32 %v1713, %v1600
        %v1730 = vmul.f32 %v1705, %v1601
        %v1731 = vmul.f32 %v1697, %v1602
        %v1732 = vmul.f32 %v1721, %v1603
        %v1733 = vmul.f32 %v1714, %v1604
        %v1734 = vmul.f32 %v1706, %v1605
        %v1735 = vmul.f32 %v1698, %v1606
        %v1736 = vmul.f32 %v1722, %v1607
        %v1737 = vmul.f32 %v1715, %v1608
        %v1738 = vmul.f32 %v1707, %v1609
        %v1739 = vmul.f32 %v1699, %v1610
        %v1740 = vmul.f32 %v1723, %v1611
        %v1741 = vmul.f32 %v1716, %v1612
        %v1742 = vmul.f32 %v1708, %v1613
        %v1743 = vmul.f32 %v1700, %v1614
        %v1744 = vmul.f32 %v1724, %v1615
        %v1745 = vmul.f32 %v1717, %v1616
        %v1746 = vmul.f32 %v1709, %v1617
        %v1747 = vmul.f32 %v1701, %v1618
        %v1748 = vmul.f32 %v1725, %v1619
        %v1749 = vmul.f32 %v1718, %v1620
        %v1750 = vmul.f32 %v1710, %v1621
        %v1751 = vmul.f32 %v1702, %v1622
        %v1752 = vmul.f32 %v1726, %v1623
        %v1753 = vmul.f32 %v1719, %v1624
        %v1754 = vmul.f32 %v1711, %v1625
        %v1755 = vmul.f32 %v1703, %v1626
        %v1756 = vmul.f32 %v1727, %v1627
        %v1757 = vmul.f32 %v1720, %v1628
        %v1758 = vmul.f32 %v1712, %v1629
        %v1759 = vmul.f32 %v1704, %v1630
        %v1760 = vmul.f32 %v1728, %v1631
        %v1761 = vadd.f32 %v1470, %v1729
        %v1762 = vadd.f32 %v1471, %v1730
        %v1763 = vadd.f32 %v1472, %v1731
        %v1764 = vadd.f32 %v1473, %v1732
        %v1765 = vadd.f32 %v1474, %v1733
        %v1766 = vadd.f32 %v1475, %v1734
        %v1767 = vadd.f32 %v1476, %v1735
        %v1768 = vadd.f32 %v1477, %v1736
        %v1769 = vadd.f32 %v1478, %v1737
        %v1770 = vadd.f32 %v1479, %v1738
        %v1771 = vadd.f32 %v1480, %v1739
        %v1772 = vadd.f32 %v1481, %v1740
        %v1773 = vadd.f32 %v1482, %v1741
        %v1774 = vadd.f32 %v1483, %v1742
        %v1775 = vadd.f32 %v1484, %v1743
        %v1776 = vadd.f32 %v1485, %v1744
        %v1777 = vadd.f32 %v1486, %v1745
        %v1778 = vadd.f32 %v1487, %v1746
        %v1779 = vadd.f32 %v1488, %v1747
        %v1780 = vadd.f32 %v1489, %v1748
        %v1781 = vadd.f32 %v1490, %v1749
        %v1782 = vadd.f32 %v1491, %v1750
        %v1783 = vadd.f32 %v1492, %v1751
        %v1784 = vadd.f32 %v1493, %v1752
        %v1785 = vadd.f32 %v1494, %v1753
        %v1786 = vadd.f32 %v1495, %v1754
        %v1787 = vadd.f32 %v1496, %v1755
        %v1788 = vadd.f32 %v1497, %v1756
        %v1789 = vadd.f32 %v1498, %v1757
        %v1790 = vadd.f32 %v1499, %v1758
        %v1791 = vadd.f32 %v1500, %v1759
        %v1792 = vadd.f32 %v1501, %v1760
        %s1793 = scalar_lea.vmem [#allocation5], 1536
        %v1794 = vld [vmem:[%s1793] sm:$0xff]
        %v1795 = vld [vmem:[%s1793 + $0x8] sm:$0xff]
        %v1796 = vld [vmem:[%s1793 + $0x10] sm:$0xff]
        %v1797 = vld [vmem:[%s1793 + $0x18] sm:$0xff]
        %v1798 = vld [vmem:[%s1793 + $0x20] sm:$0xff]
        %v1799 = vld [vmem:[%s1793 + $0x28] sm:$0xff]
        %v1800 = vld [vmem:[%s1793 + $0x30] sm:$0xff]
        %v1801 = vld [vmem:[%s1793 + $0x38] sm:$0xff]
        %v1802 = vld [vmem:[%s1793 + $0x40] sm:$0xff]
        %v1803 = vld [vmem:[%s1793 + $0x48] sm:$0xff]
        %v1804 = vld [vmem:[%s1793 + $0x50] sm:$0xff]
        %v1805 = vld [vmem:[%s1793 + $0x58] sm:$0xff]
        %v1806 = vld [vmem:[%s1793 + $0x60] sm:$0xff]
        %v1807 = vld [vmem:[%s1793 + $0x68] sm:$0xff]
        %v1808 = vld [vmem:[%s1793 + $0x70] sm:$0xff]
        %v1809 = vld [vmem:[%s1793 + $0x78] sm:$0xff]
        %v1810 = vld [vmem:[%s1793 + $0x80] sm:$0xff]
        %v1811 = vld [vmem:[%s1793 + $0x88] sm:$0xff]
        %v1812 = vld [vmem:[%s1793 + $0x90] sm:$0xff]
        %v1813 = vld [vmem:[%s1793 + $0x98] sm:$0xff]
        %v1814 = vld [vmem:[%s1793 + $0xa0] sm:$0xff]
        %v1815 = vld [vmem:[%s1793 + $0xa8] sm:$0xff]
        %v1816 = vld [vmem:[%s1793 + $0xb0] sm:$0xff]
        %v1817 = vld [vmem:[%s1793 + $0xb8] sm:$0xff]
        %v1818 = vld [vmem:[%s1793 + $0xc0] sm:$0xff]
        %v1819 = vld [vmem:[%s1793 + $0xc8] sm:$0xff]
        %v1820 = vld [vmem:[%s1793 + $0xd0] sm:$0xff]
        %v1821 = vld [vmem:[%s1793 + $0xd8] sm:$0xff]
        %v1822 = vld [vmem:[%s1793 + $0xe0] sm:$0xff]
        %v1823 = vld [vmem:[%s1793 + $0xe8] sm:$0xff]
        %v1824 = vld [vmem:[%s1793 + $0xf0] sm:$0xff]
        %v1825 = vld [vmem:[%s1793 + $0xf8] sm:$0xff]
        %1826 = vrot.lane.b32.xlu0 %v587, 113
        %v1827 = vpop.permute.xlu0 %1826
        %1828 = vrot.lane.b32.xlu0 %v590, 113
        %v1829 = vpop.permute.xlu0 %1828
        %1830 = vrot.lane.b32.xlu0 %v593, 113
        %v1831 = vpop.permute.xlu0 %1830
        %1832 = vrot.lane.b32.xlu0 %v596, 113
        %v1833 = vpop.permute.xlu0 %1832
        %1834 = vrot.lane.b32.xlu0 %v599, 113
        %v1835 = vpop.permute.xlu0 %1834
        %1836 = vrot.lane.b32.xlu0 %v602, 113
        %v1837 = vpop.permute.xlu0 %1836
        %1838 = vrot.lane.b32.xlu0 %v605, 113
        %v1839 = vpop.permute.xlu0 %1838
        %1840 = vrot.lane.b32.xlu0 %v608, 113
        %v1841 = vpop.permute.xlu0 %1840
        %1842 = vrot.lane.b32.xlu0 %v640, 113
        %v1843 = vpop.permute.xlu0 %1842
        %1844 = vrot.lane.b32.xlu0 %v643, 113
        %v1845 = vpop.permute.xlu0 %1844
        %1846 = vrot.lane.b32.xlu0 %v646, 113
        %v1847 = vpop.permute.xlu0 %1846
        %1848 = vrot.lane.b32.xlu0 %v649, 113
        %v1849 = vpop.permute.xlu0 %1848
        %1850 = vrot.lane.b32.xlu0 %v652, 113
        %v1851 = vpop.permute.xlu0 %1850
        %1852 = vrot.lane.b32.xlu0 %v655, 113
        %v1853 = vpop.permute.xlu0 %1852
        %1854 = vrot.lane.b32.xlu0 %v658, 113
        %v1855 = vpop.permute.xlu0 %1854
        %1856 = vrot.lane.b32.xlu0 %v661, 113
        %v1857 = vpop.permute.xlu0 %1856
        %1858 = vrot.lane.b32.xlu0 %v693, 113
        %v1859 = vpop.permute.xlu0 %1858
        %1860 = vrot.lane.b32.xlu0 %v696, 113
        %v1861 = vpop.permute.xlu0 %1860
        %1862 = vrot.lane.b32.xlu0 %v699, 113
        %v1863 = vpop.permute.xlu0 %1862
        %1864 = vrot.lane.b32.xlu0 %v702, 113
        %v1865 = vpop.permute.xlu0 %1864
        %1866 = vrot.lane.b32.xlu0 %v705, 113
        %v1867 = vpop.permute.xlu0 %1866
        %1868 = vrot.lane.b32.xlu0 %v708, 113
        %v1869 = vpop.permute.xlu0 %1868
        %1870 = vrot.lane.b32.xlu0 %v711, 113
        %v1871 = vpop.permute.xlu0 %1870
        %1872 = vrot.lane.b32.xlu0 %v714, 113
        %v1873 = vpop.permute.xlu0 %1872
        %1874 = vrot.lane.b32.xlu0 %v746, 113
        %v1875 = vpop.permute.xlu0 %1874
        %1876 = vrot.lane.b32.xlu0 %v749, 113
        %v1877 = vpop.permute.xlu0 %1876
        %1878 = vrot.lane.b32.xlu0 %v752, 113
        %v1879 = vpop.permute.xlu0 %1878
        %1880 = vrot.lane.b32.xlu0 %v755, 113
        %v1881 = vpop.permute.xlu0 %1880
        %1882 = vrot.lane.b32.xlu0 %v758, 113
        %v1883 = vpop.permute.xlu0 %1882
        %1884 = vrot.lane.b32.xlu0 %v761, 113
        %v1885 = vpop.permute.xlu0 %1884
        %1886 = vrot.lane.b32.xlu0 %v764, 113
        %v1887 = vpop.permute.xlu0 %1886
        %1888 = vrot.lane.b32.xlu0 %v767, 113
        %v1889 = vpop.permute.xlu0 %1888
        %vm1890 = vcmp.lt.s32.totalorder %v886, 113
        %v1891 = vsel %vm1890, %v1859, %v1875
        %v1892 = vsel %vm1890, %v1861, %v1877
        %v1893 = vsel %vm1890, %v1863, %v1879
        %v1894 = vsel %vm1890, %v1865, %v1881
        %v1895 = vsel %vm1890, %v1867, %v1883
        %v1896 = vsel %vm1890, %v1869, %v1885
        %v1897 = vsel %vm1890, %v1871, %v1887
        %v1898 = vsel %vm1890, %v1873, %v1889
        %v1899 = vsel %vm1890, %v1843, %v1859
        %v1900 = vsel %vm1890, %v1845, %v1861
        %v1901 = vsel %vm1890, %v1847, %v1863
        %v1902 = vsel %vm1890, %v1849, %v1865
        %v1903 = vsel %vm1890, %v1851, %v1867
        %v1904 = vsel %vm1890, %v1853, %v1869
        %v1905 = vsel %vm1890, %v1855, %v1871
        %v1906 = vsel %vm1890, %v1857, %v1873
        %v1907 = vsel %vm1890, %v1827, %v1843
        %v1908 = vsel %vm1890, %v1829, %v1845
        %v1909 = vsel %vm1890, %v1831, %v1847
        %v1910 = vsel %vm1890, %v1833, %v1849
        %v1911 = vsel %vm1890, %v1835, %v1851
        %v1912 = vsel %vm1890, %v1837, %v1853
        %v1913 = vsel %vm1890, %v1839, %v1855
        %v1914 = vsel %vm1890, %v1841, %v1857
        %v1915 = vsel %vm1890, %v1875, %v1827
        %v1916 = vsel %vm1890, %v1877, %v1829
        %v1917 = vsel %vm1890, %v1879, %v1831
        %v1918 = vsel %vm1890, %v1881, %v1833
        %v1919 = vsel %vm1890, %v1883, %v1835
        %v1920 = vsel %vm1890, %v1885, %v1837
        %v1921 = vsel %vm1890, %v1887, %v1839
        %v1922 = vsel %vm1890, %v1889, %v1841
        %v1923 = vmul.f32 %v1907, %v1794
        %v1924 = vmul.f32 %v1899, %v1795
        %v1925 = vmul.f32 %v1891, %v1796
        %v1926 = vmul.f32 %v1915, %v1797
        %v1927 = vmul.f32 %v1908, %v1798
        %v1928 = vmul.f32 %v1900, %v1799
        %v1929 = vmul.f32 %v1892, %v1800
        %v1930 = vmul.f32 %v1916, %v1801
        %v1931 = vmul.f32 %v1909, %v1802
        %v1932 = vmul.f32 %v1901, %v1803
        %v1933 = vmul.f32 %v1893, %v1804
        %v1934 = vmul.f32 %v1917, %v1805
        %v1935 = vmul.f32 %v1910, %v1806
        %v1936 = vmul.f32 %v1902, %v1807
        %v1937 = vmul.f32 %v1894, %v1808
        %v1938 = vmul.f32 %v1918, %v1809
        %v1939 = vmul.f32 %v1911, %v1810
        %v1940 = vmul.f32 %v1903, %v1811
        %v1941 = vmul.f32 %v1895, %v1812
        %v1942 = vmul.f32 %v1919, %v1813
        %v1943 = vmul.f32 %v1912, %v1814
        %v1944 = vmul.f32 %v1904, %v1815
        %v1945 = vmul.f32 %v1896, %v1816
        %v1946 = vmul.f32 %v1920, %v1817
        %v1947 = vmul.f32 %v1913, %v1818
        %v1948 = vmul.f32 %v1905, %v1819
        %v1949 = vmul.f32 %v1897, %v1820
        %v1950 = vmul.f32 %v1921, %v1821
        %v1951 = vmul.f32 %v1914, %v1822
        %v1952 = vmul.f32 %v1906, %v1823
        %v1953 = vmul.f32 %v1898, %v1824
        %v1954 = vmul.f32 %v1922, %v1825
        %v1955 = vadd.f32 %v1567, %v1923
        %v1956 = vadd.f32 %v1568, %v1924
        %v1957 = vadd.f32 %v1569, %v1925
        %v1958 = vadd.f32 %v1570, %v1926
        %v1959 = vadd.f32 %v1571, %v1927
        %v1960 = vadd.f32 %v1572, %v1928
        %v1961 = vadd.f32 %v1573, %v1929
        %v1962 = vadd.f32 %v1574, %v1930
        %v1963 = vadd.f32 %v1575, %v1931
        %v1964 = vadd.f32 %v1576, %v1932
        %v1965 = vadd.f32 %v1577, %v1933
        %v1966 = vadd.f32 %v1578, %v1934
        %v1967 = vadd.f32 %v1579, %v1935
        %v1968 = vadd.f32 %v1580, %v1936
        %v1969 = vadd.f32 %v1581, %v1937
        %v1970 = vadd.f32 %v1582, %v1938
        %v1971 = vadd.f32 %v1583, %v1939
        %v1972 = vadd.f32 %v1584, %v1940
        %v1973 = vadd.f32 %v1585, %v1941
        %v1974 = vadd.f32 %v1586, %v1942
        %v1975 = vadd.f32 %v1587, %v1943
        %v1976 = vadd.f32 %v1588, %v1944
        %v1977 = vadd.f32 %v1589, %v1945
        %v1978 = vadd.f32 %v1590, %v1946
        %v1979 = vadd.f32 %v1591, %v1947
        %v1980 = vadd.f32 %v1592, %v1948
        %v1981 = vadd.f32 %v1593, %v1949
        %v1982 = vadd.f32 %v1594, %v1950
        %v1983 = vadd.f32 %v1595, %v1951
        %v1984 = vadd.f32 %v1596, %v1952
        %v1985 = vadd.f32 %v1597, %v1953
        %v1986 = vadd.f32 %v1598, %v1954
        %s1987 = scalar_lea.vmem [#allocation5], 1792
        %v1988 = vld [vmem:[%s1987] sm:$0xff]
        %v1989 = vld [vmem:[%s1987 + $0x8] sm:$0xff]
        %v1990 = vld [vmem:[%s1987 + $0x10] sm:$0xff]
        %v1991 = vld [vmem:[%s1987 + $0x18] sm:$0xff]
        %v1992 = vld [vmem:[%s1987 + $0x20] sm:$0xff]
        %v1993 = vld [vmem:[%s1987 + $0x28] sm:$0xff]
        %v1994 = vld [vmem:[%s1987 + $0x30] sm:$0xff]
        %v1995 = vld [vmem:[%s1987 + $0x38] sm:$0xff]
        %v1996 = vld [vmem:[%s1987 + $0x40] sm:$0xff]
        %v1997 = vld [vmem:[%s1987 + $0x48] sm:$0xff]
        %v1998 = vld [vmem:[%s1987 + $0x50] sm:$0xff]
        %v1999 = vld [vmem:[%s1987 + $0x58] sm:$0xff]
        %v2000 = vld [vmem:[%s1987 + $0x60] sm:$0xff]
        %v2001 = vld [vmem:[%s1987 + $0x68] sm:$0xff]
        %v2002 = vld [vmem:[%s1987 + $0x70] sm:$0xff]
        %v2003 = vld [vmem:[%s1987 + $0x78] sm:$0xff]
        %v2004 = vld [vmem:[%s1987 + $0x80] sm:$0xff]
        %v2005 = vld [vmem:[%s1987 + $0x88] sm:$0xff]
        %v2006 = vld [vmem:[%s1987 + $0x90] sm:$0xff]
        %v2007 = vld [vmem:[%s1987 + $0x98] sm:$0xff]
        %v2008 = vld [vmem:[%s1987 + $0xa0] sm:$0xff]
        %v2009 = vld [vmem:[%s1987 + $0xa8] sm:$0xff]
        %v2010 = vld [vmem:[%s1987 + $0xb0] sm:$0xff]
        %v2011 = vld [vmem:[%s1987 + $0xb8] sm:$0xff]
        %v2012 = vld [vmem:[%s1987 + $0xc0] sm:$0xff]
        %v2013 = vld [vmem:[%s1987 + $0xc8] sm:$0xff]
        %v2014 = vld [vmem:[%s1987 + $0xd0] sm:$0xff]
        %v2015 = vld [vmem:[%s1987 + $0xd8] sm:$0xff]
        %v2016 = vld [vmem:[%s1987 + $0xe0] sm:$0xff]
        %v2017 = vld [vmem:[%s1987 + $0xe8] sm:$0xff]
        %v2018 = vld [vmem:[%s1987 + $0xf0] sm:$0xff]
        %v2019 = vld [vmem:[%s1987 + $0xf8] sm:$0xff]
        %2020 = vrot.lane.b32.xlu0 %v587, 112
        %v2021 = vpop.permute.xlu0 %2020
        %2022 = vrot.lane.b32.xlu0 %v590, 112
        %v2023 = vpop.permute.xlu0 %2022
        %2024 = vrot.lane.b32.xlu0 %v593, 112
        %v2025 = vpop.permute.xlu0 %2024
        %2026 = vrot.lane.b32.xlu0 %v596, 112
        %v2027 = vpop.permute.xlu0 %2026
        %2028 = vrot.lane.b32.xlu0 %v599, 112
        %v2029 = vpop.permute.xlu0 %2028
        %2030 = vrot.lane.b32.xlu0 %v602, 112
        %v2031 = vpop.permute.xlu0 %2030
        %2032 = vrot.lane.b32.xlu0 %v605, 112
        %v2033 = vpop.permute.xlu0 %2032
        %2034 = vrot.lane.b32.xlu0 %v608, 112
        %v2035 = vpop.permute.xlu0 %2034
        %2036 = vrot.lane.b32.xlu0 %v640, 112
        %v2037 = vpop.permute.xlu0 %2036
        %2038 = vrot.lane.b32.xlu0 %v643, 112
        %v2039 = vpop.permute.xlu0 %2038
        %2040 = vrot.lane.b32.xlu0 %v646, 112
        %v2041 = vpop.permute.xlu0 %2040
        %2042 = vrot.lane.b32.xlu0 %v649, 112
        %v2043 = vpop.permute.xlu0 %2042
        %2044 = vrot.lane.b32.xlu0 %v652, 112
        %v2045 = vpop.permute.xlu0 %2044
        %2046 = vrot.lane.b32.xlu0 %v655, 112
        %v2047 = vpop.permute.xlu0 %2046
        %2048 = vrot.lane.b32.xlu0 %v658, 112
        %v2049 = vpop.permute.xlu0 %2048
        %2050 = vrot.lane.b32.xlu0 %v661, 112
        %v2051 = vpop.permute.xlu0 %2050
        %2052 = vrot.lane.b32.xlu0 %v693, 112
        %v2053 = vpop.permute.xlu0 %2052
        %2054 = vrot.lane.b32.xlu0 %v696, 112
        %v2055 = vpop.permute.xlu0 %2054
        %2056 = vrot.lane.b32.xlu0 %v699, 112
        %v2057 = vpop.permute.xlu0 %2056
        %2058 = vrot.lane.b32.xlu0 %v702, 112
        %v2059 = vpop.permute.xlu0 %2058
        %2060 = vrot.lane.b32.xlu0 %v705, 112
        %v2061 = vpop.permute.xlu0 %2060
        %2062 = vrot.lane.b32.xlu0 %v708, 112
        %v2063 = vpop.permute.xlu0 %2062
        %2064 = vrot.lane.b32.xlu0 %v711, 112
        %v2065 = vpop.permute.xlu0 %2064
        %2066 = vrot.lane.b32.xlu0 %v714, 112
        %v2067 = vpop.permute.xlu0 %2066
        %2068 = vrot.lane.b32.xlu0 %v746, 112
        %v2069 = vpop.permute.xlu0 %2068
        %2070 = vrot.lane.b32.xlu0 %v749, 112
        %v2071 = vpop.permute.xlu0 %2070
        %2072 = vrot.lane.b32.xlu0 %v752, 112
        %v2073 = vpop.permute.xlu0 %2072
        %2074 = vrot.lane.b32.xlu0 %v755, 112
        %v2075 = vpop.permute.xlu0 %2074
        %2076 = vrot.lane.b32.xlu0 %v758, 112
        %v2077 = vpop.permute.xlu0 %2076
        %2078 = vrot.lane.b32.xlu0 %v761, 112
        %v2079 = vpop.permute.xlu0 %2078
        %2080 = vrot.lane.b32.xlu0 %v764, 112
        %v2081 = vpop.permute.xlu0 %2080
        %2082 = vrot.lane.b32.xlu0 %v767, 112
        %v2083 = vpop.permute.xlu0 %2082
        %vm2084 = vcmp.lt.s32.totalorder %v886, 112
        %v2085 = vsel %vm2084, %v2053, %v2069
        %v2086 = vsel %vm2084, %v2055, %v2071
        %v2087 = vsel %vm2084, %v2057, %v2073
        %v2088 = vsel %vm2084, %v2059, %v2075
        %v2089 = vsel %vm2084, %v2061, %v2077
        %v2090 = vsel %vm2084, %v2063, %v2079
        %v2091 = vsel %vm2084, %v2065, %v2081
        %v2092 = vsel %vm2084, %v2067, %v2083
        %v2093 = vsel %vm2084, %v2037, %v2053
        %v2094 = vsel %vm2084, %v2039, %v2055
        %v2095 = vsel %vm2084, %v2041, %v2057
        %v2096 = vsel %vm2084, %v2043, %v2059
        %v2097 = vsel %vm2084, %v2045, %v2061
        %v2098 = vsel %vm2084, %v2047, %v2063
        %v2099 = vsel %vm2084, %v2049, %v2065
        %v2100 = vsel %vm2084, %v2051, %v2067
        %v2101 = vsel %vm2084, %v2021, %v2037
        %v2102 = vsel %vm2084, %v2023, %v2039
        %v2103 = vsel %vm2084, %v2025, %v2041
        %v2104 = vsel %vm2084, %v2027, %v2043
        %v2105 = vsel %vm2084, %v2029, %v2045
        %v2106 = vsel %vm2084, %v2031, %v2047
        %v2107 = vsel %vm2084, %v2033, %v2049
        %v2108 = vsel %vm2084, %v2035, %v2051
        %v2109 = vsel %vm2084, %v2069, %v2021
        %v2110 = vsel %vm2084, %v2071, %v2023
        %v2111 = vsel %vm2084, %v2073, %v2025
        %v2112 = vsel %vm2084, %v2075, %v2027
        %v2113 = vsel %vm2084, %v2077, %v2029
        %v2114 = vsel %vm2084, %v2079, %v2031
        %v2115 = vsel %vm2084, %v2081, %v2033
        %v2116 = vsel %vm2084, %v2083, %v2035
        %v2117 = vmul.f32 %v2101, %v1988
        %v2118 = vmul.f32 %v2093, %v1989
        %v2119 = vmul.f32 %v2085, %v1990
        %v2120 = vmul.f32 %v2109, %v1991
        %v2121 = vmul.f32 %v2102, %v1992
        %v2122 = vmul.f32 %v2094, %v1993
        %v2123 = vmul.f32 %v2086, %v1994
        %v2124 = vmul.f32 %v2110, %v1995
        %v2125 = vmul.f32 %v2103, %v1996
        %v2126 = vmul.f32 %v2095, %v1997
        %v2127 = vmul.f32 %v2087, %v1998
        %v2128 = vmul.f32 %v2111, %v1999
        %v2129 = vmul.f32 %v2104, %v2000
        %v2130 = vmul.f32 %v2096, %v2001
        %v2131 = vmul.f32 %v2088, %v2002
        %v2132 = vmul.f32 %v2112, %v2003
        %v2133 = vmul.f32 %v2105, %v2004
        %v2134 = vmul.f32 %v2097, %v2005
        %v2135 = vmul.f32 %v2089, %v2006
        %v2136 = vmul.f32 %v2113, %v2007
        %v2137 = vmul.f32 %v2106, %v2008
        %v2138 = vmul.f32 %v2098, %v2009
        %v2139 = vmul.f32 %v2090, %v2010
        %v2140 = vmul.f32 %v2114, %v2011
        %v2141 = vmul.f32 %v2107, %v2012
        %v2142 = vmul.f32 %v2099, %v2013
        %v2143 = vmul.f32 %v2091, %v2014
        %v2144 = vmul.f32 %v2115, %v2015
        %v2145 = vmul.f32 %v2108, %v2016
        %v2146 = vmul.f32 %v2100, %v2017
        %v2147 = vmul.f32 %v2092, %v2018
        %v2148 = vmul.f32 %v2116, %v2019
        %v2149 = vadd.f32 %v1761, %v2117
        %v2150 = vadd.f32 %v1762, %v2118
        %v2151 = vadd.f32 %v1763, %v2119
        %v2152 = vadd.f32 %v1764, %v2120
        %v2153 = vadd.f32 %v1765, %v2121
        %v2154 = vadd.f32 %v1766, %v2122
        %v2155 = vadd.f32 %v1767, %v2123
        %v2156 = vadd.f32 %v1768, %v2124
        %v2157 = vadd.f32 %v1769, %v2125
        %v2158 = vadd.f32 %v1770, %v2126
        %v2159 = vadd.f32 %v1771, %v2127
        %v2160 = vadd.f32 %v1772, %v2128
        %v2161 = vadd.f32 %v1773, %v2129
        %v2162 = vadd.f32 %v1774, %v2130
        %v2163 = vadd.f32 %v1775, %v2131
        %v2164 = vadd.f32 %v1776, %v2132
        %v2165 = vadd.f32 %v1777, %v2133
        %v2166 = vadd.f32 %v1778, %v2134
        %v2167 = vadd.f32 %v1779, %v2135
        %v2168 = vadd.f32 %v1780, %v2136
        %v2169 = vadd.f32 %v1781, %v2137
        %v2170 = vadd.f32 %v1782, %v2138
        %v2171 = vadd.f32 %v1783, %v2139
        %v2172 = vadd.f32 %v1784, %v2140
        %v2173 = vadd.f32 %v1785, %v2141
        %v2174 = vadd.f32 %v1786, %v2142
        %v2175 = vadd.f32 %v1787, %v2143
        %v2176 = vadd.f32 %v1788, %v2144
        %v2177 = vadd.f32 %v1789, %v2145
        %v2178 = vadd.f32 %v1790, %v2146
        %v2179 = vadd.f32 %v1791, %v2147
        %v2180 = vadd.f32 %v1792, %v2148
        %s2181 = scalar_lea.vmem [#allocation5], 2048
        %v2182 = vld [vmem:[%s2181] sm:$0xff]
        %v2183 = vld [vmem:[%s2181 + $0x8] sm:$0xff]
        %v2184 = vld [vmem:[%s2181 + $0x10] sm:$0xff]
        %v2185 = vld [vmem:[%s2181 + $0x18] sm:$0xff]
        %v2186 = vld [vmem:[%s2181 + $0x20] sm:$0xff]
        %v2187 = vld [vmem:[%s2181 + $0x28] sm:$0xff]
        %v2188 = vld [vmem:[%s2181 + $0x30] sm:$0xff]
        %v2189 = vld [vmem:[%s2181 + $0x38] sm:$0xff]
        %v2190 = vld [vmem:[%s2181 + $0x40] sm:$0xff]
        %v2191 = vld [vmem:[%s2181 + $0x48] sm:$0xff]
        %v2192 = vld [vmem:[%s2181 + $0x50] sm:$0xff]
        %v2193 = vld [vmem:[%s2181 + $0x58] sm:$0xff]
        %v2194 = vld [vmem:[%s2181 + $0x60] sm:$0xff]
        %v2195 = vld [vmem:[%s2181 + $0x68] sm:$0xff]
        %v2196 = vld [vmem:[%s2181 + $0x70] sm:$0xff]
        %v2197 = vld [vmem:[%s2181 + $0x78] sm:$0xff]
        %v2198 = vld [vmem:[%s2181 + $0x80] sm:$0xff]
        %v2199 = vld [vmem:[%s2181 + $0x88] sm:$0xff]
        %v2200 = vld [vmem:[%s2181 + $0x90] sm:$0xff]
        %v2201 = vld [vmem:[%s2181 + $0x98] sm:$0xff]
        %v2202 = vld [vmem:[%s2181 + $0xa0] sm:$0xff]
        %v2203 = vld [vmem:[%s2181 + $0xa8] sm:$0xff]
        %v2204 = vld [vmem:[%s2181 + $0xb0] sm:$0xff]
        %v2205 = vld [vmem:[%s2181 + $0xb8] sm:$0xff]
        %v2206 = vld [vmem:[%s2181 + $0xc0] sm:$0xff]
        %v2207 = vld [vmem:[%s2181 + $0xc8] sm:$0xff]
        %v2208 = vld [vmem:[%s2181 + $0xd0] sm:$0xff]
        %v2209 = vld [vmem:[%s2181 + $0xd8] sm:$0xff]
        %v2210 = vld [vmem:[%s2181 + $0xe0] sm:$0xff]
        %v2211 = vld [vmem:[%s2181 + $0xe8] sm:$0xff]
        %v2212 = vld [vmem:[%s2181 + $0xf0] sm:$0xff]
        %v2213 = vld [vmem:[%s2181 + $0xf8] sm:$0xff]
        %2214 = vrot.lane.b32.xlu0 %v587, 111
        %v2215 = vpop.permute.xlu0 %2214
        %2216 = vrot.lane.b32.xlu0 %v590, 111
        %v2217 = vpop.permute.xlu0 %2216
        %2218 = vrot.lane.b32.xlu0 %v593, 111
        %v2219 = vpop.permute.xlu0 %2218
        %2220 = vrot.lane.b32.xlu0 %v596, 111
        %v2221 = vpop.permute.xlu0 %2220
        %2222 = vrot.lane.b32.xlu0 %v599, 111
        %v2223 = vpop.permute.xlu0 %2222
        %2224 = vrot.lane.b32.xlu0 %v602, 111
        %v2225 = vpop.permute.xlu0 %2224
        %2226 = vrot.lane.b32.xlu0 %v605, 111
        %v2227 = vpop.permute.xlu0 %2226
        %2228 = vrot.lane.b32.xlu0 %v608, 111
        %v2229 = vpop.permute.xlu0 %2228
        %2230 = vrot.lane.b32.xlu0 %v640, 111
        %v2231 = vpop.permute.xlu0 %2230
        %2232 = vrot.lane.b32.xlu0 %v643, 111
        %v2233 = vpop.permute.xlu0 %2232
        %2234 = vrot.lane.b32.xlu0 %v646, 111
        %v2235 = vpop.permute.xlu0 %2234
        %2236 = vrot.lane.b32.xlu0 %v649, 111
        %v2237 = vpop.permute.xlu0 %2236
        %2238 = vrot.lane.b32.xlu0 %v652, 111
        %v2239 = vpop.permute.xlu0 %2238
        %2240 = vrot.lane.b32.xlu0 %v655, 111
        %v2241 = vpop.permute.xlu0 %2240
        %2242 = vrot.lane.b32.xlu0 %v658, 111
        %v2243 = vpop.permute.xlu0 %2242
        %2244 = vrot.lane.b32.xlu0 %v661, 111
        %v2245 = vpop.permute.xlu0 %2244
        %2246 = vrot.lane.b32.xlu0 %v693, 111
        %v2247 = vpop.permute.xlu0 %2246
        %2248 = vrot.lane.b32.xlu0 %v696, 111
        %v2249 = vpop.permute.xlu0 %2248
        %2250 = vrot.lane.b32.xlu0 %v699, 111
        %v2251 = vpop.permute.xlu0 %2250
        %2252 = vrot.lane.b32.xlu0 %v702, 111
        %v2253 = vpop.permute.xlu0 %2252
        %2254 = vrot.lane.b32.xlu0 %v705, 111
        %v2255 = vpop.permute.xlu0 %2254
        %2256 = vrot.lane.b32.xlu0 %v708, 111
        %v2257 = vpop.permute.xlu0 %2256
        %2258 = vrot.lane.b32.xlu0 %v711, 111
        %v2259 = vpop.permute.xlu0 %2258
        %2260 = vrot.lane.b32.xlu0 %v714, 111
        %v2261 = vpop.permute.xlu0 %2260
        %2262 = vrot.lane.b32.xlu0 %v746, 111
        %v2263 = vpop.permute.xlu0 %2262
        %2264 = vrot.lane.b32.xlu0 %v749, 111
        %v2265 = vpop.permute.xlu0 %2264
        %2266 = vrot.lane.b32.xlu0 %v752, 111
        %v2267 = vpop.permute.xlu0 %2266
        %2268 = vrot.lane.b32.xlu0 %v755, 111
        %v2269 = vpop.permute.xlu0 %2268
        %2270 = vrot.lane.b32.xlu0 %v758, 111
        %v2271 = vpop.permute.xlu0 %2270
        %2272 = vrot.lane.b32.xlu0 %v761, 111
        %v2273 = vpop.permute.xlu0 %2272
        %2274 = vrot.lane.b32.xlu0 %v764, 111
        %v2275 = vpop.permute.xlu0 %2274
        %2276 = vrot.lane.b32.xlu0 %v767, 111
        %v2277 = vpop.permute.xlu0 %2276
        %vm2278 = vcmp.lt.s32.totalorder %v886, 111
        %v2279 = vsel %vm2278, %v2247, %v2263
        %v2280 = vsel %vm2278, %v2249, %v2265
        %v2281 = vsel %vm2278, %v2251, %v2267
        %v2282 = vsel %vm2278, %v2253, %v2269
        %v2283 = vsel %vm2278, %v2255, %v2271
        %v2284 = vsel %vm2278, %v2257, %v2273
        %v2285 = vsel %vm2278, %v2259, %v2275
        %v2286 = vsel %vm2278, %v2261, %v2277
        %v2287 = vsel %vm2278, %v2231, %v2247
        %v2288 = vsel %vm2278, %v2233, %v2249
        %v2289 = vsel %vm2278, %v2235, %v2251
        %v2290 = vsel %vm2278, %v2237, %v2253
        %v2291 = vsel %vm2278, %v2239, %v2255
        %v2292 = vsel %vm2278, %v2241, %v2257
        %v2293 = vsel %vm2278, %v2243, %v2259
        %v2294 = vsel %vm2278, %v2245, %v2261
        %v2295 = vsel %vm2278, %v2215, %v2231
        %v2296 = vsel %vm2278, %v2217, %v2233
        %v2297 = vsel %vm2278, %v2219, %v2235
        %v2298 = vsel %vm2278, %v2221, %v2237
        %v2299 = vsel %vm2278, %v2223, %v2239
        %v2300 = vsel %vm2278, %v2225, %v2241
        %v2301 = vsel %vm2278, %v2227, %v2243
        %v2302 = vsel %vm2278, %v2229, %v2245
        %v2303 = vsel %vm2278, %v2263, %v2215
        %v2304 = vsel %vm2278, %v2265, %v2217
        %v2305 = vsel %vm2278, %v2267, %v2219
        %v2306 = vsel %vm2278, %v2269, %v2221
        %v2307 = vsel %vm2278, %v2271, %v2223
        %v2308 = vsel %vm2278, %v2273, %v2225
        %v2309 = vsel %vm2278, %v2275, %v2227
        %v2310 = vsel %vm2278, %v2277, %v2229
        %v2311 = vmul.f32 %v2295, %v2182
        %v2312 = vmul.f32 %v2287, %v2183
        %v2313 = vmul.f32 %v2279, %v2184
        %v2314 = vmul.f32 %v2303, %v2185
        %v2315 = vmul.f32 %v2296, %v2186
        %v2316 = vmul.f32 %v2288, %v2187
        %v2317 = vmul.f32 %v2280, %v2188
        %v2318 = vmul.f32 %v2304, %v2189
        %v2319 = vmul.f32 %v2297, %v2190
        %v2320 = vmul.f32 %v2289, %v2191
        %v2321 = vmul.f32 %v2281, %v2192
        %v2322 = vmul.f32 %v2305, %v2193
        %v2323 = vmul.f32 %v2298, %v2194
        %v2324 = vmul.f32 %v2290, %v2195
        %v2325 = vmul.f32 %v2282, %v2196
        %v2326 = vmul.f32 %v2306, %v2197
        %v2327 = vmul.f32 %v2299, %v2198
        %v2328 = vmul.f32 %v2291, %v2199
        %v2329 = vmul.f32 %v2283, %v2200
        %v2330 = vmul.f32 %v2307, %v2201
        %v2331 = vmul.f32 %v2300, %v2202
        %v2332 = vmul.f32 %v2292, %v2203
        %v2333 = vmul.f32 %v2284, %v2204
        %v2334 = vmul.f32 %v2308, %v2205
        %v2335 = vmul.f32 %v2301, %v2206
        %v2336 = vmul.f32 %v2293, %v2207
        %v2337 = vmul.f32 %v2285, %v2208
        %v2338 = vmul.f32 %v2309, %v2209
        %v2339 = vmul.f32 %v2302, %v2210
        %v2340 = vmul.f32 %v2294, %v2211
        %v2341 = vmul.f32 %v2286, %v2212
        %v2342 = vmul.f32 %v2310, %v2213
        %v2343 = vadd.f32 %v1955, %v2311
        %v2344 = vadd.f32 %v1956, %v2312
        %v2345 = vadd.f32 %v1957, %v2313
        %v2346 = vadd.f32 %v1958, %v2314
        %v2347 = vadd.f32 %v1959, %v2315
        %v2348 = vadd.f32 %v1960, %v2316
        %v2349 = vadd.f32 %v1961, %v2317
        %v2350 = vadd.f32 %v1962, %v2318
        %v2351 = vadd.f32 %v1963, %v2319
        %v2352 = vadd.f32 %v1964, %v2320
        %v2353 = vadd.f32 %v1965, %v2321
        %v2354 = vadd.f32 %v1966, %v2322
        %v2355 = vadd.f32 %v1967, %v2323
        %v2356 = vadd.f32 %v1968, %v2324
        %v2357 = vadd.f32 %v1969, %v2325
        %v2358 = vadd.f32 %v1970, %v2326
        %v2359 = vadd.f32 %v1971, %v2327
        %v2360 = vadd.f32 %v1972, %v2328
        %v2361 = vadd.f32 %v1973, %v2329
        %v2362 = vadd.f32 %v1974, %v2330
        %v2363 = vadd.f32 %v1975, %v2331
        %v2364 = vadd.f32 %v1976, %v2332
        %v2365 = vadd.f32 %v1977, %v2333
        %v2366 = vadd.f32 %v1978, %v2334
        %v2367 = vadd.f32 %v1979, %v2335
        %v2368 = vadd.f32 %v1980, %v2336
        %v2369 = vadd.f32 %v1981, %v2337
        %v2370 = vadd.f32 %v1982, %v2338
        %v2371 = vadd.f32 %v1983, %v2339
        %v2372 = vadd.f32 %v1984, %v2340
        %v2373 = vadd.f32 %v1985, %v2341
        %v2374 = vadd.f32 %v1986, %v2342
        %2376 = vset.pattern.permute.xlu0 0
        %2377 = vperm.xlu0 %2376, %v781
        %v2378 = vpop.permute.xlu0 %2377
        %2381 = vset.pattern.permute.xlu0 0
        %2382 = vperm.xlu0 %2381, %v782
        %v2383 = vpop.permute.xlu0 %2382
        %2386 = vset.pattern.permute.xlu0 0
        %2387 = vperm.xlu0 %2386, %v783
        %v2388 = vpop.permute.xlu0 %2387
        %2391 = vset.pattern.permute.xlu0 0
        %2392 = vperm.xlu0 %2391, %v784
        %v2393 = vpop.permute.xlu0 %2392
        %2396 = vset.pattern.permute.xlu0 0
        %2397 = vperm.xlu0 %2396, %v785
        %v2398 = vpop.permute.xlu0 %2397
        %2401 = vset.pattern.permute.xlu0 0
        %2402 = vperm.xlu0 %2401, %v786
        %v2403 = vpop.permute.xlu0 %2402
        %2406 = vset.pattern.permute.xlu0 0
        %2407 = vperm.xlu0 %2406, %v787
        %v2408 = vpop.permute.xlu0 %2407
        %2411 = vset.pattern.permute.xlu0 0
        %2412 = vperm.xlu0 %2411, %v788
        %v2413 = vpop.permute.xlu0 %2412
        %v2415 = vadd.f32 %v2343, %v2378
        %v2416 = vadd.f32 %v2344, %v2378
        %v2417 = vadd.f32 %v2345, %v2378
        %v2418 = vadd.f32 %v2346, %v2378
        %v2419 = vadd.f32 %v2347, %v2383
        %v2420 = vadd.f32 %v2348, %v2383
        %v2421 = vadd.f32 %v2349, %v2383
        %v2422 = vadd.f32 %v2350, %v2383
        %v2423 = vadd.f32 %v2351, %v2388
        %v2424 = vadd.f32 %v2352, %v2388
        %v2425 = vadd.f32 %v2353, %v2388
        %v2426 = vadd.f32 %v2354, %v2388
        %v2427 = vadd.f32 %v2355, %v2393
        %v2428 = vadd.f32 %v2356, %v2393
        %v2429 = vadd.f32 %v2357, %v2393
        %v2430 = vadd.f32 %v2358, %v2393
        %v2431 = vadd.f32 %v2359, %v2398
        %v2432 = vadd.f32 %v2360, %v2398
        %v2433 = vadd.f32 %v2361, %v2398
        %v2434 = vadd.f32 %v2362, %v2398
        %v2435 = vadd.f32 %v2363, %v2403
        %v2436 = vadd.f32 %v2364, %v2403
        %v2437 = vadd.f32 %v2365, %v2403
        %v2438 = vadd.f32 %v2366, %v2403
        %v2439 = vadd.f32 %v2367, %v2408
        %v2440 = vadd.f32 %v2368, %v2408
        %v2441 = vadd.f32 %v2369, %v2408
        %v2442 = vadd.f32 %v2370, %v2408
        %v2443 = vadd.f32 %v2371, %v2413
        %v2444 = vadd.f32 %v2372, %v2413
        %v2445 = vadd.f32 %v2373, %v2413
        %v2446 = vadd.f32 %v2374, %v2413
        %v2447 = vadd.f32 %v2415, %v2149
        %v2448 = vadd.f32 %v2416, %v2150
        %v2449 = vadd.f32 %v2417, %v2151
        %v2450 = vadd.f32 %v2418, %v2152
        %v2451 = vadd.f32 %v2419, %v2153
        %v2452 = vadd.f32 %v2420, %v2154
        %v2453 = vadd.f32 %v2421, %v2155
        %v2454 = vadd.f32 %v2422, %v2156
        %v2455 = vadd.f32 %v2423, %v2157
        %v2456 = vadd.f32 %v2424, %v2158
        %v2457 = vadd.f32 %v2425, %v2159
        %v2458 = vadd.f32 %v2426, %v2160
        %v2459 = vadd.f32 %v2427, %v2161
        %v2460 = vadd.f32 %v2428, %v2162
        %v2461 = vadd.f32 %v2429, %v2163
        %v2462 = vadd.f32 %v2430, %v2164
        %v2463 = vadd.f32 %v2431, %v2165
        %v2464 = vadd.f32 %v2432, %v2166
        %v2465 = vadd.f32 %v2433, %v2167
        %v2466 = vadd.f32 %v2434, %v2168
        %v2467 = vadd.f32 %v2435, %v2169
        %v2468 = vadd.f32 %v2436, %v2170
        %v2469 = vadd.f32 %v2437, %v2171
        %v2470 = vadd.f32 %v2438, %v2172
        %v2471 = vadd.f32 %v2439, %v2173
        %v2472 = vadd.f32 %v2440, %v2174
        %v2473 = vadd.f32 %v2441, %v2175
        %v2474 = vadd.f32 %v2442, %v2176
        %v2475 = vadd.f32 %v2443, %v2177
        %v2476 = vadd.f32 %v2444, %v2178
        %v2477 = vadd.f32 %v2445, %v2179
        %v2478 = vadd.f32 %v2446, %v2180
        %v2479 = vmax.f32 %v2447, 0.0
        %v2480 = vmax.f32 %v2448, 0.0
        %v2481 = vmax.f32 %v2449, 0.0
        %v2482 = vmax.f32 %v2450, 0.0
        %v2483 = vmax.f32 %v2451, 0.0
        %v2484 = vmax.f32 %v2452, 0.0
        %v2485 = vmax.f32 %v2453, 0.0
        %v2486 = vmax.f32 %v2454, 0.0
        %v2487 = vmax.f32 %v2455, 0.0
        %v2488 = vmax.f32 %v2456, 0.0
        %v2489 = vmax.f32 %v2457, 0.0
        %v2490 = vmax.f32 %v2458, 0.0
        %v2491 = vmax.f32 %v2459, 0.0
        %v2492 = vmax.f32 %v2460, 0.0
        %v2493 = vmax.f32 %v2461, 0.0
        %v2494 = vmax.f32 %v2462, 0.0
        %v2495 = vmax.f32 %v2463, 0.0
        %v2496 = vmax.f32 %v2464, 0.0
        %v2497 = vmax.f32 %v2465, 0.0
        %v2498 = vmax.f32 %v2466, 0.0
        %v2499 = vmax.f32 %v2467, 0.0
        %v2500 = vmax.f32 %v2468, 0.0
        %v2501 = vmax.f32 %v2469, 0.0
        %v2502 = vmax.f32 %v2470, 0.0
        %v2503 = vmax.f32 %v2471, 0.0
        %v2504 = vmax.f32 %v2472, 0.0
        %v2505 = vmax.f32 %v2473, 0.0
        %v2506 = vmax.f32 %v2474, 0.0
        %v2507 = vmax.f32 %v2475, 0.0
        %v2508 = vmax.f32 %v2476, 0.0
        %v2509 = vmax.f32 %v2477, 0.0
        %v2510 = vmax.f32 %v2478, 0.0
        %v2511 = vld [vmem:[#allocation10] sm:$0x3]
        %vm2512 = vcmask 523264
        %v2514 = vsel %vm2512, %v2511, 0
        %2516 = vmatpush.msra.mxu0 0.0
        %2517 = vmatpush.msra.mxu0 0.0
        %2518 = vmatpush.msra.mxu0 0.0
        %2519 = vmatpush.msra.mxu0 0.0
        %2520 = vmatpush.msra.mxu0 0.0
        %2521 = vmatpush.msra.mxu0 0.0
        %2522 = vmatpush.msra.mxu0 0.0
        %2523 = vmatpush.msra.mxu0 0.0
        %2524 = vmatpush.msra.mxu0 %v2507
        %2525 = vmatpush.msra.mxu0 %v2503
        %2526 = vmatpush.msra.mxu0 %v2499
        %2527 = vmatpush.msra.mxu0 %v2495
        %2528 = vmatpush.msra.mxu0 %v2491
        %2529 = vmatpush.msra.mxu0 %v2487
        %2530 = vmatpush.msra.mxu0 %v2483
        %2531 = vmatpush.msra.mxu0 %v2479
        %2532 = vmatmul.f32.gmra.mxu0 %v2514
        %v2533 = vpop.f32.mrf.mxu0
        %v2534 = vadd.f32 0.0, %v2533
        %2535 = vdwg.mxu0
        %2536 = vmatpush.msra.mxu0 0.0
        %2537 = vmatpush.msra.mxu0 0.0
        %2538 = vmatpush.msra.mxu0 0.0
        %2539 = vmatpush.msra.mxu0 0.0
        %2540 = vmatpush.msra.mxu0 0.0
        %2541 = vmatpush.msra.mxu0 0.0
        %2542 = vmatpush.msra.mxu0 0.0
        %2543 = vmatpush.msra.mxu0 0.0
        %2544 = vmatpush.msra.mxu0 %v2508
        %2545 = vmatpush.msra.mxu0 %v2504
        %2546 = vmatpush.msra.mxu0 %v2500
        %2547 = vmatpush.msra.mxu0 %v2496
        %2548 = vmatpush.msra.mxu0 %v2492
        %2549 = vmatpush.msra.mxu0 %v2488
        %2550 = vmatpush.msra.mxu0 %v2484
        %2551 = vmatpush.msra.mxu0 %v2480
        %2552 = vmatmul.f32.gmra.mxu0 %v2514
        %v2553 = vpop.f32.mrf.mxu0
        %v2554 = vadd.f32 0.0, %v2553
        %2555 = vdwg.mxu0
        %2556 = vmatpush.msra.mxu0 0.0
        %2557 = vmatpush.msra.mxu0 0.0
        %2558 = vmatpush.msra.mxu0 0.0
        %2559 = vmatpush.msra.mxu0 0.0
        %2560 = vmatpush.msra.mxu0 0.0
        %2561 = vmatpush.msra.mxu0 0.0
        %2562 = vmatpush.msra.mxu0 0.0
        %2563 = vmatpush.msra.mxu0 0.0
        %2564 = vmatpush.msra.mxu0 %v2509
        %2565 = vmatpush.msra.mxu0 %v2505
        %2566 = vmatpush.msra.mxu0 %v2501
        %2567 = vmatpush.msra.mxu0 %v2497
        %2568 = vmatpush.msra.mxu0 %v2493
        %2569 = vmatpush.msra.mxu0 %v2489
        %2570 = vmatpush.msra.mxu0 %v2485
        %2571 = vmatpush.msra.mxu0 %v2481
        %2572 = vmatmul.f32.gmra.mxu0 %v2514
        %v2573 = vpop.f32.mrf.mxu0
        %v2574 = vadd.f32 0.0, %v2573
        %2575 = vdwg.mxu0
        %2576 = vmatpush.msra.mxu0 0.0
        %2577 = vmatpush.msra.mxu0 0.0
        %2578 = vmatpush.msra.mxu0 0.0
        %2579 = vmatpush.msra.mxu0 0.0
        %2580 = vmatpush.msra.mxu0 0.0
        %2581 = vmatpush.msra.mxu0 0.0
        %2582 = vmatpush.msra.mxu0 0.0
        %2583 = vmatpush.msra.mxu0 0.0
        %2584 = vmatpush.msra.mxu0 %v2510
        %2585 = vmatpush.msra.mxu0 %v2506
        %2586 = vmatpush.msra.mxu0 %v2502
        %2587 = vmatpush.msra.mxu0 %v2498
        %2588 = vmatpush.msra.mxu0 %v2494
        %2589 = vmatpush.msra.mxu0 %v2490
        %2590 = vmatpush.msra.mxu0 %v2486
        %2591 = vmatpush.msra.mxu0 %v2482
        %2592 = vmatmul.f32.gmra.mxu0 %v2514
        %v2593 = vpop.f32.mrf.mxu0
        %v2594 = vadd.f32 0.0, %v2593
        %2595 = vdwg.mxu0
        %v2596 = vld [vmem:[%s7] sm:$0xff]
        %v2597 = vld [vmem:[%s7 + $0x8] sm:$0xff]
        %v2598 = vld [vmem:[%s7 + $0x10] sm:$0xff]
        %v2599 = vld [vmem:[%s7 + $0x18] sm:$0xff]
        %v2600 = vld [vmem:[%s7 + $0x20] sm:$0xff]
        %v2601 = vld [vmem:[%s7 + $0x28] sm:$0xff]
        %v2602 = vld [vmem:[%s7 + $0x30] sm:$0xff]
        %v2603 = vld [vmem:[%s7 + $0x38] sm:$0xff]
        %v2604 = vxor.u32 %v2534, 2147483648
        %v2605 = vxor.u32 %v2554, 2147483648
        %v2606 = vxor.u32 %v2574, 2147483648
        %v2607 = vxor.u32 %v2594, 2147483648
        %v2608 = vmul.f32 %v2604, 1.442695
        %v2609 = vpow.pop %v2608
        %v2610 = vmul.f32 %v2605, 1.442695
        %v2611 = vpow.pop %v2610
        %v2612 = vmul.f32 %v2606, 1.442695
        %v2613 = vpow.pop %v2612
        %v2614 = vmul.f32 %v2607, 1.442695
        %v2615 = vpow.pop %v2614
        %v2616 = vadd.f32 %v2609, 1.0
        %v2617 = vadd.f32 %v2611, 1.0
        %v2618 = vadd.f32 %v2613, 1.0
        %v2619 = vadd.f32 %v2615, 1.0
        %v2620 = vrcp.pop %v2616
        %v2621 = vmul.f32 %v2616, %v2620
        %v2622 = vsub.f32 1.0, %v2621
        %v2623 = vmul.f32 %v2620, %v2622
        %v2624 = vadd.f32 %v2620, %v2623
        %vm2625 = vweird.f32 %v2616
        %vm2626 = vweird.f32 %v2620
        %vm2627 = vmor %vm2625, %vm2626
        %v2628 = vsel %vm2627, %v2620, %v2624
        %v2629 = vand.u32 2147483647, %v2616
        %vm2630 = vcmp.eq.f32.partialorder %v2629, 8.507059e+37
        %v2631 = vand.u32 %v2616, 2147483648
        %v2632 = vor.u32 1.1754944e-38, %v2631
        %v2633 = vsel %vm2630, %v2632, %v2628
        %v2634 = vmul.f32 1.0, %v2633
        %v2635 = vrcp.pop %v2617
        %v2636 = vmul.f32 %v2617, %v2635
        %v2637 = vsub.f32 1.0, %v2636
        %v2638 = vmul.f32 %v2635, %v2637
        %v2639 = vadd.f32 %v2635, %v2638
        %vm2640 = vweird.f32 %v2617
        %vm2641 = vweird.f32 %v2635
        %vm2642 = vmor %vm2640, %vm2641
        %v2643 = vsel %vm2642, %v2635, %v2639
        %v2644 = vand.u32 2147483647, %v2617
        %vm2645 = vcmp.eq.f32.partialorder %v2644, 8.507059e+37
        %v2646 = vand.u32 %v2617, 2147483648
        %v2647 = vor.u32 1.1754944e-38, %v2646
        %v2648 = vsel %vm2645, %v2647, %v2643
        %v2649 = vmul.f32 1.0, %v2648
        %v2650 = vrcp.pop %v2618
        %v2651 = vmul.f32 %v2618, %v2650
        %v2652 = vsub.f32 1.0, %v2651
        %v2653 = vmul.f32 %v2650, %v2652
        %v2654 = vadd.f32 %v2650, %v2653
        %vm2655 = vweird.f32 %v2618
        %vm2656 = vweird.f32 %v2650
        %vm2657 = vmor %vm2655, %vm2656
        %v2658 = vsel %vm2657, %v2650, %v2654
        %v2659 = vand.u32 2147483647, %v2618
        %vm2660 = vcmp.eq.f32.partialorder %v2659, 8.507059e+37
        %v2661 = vand.u32 %v2618, 2147483648
        %v2662 = vor.u32 1.1754944e-38, %v2661
        %v2663 = vsel %vm2660, %v2662, %v2658
        %v2664 = vmul.f32 1.0, %v2663
        %v2665 = vrcp.pop %v2619
        %v2666 = vmul.f32 %v2619, %v2665
        %v2667 = vsub.f32 1.0, %v2666
        %v2668 = vmul.f32 %v2665, %v2667
        %v2669 = vadd.f32 %v2665, %v2668
        %vm2670 = vweird.f32 %v2619
        %vm2671 = vweird.f32 %v2665
        %vm2672 = vmor %vm2670, %vm2671
        %v2673 = vsel %vm2672, %v2665, %v2669
        %v2674 = vand.u32 2147483647, %v2619
        %vm2675 = vcmp.eq.f32.partialorder %v2674, 8.507059e+37
        %v2676 = vand.u32 %v2619, 2147483648
        %v2677 = vor.u32 1.1754944e-38, %v2676
        %v2678 = vsel %vm2675, %v2677, %v2673
        %v2679 = vmul.f32 1.0, %v2678
        %vm2680 = vcmask 15360
        %v2682 = vsel %vm2680, %v2596, 0
        %v2685 = vsel %vm2680, %v2597, 0
        %v2688 = vsel %vm2680, %v2598, 0
        %v2691 = vsel %vm2680, %v2599, 0
        %v2694 = vsel %vm2680, %v2600, 0
        %v2697 = vsel %vm2680, %v2601, 0
        %v2700 = vsel %vm2680, %v2602, 0
        %v2703 = vsel %vm2680, %v2603, 0
        %vm2705 = vcmask 1041408
        %v2707 = vsel %vm2705, %v2634, 0
        %v2710 = vsel %vm2705, %v2649, 0
        %v2713 = vsel %vm2705, %v2664, 0
        %v2716 = vsel %vm2705, %v2679, 0
        %2718 = vmatpush.msra.mxu0 0.0
        %2719 = vmatpush.msra.mxu0 0.0
        %2720 = vmatpush.msra.mxu0 0.0
        %2721 = vmatpush.msra.mxu0 0.0
        %2722 = vmatpush.msra.mxu0 0.0
        %2723 = vmatpush.msra.mxu0 0.0
        %2724 = vmatpush.msra.mxu0 0.0
        %2725 = vmatpush.msra.mxu0 0.0
        %2726 = vmatpush.msra.mxu0 0.0
        %2727 = vmatpush.msra.mxu0 0.0
        %2728 = vmatpush.msra.mxu0 0.0
        %2729 = vmatpush.msra.mxu0 0.0
        %2730 = vmatpush.msra.mxu0 0.0
        %2731 = vmatpush.msra.mxu0 0.0
        %2732 = vmatpush.msra.mxu0 0.0
        %2733 = vmatpush.msra.mxu0 %v2707
        %2734 = vmatmul.f32.gmra.mxu0 %v2682
        %v2735 = vpop.f32.mrf.mxu0
        %v2736 = vadd.f32 0.0, %v2735
        %2737 = vmatmul.f32.gmra.mxu0 %v2685
        %v2738 = vpop.f32.mrf.mxu0
        %v2739 = vadd.f32 0.0, %v2738
        %2740 = vmatmul.f32.gmra.mxu0 %v2688
        %v2741 = vpop.f32.mrf.mxu0
        %v2742 = vadd.f32 0.0, %v2741
        %2743 = vmatmul.f32.gmra.mxu0 %v2691
        %v2744 = vpop.f32.mrf.mxu0
        %v2745 = vadd.f32 0.0, %v2744
        %2746 = vmatmul.f32.gmra.mxu0 %v2694
        %v2747 = vpop.f32.mrf.mxu0
        %v2748 = vadd.f32 0.0, %v2747
        %2749 = vmatmul.f32.gmra.mxu0 %v2697
        %v2750 = vpop.f32.mrf.mxu0
        %v2751 = vadd.f32 0.0, %v2750
        %2752 = vmatmul.f32.gmra.mxu0 %v2700
        %v2753 = vpop.f32.mrf.mxu0
        %v2754 = vadd.f32 0.0, %v2753
        %2755 = vmatmul.f32.gmra.mxu0 %v2703
        %v2756 = vpop.f32.mrf.mxu0
        %v2757 = vadd.f32 0.0, %v2756
        %2758 = vdwg.mxu0
        %2759 = vmatpush.msra.mxu0 0.0
        %2760 = vmatpush.msra.mxu0 0.0
        %2761 = vmatpush.msra.mxu0 0.0
        %2762 = vmatpush.msra.mxu0 0.0
        %2763 = vmatpush.msra.mxu0 0.0
        %2764 = vmatpush.msra.mxu0 0.0
        %2765 = vmatpush.msra.mxu0 0.0
        %2766 = vmatpush.msra.mxu0 0.0
        %2767 = vmatpush.msra.mxu0 0.0
        %2768 = vmatpush.msra.mxu0 0.0
        %2769 = vmatpush.msra.mxu0 0.0
        %2770 = vmatpush.msra.mxu0 0.0
        %2771 = vmatpush.msra.mxu0 0.0
        %2772 = vmatpush.msra.mxu0 0.0
        %2773 = vmatpush.msra.mxu0 0.0
        %2774 = vmatpush.msra.mxu0 %v2710
        %2775 = vmatmul.f32.gmra.mxu0 %v2682
        %v2776 = vpop.f32.mrf.mxu0
        %v2777 = vadd.f32 0.0, %v2776
        %2778 = vmatmul.f32.gmra.mxu0 %v2685
        %v2779 = vpop.f32.mrf.mxu0
        %v2780 = vadd.f32 0.0, %v2779
        %2781 = vmatmul.f32.gmra.mxu0 %v2688
        %v2782 = vpop.f32.mrf.mxu0
        %v2783 = vadd.f32 0.0, %v2782
        %2784 = vmatmul.f32.gmra.mxu0 %v2691
        %v2785 = vpop.f32.mrf.mxu0
        %v2786 = vadd.f32 0.0, %v2785
        %2787 = vmatmul.f32.gmra.mxu0 %v2694
        %v2788 = vpop.f32.mrf.mxu0
        %v2789 = vadd.f32 0.0, %v2788
        %2790 = vmatmul.f32.gmra.mxu0 %v2697
        %v2791 = vpop.f32.mrf.mxu0
        %v2792 = vadd.f32 0.0, %v2791
        %2793 = vmatmul.f32.gmra.mxu0 %v2700
        %v2794 = vpop.f32.mrf.mxu0
        %v2795 = vadd.f32 0.0, %v2794
        %2796 = vmatmul.f32.gmra.mxu0 %v2703
        %v2797 = vpop.f32.mrf.mxu0
        %v2798 = vadd.f32 0.0, %v2797
        %2799 = vdwg.mxu0
        %2800 = vmatpush.msra.mxu0 0.0
        %2801 = vmatpush.msra.mxu0 0.0
        %2802 = vmatpush.msra.mxu0 0.0
        %2803 = vmatpush.msra.mxu0 0.0
        %2804 = vmatpush.msra.mxu0 0.0
        %2805 = vmatpush.msra.mxu0 0.0
        %2806 = vmatpush.msra.mxu0 0.0
        %2807 = vmatpush.msra.mxu0 0.0
        %2808 = vmatpush.msra.mxu0 0.0
        %2809 = vmatpush.msra.mxu0 0.0
        %2810 = vmatpush.msra.mxu0 0.0
        %2811 = vmatpush.msra.mxu0 0.0
        %2812 = vmatpush.msra.mxu0 0.0
        %2813 = vmatpush.msra.mxu0 0.0
        %2814 = vmatpush.msra.mxu0 0.0
        %2815 = vmatpush.msra.mxu0 %v2713
        %2816 = vmatmul.f32.gmra.mxu0 %v2682
        %v2817 = vpop.f32.mrf.mxu0
        %v2818 = vadd.f32 0.0, %v2817
        %2819 = vmatmul.f32.gmra.mxu0 %v2685
        %v2820 = vpop.f32.mrf.mxu0
        %v2821 = vadd.f32 0.0, %v2820
        %2822 = vmatmul.f32.gmra.mxu0 %v2688
        %v2823 = vpop.f32.mrf.mxu0
        %v2824 = vadd.f32 0.0, %v2823
        %2825 = vmatmul.f32.gmra.mxu0 %v2691
        %v2826 = vpop.f32.mrf.mxu0
        %v2827 = vadd.f32 0.0, %v2826
        %2828 = vmatmul.f32.gmra.mxu0 %v2694
        %v2829 = vpop.f32.mrf.mxu0
        %v2830 = vadd.f32 0.0, %v2829
        %2831 = vmatmul.f32.gmra.mxu0 %v2697
        %v2832 = vpop.f32.mrf.mxu0
        %v2833 = vadd.f32 0.0, %v2832
        %2834 = vmatmul.f32.gmra.mxu0 %v2700
        %v2835 = vpop.f32.mrf.mxu0
        %v2836 = vadd.f32 0.0, %v2835
        %2837 = vmatmul.f32.gmra.mxu0 %v2703
        %v2838 = vpop.f32.mrf.mxu0
        %v2839 = vadd.f32 0.0, %v2838
        %2840 = vdwg.mxu0
        %2841 = vmatpush.msra.mxu0 0.0
        %2842 = vmatpush.msra.mxu0 0.0
        %2843 = vmatpush.msra.mxu0 0.0
        %2844 = vmatpush.msra.mxu0 0.0
        %2845 = vmatpush.msra.mxu0 0.0
        %2846 = vmatpush.msra.mxu0 0.0
        %2847 = vmatpush.msra.mxu0 0.0
        %2848 = vmatpush.msra.mxu0 0.0
        %2849 = vmatpush.msra.mxu0 0.0
        %2850 = vmatpush.msra.mxu0 0.0
        %2851 = vmatpush.msra.mxu0 0.0
        %2852 = vmatpush.msra.mxu0 0.0
        %2853 = vmatpush.msra.mxu0 0.0
        %2854 = vmatpush.msra.mxu0 0.0
        %2855 = vmatpush.msra.mxu0 0.0
        %2856 = vmatpush.msra.mxu0 %v2716
        %2857 = vmatmul.f32.gmra.mxu0 %v2682
        %v2858 = vpop.f32.mrf.mxu0
        %v2859 = vadd.f32 0.0, %v2858
        %2860 = vmatmul.f32.gmra.mxu0 %v2685
        %v2861 = vpop.f32.mrf.mxu0
        %v2862 = vadd.f32 0.0, %v2861
        %2863 = vmatmul.f32.gmra.mxu0 %v2688
        %v2864 = vpop.f32.mrf.mxu0
        %v2865 = vadd.f32 0.0, %v2864
        %2866 = vmatmul.f32.gmra.mxu0 %v2691
        %v2867 = vpop.f32.mrf.mxu0
        %v2868 = vadd.f32 0.0, %v2867
        %2869 = vmatmul.f32.gmra.mxu0 %v2694
        %v2870 = vpop.f32.mrf.mxu0
        %v2871 = vadd.f32 0.0, %v2870
        %2872 = vmatmul.f32.gmra.mxu0 %v2697
        %v2873 = vpop.f32.mrf.mxu0
        %v2874 = vadd.f32 0.0, %v2873
        %2875 = vmatmul.f32.gmra.mxu0 %v2700
        %v2876 = vpop.f32.mrf.mxu0
        %v2877 = vadd.f32 0.0, %v2876
        %2878 = vmatmul.f32.gmra.mxu0 %v2703
        %v2879 = vpop.f32.mrf.mxu0
        %v2880 = vadd.f32 0.0, %v2879
        %2881 = vdwg.mxu0
        %v2882 = vmul.f32 %v587, %v2736
        %v2883 = vmul.f32 %v640, %v2777
        %v2884 = vmul.f32 %v693, %v2818
        %v2885 = vmul.f32 %v746, %v2859
        %v2886 = vmul.f32 %v590, %v2739
        %v2887 = vmul.f32 %v643, %v2780
        %v2888 = vmul.f32 %v696, %v2821
        %v2889 = vmul.f32 %v749, %v2862
        %v2890 = vmul.f32 %v593, %v2742
        %v2891 = vmul.f32 %v646, %v2783
        %v2892 = vmul.f32 %v699, %v2824
        %v2893 = vmul.f32 %v752, %v2865
        %v2894 = vmul.f32 %v596, %v2745
        %v2895 = vmul.f32 %v649, %v2786
        %v2896 = vmul.f32 %v702, %v2827
        %v2897 = vmul.f32 %v755, %v2868
        %v2898 = vmul.f32 %v599, %v2748
        %v2899 = vmul.f32 %v652, %v2789
        %v2900 = vmul.f32 %v705, %v2830
        %v2901 = vmul.f32 %v758, %v2871
        %v2902 = vmul.f32 %v602, %v2751
        %v2903 = vmul.f32 %v655, %v2792
        %v2904 = vmul.f32 %v708, %v2833
        %v2905 = vmul.f32 %v761, %v2874
        %v2906 = vmul.f32 %v605, %v2754
        %v2907 = vmul.f32 %v658, %v2795
        %v2908 = vmul.f32 %v711, %v2836
        %v2909 = vmul.f32 %v764, %v2877
        %v2910 = vmul.f32 %v608, %v2757
        %v2911 = vmul.f32 %v661, %v2798
        %v2912 = vmul.f32 %v714, %v2839
        %v2913 = vmul.f32 %v767, %v2880
        %v2914 = vld [vmem:[%s9] sm:$0xff]
        %v2915 = vld [vmem:[%s9 + $0x8] sm:$0xff]
        %v2916 = vld [vmem:[%s9 + $0x10] sm:$0xff]
        %v2917 = vld [vmem:[%s9 + $0x18] sm:$0xff]
        %v2918 = vld [vmem:[%s9 + $0x20] sm:$0xff]
        %v2919 = vld [vmem:[%s9 + $0x28] sm:$0xff]
        %v2920 = vld [vmem:[%s9 + $0x30] sm:$0xff]
        %v2921 = vld [vmem:[%s9 + $0x38] sm:$0xff]
        %v2922 = vld [vmem:[%s9 + $0x40] sm:$0xff]
        %v2923 = vld [vmem:[%s9 + $0x48] sm:$0xff]
        %v2924 = vld [vmem:[%s9 + $0x50] sm:$0xff]
        %v2925 = vld [vmem:[%s9 + $0x58] sm:$0xff]
        %v2926 = vld [vmem:[%s9 + $0x60] sm:$0xff]
        %v2927 = vld [vmem:[%s9 + $0x68] sm:$0xff]
        %v2928 = vld [vmem:[%s9 + $0x70] sm:$0xff]
        %v2929 = vld [vmem:[%s9 + $0x78] sm:$0xff]
        %v2930 = vld [vmem:[%s9 + $0x80] sm:$0xff]
        %v2931 = vld [vmem:[%s9 + $0x88] sm:$0xff]
        %v2932 = vld [vmem:[%s9 + $0x90] sm:$0xff]
        %v2933 = vld [vmem:[%s9 + $0x98] sm:$0xff]
        %v2934 = vld [vmem:[%s9 + $0xa0] sm:$0xff]
        %v2935 = vld [vmem:[%s9 + $0xa8] sm:$0xff]
        %v2936 = vld [vmem:[%s9 + $0xb0] sm:$0xff]
        %v2937 = vld [vmem:[%s9 + $0xb8] sm:$0xff]
        %v2938 = vld [vmem:[%s9 + $0xc0] sm:$0xff]
        %v2939 = vld [vmem:[%s9 + $0xc8] sm:$0xff]
        %v2940 = vld [vmem:[%s9 + $0xd0] sm:$0xff]
        %v2941 = vld [vmem:[%s9 + $0xd8] sm:$0xff]
        %v2942 = vld [vmem:[%s9 + $0xe0] sm:$0xff]
        %v2943 = vld [vmem:[%s9 + $0xe8] sm:$0xff]
        %v2944 = vld [vmem:[%s9 + $0xf0] sm:$0xff]
        %v2945 = vld [vmem:[%s9 + $0xf8] sm:$0xff]
        %v2946 = vld [vmem:[%s9 + $0x100] sm:$0xff]
        %v2947 = vld [vmem:[%s9 + $0x108] sm:$0xff]
        %v2948 = vld [vmem:[%s9 + $0x110] sm:$0xff]
        %v2949 = vld [vmem:[%s9 + $0x118] sm:$0xff]
        %v2950 = vld [vmem:[%s9 + $0x120] sm:$0xff]
        %v2951 = vld [vmem:[%s9 + $0x128] sm:$0xff]
        %v2952 = vld [vmem:[%s9 + $0x130] sm:$0xff]
        %v2953 = vld [vmem:[%s9 + $0x138] sm:$0xff]
        %v2954 = vld [vmem:[%s9 + $0x140] sm:$0xff]
        %v2955 = vld [vmem:[%s9 + $0x148] sm:$0xff]
        %v2956 = vld [vmem:[%s9 + $0x150] sm:$0xff]
        %v2957 = vld [vmem:[%s9 + $0x158] sm:$0xff]
        %v2958 = vld [vmem:[%s9 + $0x160] sm:$0xff]
        %v2959 = vld [vmem:[%s9 + $0x168] sm:$0xff]
        %v2960 = vld [vmem:[%s9 + $0x170] sm:$0xff]
        %v2961 = vld [vmem:[%s9 + $0x178] sm:$0xff]
        %v2962 = vld [vmem:[%s9 + $0x180] sm:$0xff]
        %v2963 = vld [vmem:[%s9 + $0x188] sm:$0xff]
        %v2964 = vld [vmem:[%s9 + $0x190] sm:$0xff]
        %v2965 = vld [vmem:[%s9 + $0x198] sm:$0xff]
        %v2966 = vld [vmem:[%s9 + $0x1a0] sm:$0xff]
        %v2967 = vld [vmem:[%s9 + $0x1a8] sm:$0xff]
        %v2968 = vld [vmem:[%s9 + $0x1b0] sm:$0xff]
        %v2969 = vld [vmem:[%s9 + $0x1b8] sm:$0xff]
        %v2970 = vld [vmem:[%s9 + $0x1c0] sm:$0xff]
        %v2971 = vld [vmem:[%s9 + $0x1c8] sm:$0xff]
        %v2972 = vld [vmem:[%s9 + $0x1d0] sm:$0xff]
        %v2973 = vld [vmem:[%s9 + $0x1d8] sm:$0xff]
        %v2974 = vld [vmem:[%s9 + $0x1e0] sm:$0xff]
        %v2975 = vld [vmem:[%s9 + $0x1e8] sm:$0xff]
        %v2976 = vld [vmem:[%s9 + $0x1f0] sm:$0xff]
        %v2977 = vld [vmem:[%s9 + $0x1f8] sm:$0xff]
        %2978 = vmatpush.msra.mxu0 %v2929
        %2979 = vmatpush.msra.mxu0 %v2928
        %2980 = vmatpush.msra.mxu0 %v2927
        %2981 = vmatpush.msra.mxu0 %v2926
        %2982 = vmatpush.msra.mxu0 %v2925
        %2983 = vmatpush.msra.mxu0 %v2924
        %2984 = vmatpush.msra.mxu0 %v2923
        %2985 = vmatpush.msra.mxu0 %v2922
        %2986 = vmatpush.msra.mxu0 %v2921
        %2987 = vmatpush.msra.mxu0 %v2920
        %2988 = vmatpush.msra.mxu0 %v2919
        %2989 = vmatpush.msra.mxu0 %v2918
        %2990 = vmatpush.msra.mxu0 %v2917
        %2991 = vmatpush.msra.mxu0 %v2916
        %2992 = vmatpush.msra.mxu0 %v2915
        %2993 = vmatpush.msra.mxu0 %v2914
        %2994 = vmatmul.f32.gmra.mxu0 %v2882
        %v2995 = vpop.f32.mrf.mxu0
        %v2996 = vadd.f32 0.0, %v2995
        %2997 = vmatmul.f32.gmra.mxu0 %v2886
        %v2998 = vpop.f32.mrf.mxu0
        %v2999 = vadd.f32 0.0, %v2998
        %3000 = vmatmul.f32.gmra.mxu0 %v2890
        %v3001 = vpop.f32.mrf.mxu0
        %v3002 = vadd.f32 0.0, %v3001
        %3003 = vmatmul.f32.gmra.mxu0 %v2894
        %v3004 = vpop.f32.mrf.mxu0
        %v3005 = vadd.f32 0.0, %v3004
        %3006 = vmatmul.f32.gmra.mxu0 %v2898
        %v3007 = vpop.f32.mrf.mxu0
        %v3008 = vadd.f32 0.0, %v3007
        %3009 = vmatmul.f32.gmra.mxu0 %v2902
        %v3010 = vpop.f32.mrf.mxu0
        %v3011 = vadd.f32 0.0, %v3010
        %3012 = vmatmul.f32.gmra.mxu0 %v2906
        %v3013 = vpop.f32.mrf.mxu0
        %v3014 = vadd.f32 0.0, %v3013
        %3015 = vmatmul.f32.gmra.mxu0 %v2910
        %v3016 = vpop.f32.mrf.mxu0
        %v3017 = vadd.f32 0.0, %v3016
        %3018 = vdwg.mxu0
        %3019 = vmatpush.msra.mxu0 %v2945
        %3020 = vmatpush.msra.mxu0 %v2944
        %3021 = vmatpush.msra.mxu0 %v2943
        %3022 = vmatpush.msra.mxu0 %v2942
        %3023 = vmatpush.msra.mxu0 %v2941
        %3024 = vmatpush.msra.mxu0 %v2940
        %3025 = vmatpush.msra.mxu0 %v2939
        %3026 = vmatpush.msra.mxu0 %v2938
        %3027 = vmatpush.msra.mxu0 %v2937
        %3028 = vmatpush.msra.mxu0 %v2936
        %3029 = vmatpush.msra.mxu0 %v2935
        %3030 = vmatpush.msra.mxu0 %v2934
        %3031 = vmatpush.msra.mxu0 %v2933
        %3032 = vmatpush.msra.mxu0 %v2932
        %3033 = vmatpush.msra.mxu0 %v2931
        %3034 = vmatpush.msra.mxu0 %v2930
        %3035 = vmatmul.f32.gmra.mxu0 %v2883
        %v3036 = vpop.f32.mrf.mxu0
        %v3037 = vadd.f32 %v2996, %v3036
        %3038 = vmatmul.f32.gmra.mxu0 %v2887
        %v3039 = vpop.f32.mrf.mxu0
        %v3040 = vadd.f32 %v2999, %v3039
        %3041 = vmatmul.f32.gmra.mxu0 %v2891
        %v3042 = vpop.f32.mrf.mxu0
        %v3043 = vadd.f32 %v3002, %v3042
        %3044 = vmatmul.f32.gmra.mxu0 %v2895
        %v3045 = vpop.f32.mrf.mxu0
        %v3046 = vadd.f32 %v3005, %v3045
        %3047 = vmatmul.f32.gmra.mxu0 %v2899
        %v3048 = vpop.f32.mrf.mxu0
        %v3049 = vadd.f32 %v3008, %v3048
        %3050 = vmatmul.f32.gmra.mxu0 %v2903
        %v3051 = vpop.f32.mrf.mxu0
        %v3052 = vadd.f32 %v3011, %v3051
        %3053 = vmatmul.f32.gmra.mxu0 %v2907
        %v3054 = vpop.f32.mrf.mxu0
        %v3055 = vadd.f32 %v3014, %v3054
        %3056 = vmatmul.f32.gmra.mxu0 %v2911
        %v3057 = vpop.f32.mrf.mxu0
        %v3058 = vadd.f32 %v3017, %v3057
        %3059 = vdwg.mxu0
        %3060 = vmatpush.msra.mxu0 %v2961
        %3061 = vmatpush.msra.mxu0 %v2960
        %3062 = vmatpush.msra.mxu0 %v2959
        %3063 = vmatpush.msra.mxu0 %v2958
        %3064 = vmatpush.msra.mxu0 %v2957
        %3065 = vmatpush.msra.mxu0 %v2956
        %3066 = vmatpush.msra.mxu0 %v2955
        %3067 = vmatpush.msra.mxu0 %v2954
        %3068 = vmatpush.msra.mxu0 %v2953
        %3069 = vmatpush.msra.mxu0 %v2952
        %3070 = vmatpush.msra.mxu0 %v2951
        %3071 = vmatpush.msra.mxu0 %v2950
        %3072 = vmatpush.msra.mxu0 %v2949
        %3073 = vmatpush.msra.mxu0 %v2948
        %3074 = vmatpush.msra.mxu0 %v2947
        %3075 = vmatpush.msra.mxu0 %v2946
        %3076 = vmatmul.f32.gmra.mxu0 %v2884
        %v3077 = vpop.f32.mrf.mxu0
        %v3078 = vadd.f32 %v3037, %v3077
        %3079 = vmatmul.f32.gmra.mxu0 %v2888
        %v3080 = vpop.f32.mrf.mxu0
        %v3081 = vadd.f32 %v3040, %v3080
        %3082 = vmatmul.f32.gmra.mxu0 %v2892
        %v3083 = vpop.f32.mrf.mxu0
        %v3084 = vadd.f32 %v3043, %v3083
        %3085 = vmatmul.f32.gmra.mxu0 %v2896
        %v3086 = vpop.f32.mrf.mxu0
        %v3087 = vadd.f32 %v3046, %v3086
        %3088 = vmatmul.f32.gmra.mxu0 %v2900
        %v3089 = vpop.f32.mrf.mxu0
        %v3090 = vadd.f32 %v3049, %v3089
        %3091 = vmatmul.f32.gmra.mxu0 %v2904
        %v3092 = vpop.f32.mrf.mxu0
        %v3093 = vadd.f32 %v3052, %v3092
        %3094 = vmatmul.f32.gmra.mxu0 %v2908
        %v3095 = vpop.f32.mrf.mxu0
        %v3096 = vadd.f32 %v3055, %v3095
        %3097 = vmatmul.f32.gmra.mxu0 %v2912
        %v3098 = vpop.f32.mrf.mxu0
        %v3099 = vadd.f32 %v3058, %v3098
        %3100 = vdwg.mxu0
        %3101 = vmatpush.msra.mxu0 %v2977
        %3102 = vmatpush.msra.mxu0 %v2976
        %3103 = vmatpush.msra.mxu0 %v2975
        %3104 = vmatpush.msra.mxu0 %v2974
        %3105 = vmatpush.msra.mxu0 %v2973
        %3106 = vmatpush.msra.mxu0 %v2972
        %3107 = vmatpush.msra.mxu0 %v2971
        %3108 = vmatpush.msra.mxu0 %v2970
        %3109 = vmatpush.msra.mxu0 %v2969
        %3110 = vmatpush.msra.mxu0 %v2968
        %3111 = vmatpush.msra.mxu0 %v2967
        %3112 = vmatpush.msra.mxu0 %v2966
        %3113 = vmatpush.msra.mxu0 %v2965
        %3114 = vmatpush.msra.mxu0 %v2964
        %3115 = vmatpush.msra.mxu0 %v2963
        %3116 = vmatpush.msra.mxu0 %v2962
        %3117 = vmatmul.f32.gmra.mxu0 %v2885
        %v3118 = vpop.f32.mrf.mxu0
        %v3119 = vadd.f32 %v3078, %v3118
        %3120 = vmatmul.f32.gmra.mxu0 %v2889
        %v3121 = vpop.f32.mrf.mxu0
        %v3122 = vadd.f32 %v3081, %v3121
        %3123 = vmatmul.f32.gmra.mxu0 %v2893
        %v3124 = vpop.f32.mrf.mxu0
        %v3125 = vadd.f32 %v3084, %v3124
        %3126 = vmatmul.f32.gmra.mxu0 %v2897
        %v3127 = vpop.f32.mrf.mxu0
        %v3128 = vadd.f32 %v3087, %v3127
        %3129 = vmatmul.f32.gmra.mxu0 %v2901
        %v3130 = vpop.f32.mrf.mxu0
        %v3131 = vadd.f32 %v3090, %v3130
        %3132 = vmatmul.f32.gmra.mxu0 %v2905
        %v3133 = vpop.f32.mrf.mxu0
        %v3134 = vadd.f32 %v3093, %v3133
        %3135 = vmatmul.f32.gmra.mxu0 %v2909
        %v3136 = vpop.f32.mrf.mxu0
        %v3137 = vadd.f32 %v3096, %v3136
        %3138 = vmatmul.f32.gmra.mxu0 %v2913
        %v3139 = vpop.f32.mrf.mxu0
        %v3140 = vadd.f32 %v3099, %v3139
        %3141 = vdwg.mxu0
        %v3142 = vmul.f32 %v3119, 0.00390625
        %v3143 = vmul.f32 %v3122, 0.00390625
        %v3144 = vmul.f32 %v3125, 0.00390625
        %v3145 = vmul.f32 %v3128, 0.00390625
        %v3146 = vmul.f32 %v3131, 0.00390625
        %v3147 = vmul.f32 %v3134, 0.00390625
        %v3148 = vmul.f32 %v3137, 0.00390625
        %v3149 = vmul.f32 %v3140, 0.00390625
        %v3150 = vld [vmem:[#allocation11] sm:$0xff]
        %v3151 = vld [vmem:[#allocation11 + $0x8] sm:$0xff]
        %v3152 = vld [vmem:[#allocation11 + $0x10] sm:$0xff]
        %v3153 = vld [vmem:[#allocation11 + $0x18] sm:$0xff]
        %v3154 = vld [vmem:[#allocation11 + $0x20] sm:$0xff]
        %v3155 = vld [vmem:[#allocation11 + $0x28] sm:$0xff]
        %v3156 = vld [vmem:[#allocation11 + $0x30] sm:$0xff]
        %v3157 = vld [vmem:[#allocation11 + $0x38] sm:$0xff]
        %v3159 = vsel %vm2512, %v3150, 0
        %v3162 = vsel %vm2512, %v3151, 0
        %v3165 = vsel %vm2512, %v3152, 0
        %v3168 = vsel %vm2512, %v3153, 0
        %v3171 = vsel %vm2512, %v3154, 0
        %v3174 = vsel %vm2512, %v3155, 0
        %v3177 = vsel %vm2512, %v3156, 0
        %v3180 = vsel %vm2512, %v3157, 0
        %3182 = vmatpush.msra.mxu0 0.0
        %3183 = vmatpush.msra.mxu0 0.0
        %3184 = vmatpush.msra.mxu0 0.0
        %3185 = vmatpush.msra.mxu0 0.0
        %3186 = vmatpush.msra.mxu0 0.0
        %3187 = vmatpush.msra.mxu0 0.0
        %3188 = vmatpush.msra.mxu0 0.0
        %3189 = vmatpush.msra.mxu0 0.0
        %3190 = vmatpush.msra.mxu0 %v3149
        %3191 = vmatpush.msra.mxu0 %v3148
        %3192 = vmatpush.msra.mxu0 %v3147
        %3193 = vmatpush.msra.mxu0 %v3146
        %3194 = vmatpush.msra.mxu0 %v3145
        %3195 = vmatpush.msra.mxu0 %v3144
        %3196 = vmatpush.msra.mxu0 %v3143
        %3197 = vmatpush.msra.mxu0 %v3142
        %3198 = vmatmul.f32.gmra.mxu0 %v3159
        %v3199 = vpop.f32.mrf.mxu0
        %v3200 = vadd.f32 0.0, %v3199
        %3201 = vmatmul.f32.gmra.mxu0 %v3162
        %v3202 = vpop.f32.mrf.mxu0
        %v3203 = vadd.f32 0.0, %v3202
        %3204 = vmatmul.f32.gmra.mxu0 %v3165
        %v3205 = vpop.f32.mrf.mxu0
        %v3206 = vadd.f32 0.0, %v3205
        %3207 = vmatmul.f32.gmra.mxu0 %v3168
        %v3208 = vpop.f32.mrf.mxu0
        %v3209 = vadd.f32 0.0, %v3208
        %3210 = vmatmul.f32.gmra.mxu0 %v3171
        %v3211 = vpop.f32.mrf.mxu0
        %v3212 = vadd.f32 0.0, %v3211
        %3213 = vmatmul.f32.gmra.mxu0 %v3174
        %v3214 = vpop.f32.mrf.mxu0
        %v3215 = vadd.f32 0.0, %v3214
        %3216 = vmatmul.f32.gmra.mxu0 %v3177
        %v3217 = vpop.f32.mrf.mxu0
        %v3218 = vadd.f32 0.0, %v3217
        %3219 = vmatmul.f32.gmra.mxu0 %v3180
        %v3220 = vpop.f32.mrf.mxu0
        %v3221 = vadd.f32 0.0, %v3220
        %3222 = vdwg.mxu0
        %v3223 = vxor.u32 %v3200, 2147483648
        %v3224 = vxor.u32 %v3203, 2147483648
        %v3225 = vxor.u32 %v3206, 2147483648
        %v3226 = vxor.u32 %v3209, 2147483648
        %v3227 = vxor.u32 %v3212, 2147483648
        %v3228 = vxor.u32 %v3215, 2147483648
        %v3229 = vxor.u32 %v3218, 2147483648
        %v3230 = vxor.u32 %v3221, 2147483648
        %v3231 = vmul.f32 %v3223, 1.442695
        %v3232 = vpow.pop %v3231
        %v3233 = vmul.f32 %v3224, 1.442695
        %v3234 = vpow.pop %v3233
        %v3235 = vmul.f32 %v3225, 1.442695
        %v3236 = vpow.pop %v3235
        %v3237 = vmul.f32 %v3226, 1.442695
        %v3238 = vpow.pop %v3237
        %v3239 = vmul.f32 %v3227, 1.442695
        %v3240 = vpow.pop %v3239
        %v3241 = vmul.f32 %v3228, 1.442695
        %v3242 = vpow.pop %v3241
        %v3243 = vmul.f32 %v3229, 1.442695
        %v3244 = vpow.pop %v3243
        %v3245 = vmul.f32 %v3230, 1.442695
        %v3246 = vpow.pop %v3245
        %v3247 = vadd.f32 %v3232, 1.0
        %v3248 = vadd.f32 %v3234, 1.0
        %v3249 = vadd.f32 %v3236, 1.0
        %v3250 = vadd.f32 %v3238, 1.0
        %v3251 = vadd.f32 %v3240, 1.0
        %v3252 = vadd.f32 %v3242, 1.0
        %v3253 = vadd.f32 %v3244, 1.0
        %v3254 = vadd.f32 %v3246, 1.0
        %v3255 = vrcp.pop %v3247
        %v3256 = vmul.f32 %v3247, %v3255
        %v3257 = vsub.f32 1.0, %v3256
        %v3258 = vmul.f32 %v3255, %v3257
        %v3259 = vadd.f32 %v3255, %v3258
        %vm3260 = vweird.f32 %v3247
        %vm3261 = vweird.f32 %v3255
        %vm3262 = vmor %vm3260, %vm3261
        %v3263 = vsel %vm3262, %v3255, %v3259
        %v3264 = vand.u32 2147483647, %v3247
        %vm3265 = vcmp.eq.f32.partialorder %v3264, 8.507059e+37
        %v3266 = vand.u32 %v3247, 2147483648
        %v3267 = vor.u32 1.1754944e-38, %v3266
        %v3268 = vsel %vm3265, %v3267, %v3263
        %v3269 = vmul.f32 1.0, %v3268
        %v3270 = vrcp.pop %v3248
        %v3271 = vmul.f32 %v3248, %v3270
        %v3272 = vsub.f32 1.0, %v3271
        %v3273 = vmul.f32 %v3270, %v3272
        %v3274 = vadd.f32 %v3270, %v3273
        %vm3275 = vweird.f32 %v3248
        %vm3276 = vweird.f32 %v3270
        %vm3277 = vmor %vm3275, %vm3276
        %v3278 = vsel %vm3277, %v3270, %v3274
        %v3279 = vand.u32 2147483647, %v3248
        %vm3280 = vcmp.eq.f32.partialorder %v3279, 8.507059e+37
        %v3281 = vand.u32 %v3248, 2147483648
        %v3282 = vor.u32 1.1754944e-38, %v3281
        %v3283 = vsel %vm3280, %v3282, %v3278
        %v3284 = vmul.f32 1.0, %v3283
        %v3285 = vrcp.pop %v3249
        %v3286 = vmul.f32 %v3249, %v3285
        %v3287 = vsub.f32 1.0, %v3286
        %v3288 = vmul.f32 %v3285, %v3287
        %v3289 = vadd.f32 %v3285, %v3288
        %vm3290 = vweird.f32 %v3249
        %vm3291 = vweird.f32 %v3285
        %vm3292 = vmor %vm3290, %vm3291
        %v3293 = vsel %vm3292, %v3285, %v3289
        %v3294 = vand.u32 2147483647, %v3249
        %vm3295 = vcmp.eq.f32.partialorder %v3294, 8.507059e+37
        %v3296 = vand.u32 %v3249, 2147483648
        %v3297 = vor.u32 1.1754944e-38, %v3296
        %v3298 = vsel %vm3295, %v3297, %v3293
        %v3299 = vmul.f32 1.0, %v3298
        %v3300 = vrcp.pop %v3250
        %v3301 = vmul.f32 %v3250, %v3300
        %v3302 = vsub.f32 1.0, %v3301
        %v3303 = vmul.f32 %v3300, %v3302
        %v3304 = vadd.f32 %v3300, %v3303
        %vm3305 = vweird.f32 %v3250
        %vm3306 = vweird.f32 %v3300
        %vm3307 = vmor %vm3305, %vm3306
        %v3308 = vsel %vm3307, %v3300, %v3304
        %v3309 = vand.u32 2147483647, %v3250
        %vm3310 = vcmp.eq.f32.partialorder %v3309, 8.507059e+37
        %v3311 = vand.u32 %v3250, 2147483648
        %v3312 = vor.u32 1.1754944e-38, %v3311
        %v3313 = vsel %vm3310, %v3312, %v3308
        %v3314 = vmul.f32 1.0, %v3313
        %v3315 = vrcp.pop %v3251
        %v3316 = vmul.f32 %v3251, %v3315
        %v3317 = vsub.f32 1.0, %v3316
        %v3318 = vmul.f32 %v3315, %v3317
        %v3319 = vadd.f32 %v3315, %v3318
        %vm3320 = vweird.f32 %v3251
        %vm3321 = vweird.f32 %v3315
        %vm3322 = vmor %vm3320, %vm3321
        %v3323 = vsel %vm3322, %v3315, %v3319
        %v3324 = vand.u32 2147483647, %v3251
        %vm3325 = vcmp.eq.f32.partialorder %v3324, 8.507059e+37
        %v3326 = vand.u32 %v3251, 2147483648
        %v3327 = vor.u32 1.1754944e-38, %v3326
        %v3328 = vsel %vm3325, %v3327, %v3323
        %v3329 = vmul.f32 1.0, %v3328
        %v3330 = vrcp.pop %v3252
        %v3331 = vmul.f32 %v3252, %v3330
        %v3332 = vsub.f32 1.0, %v3331
        %v3333 = vmul.f32 %v3330, %v3332
        %v3334 = vadd.f32 %v3330, %v3333
        %vm3335 = vweird.f32 %v3252
        %vm3336 = vweird.f32 %v3330
        %vm3337 = vmor %vm3335, %vm3336
        %v3338 = vsel %vm3337, %v3330, %v3334
        %v3339 = vand.u32 2147483647, %v3252
        %vm3340 = vcmp.eq.f32.partialorder %v3339, 8.507059e+37
        %v3341 = vand.u32 %v3252, 2147483648
        %v3342 = vor.u32 1.1754944e-38, %v3341
        %v3343 = vsel %vm3340, %v3342, %v3338
        %v3344 = vmul.f32 1.0, %v3343
        %v3345 = vrcp.pop %v3253
        %v3346 = vmul.f32 %v3253, %v3345
        %v3347 = vsub.f32 1.0, %v3346
        %v3348 = vmul.f32 %v3345, %v3347
        %v3349 = vadd.f32 %v3345, %v3348
        %vm3350 = vweird.f32 %v3253
        %vm3351 = vweird.f32 %v3345
        %vm3352 = vmor %vm3350, %vm3351
        %v3353 = vsel %vm3352, %v3345, %v3349
        %v3354 = vand.u32 2147483647, %v3253
        %vm3355 = vcmp.eq.f32.partialorder %v3354, 8.507059e+37
        %v3356 = vand.u32 %v3253, 2147483648
        %v3357 = vor.u32 1.1754944e-38, %v3356
        %v3358 = vsel %vm3355, %v3357, %v3353
        %v3359 = vmul.f32 1.0, %v3358
        %v3360 = vrcp.pop %v3254
        %v3361 = vmul.f32 %v3254, %v3360
        %v3362 = vsub.f32 1.0, %v3361
        %v3363 = vmul.f32 %v3360, %v3362
        %v3364 = vadd.f32 %v3360, %v3363
        %vm3365 = vweird.f32 %v3254
        %vm3366 = vweird.f32 %v3360
        %vm3367 = vmor %vm3365, %vm3366
        %v3368 = vsel %vm3367, %v3360, %v3364
        %v3369 = vand.u32 2147483647, %v3254
        %vm3370 = vcmp.eq.f32.partialorder %v3369, 8.507059e+37
        %v3371 = vand.u32 %v3254, 2147483648
        %v3372 = vor.u32 1.1754944e-38, %v3371
        %v3373 = vsel %vm3370, %v3372, %v3368
        %v3374 = vmul.f32 1.0, %v3373
        %v3375 = vld [vmem:[#allocation13] sm:$0xff]
        %3377 = vst [vmem:[#allocation1] ss:$4 sm:$0xff] %v3375
        %v3378 = vld.sshfl [vmem:[#allocation1] sm:$0xff pattern:$0x73625140]
        %v3379 = vld.sshfl [vmem:[#allocation1 + $0x8] sm:$0xff pattern:$0x73625140]
        %v3380 = vld.sshfl [vmem:[#allocation1 + $0x10] sm:$0xff pattern:$0x73625140]
        %v3381 = vld.sshfl [vmem:[#allocation1 + $0x18] sm:$0xff pattern:$0x73625140]
        %v3383 = vsel %vm2680, %v3269, 0
        %v3386 = vsel %vm2680, %v3284, 0
        %v3389 = vsel %vm2680, %v3299, 0
        %v3392 = vsel %vm2680, %v3314, 0
        %v3395 = vsel %vm2680, %v3329, 0
        %v3398 = vsel %vm2680, %v3344, 0
        %v3401 = vsel %vm2680, %v3359, 0
        %v3404 = vsel %vm2680, %v3374, 0
        %v3406 = vsel %vm2705, %v3378, 0
        %v3408 = vsel %vm2705, %v3379, 0
        %v3410 = vsel %vm2705, %v3380, 0
        %v3412 = vsel %vm2705, %v3381, 0
        %3414 = vmatpush.msra.mxu0 0.0
        %3415 = vmatpush.msra.mxu0 0.0
        %3416 = vmatpush.msra.mxu0 0.0
        %3417 = vmatpush.msra.mxu0 0.0
        %3418 = vmatpush.msra.mxu0 0.0
        %3419 = vmatpush.msra.mxu0 0.0
        %3420 = vmatpush.msra.mxu0 0.0
        %3421 = vmatpush.msra.mxu0 0.0
        %3422 = vmatpush.msra.mxu0 0.0
        %3423 = vmatpush.msra.mxu0 0.0
        %3424 = vmatpush.msra.mxu0 0.0
        %3425 = vmatpush.msra.mxu0 0.0
        %3426 = vmatpush.msra.mxu0 0.0
        %3427 = vmatpush.msra.mxu0 0.0
        %3428 = vmatpush.msra.mxu0 0.0
        %3429 = vmatpush.msra.mxu0 %v3406
        %3430 = vmatmul.f32.gmra.mxu0 %v3383
        %v3431 = vpop.f32.mrf.mxu0
        %v3432 = vadd.f32 0.0, %v3431
        %3433 = vmatmul.f32.gmra.mxu0 %v3386
        %v3434 = vpop.f32.mrf.mxu0
        %v3435 = vadd.f32 0.0, %v3434
        %3436 = vmatmul.f32.gmra.mxu0 %v3389
        %v3437 = vpop.f32.mrf.mxu0
        %v3438 = vadd.f32 0.0, %v3437
        %3439 = vmatmul.f32.gmra.mxu0 %v3392
        %v3440 = vpop.f32.mrf.mxu0
        %v3441 = vadd.f32 0.0, %v3440
        %3442 = vmatmul.f32.gmra.mxu0 %v3395
        %v3443 = vpop.f32.mrf.mxu0
        %v3444 = vadd.f32 0.0, %v3443
        %3445 = vmatmul.f32.gmra.mxu0 %v3398
        %v3446 = vpop.f32.mrf.mxu0
        %v3447 = vadd.f32 0.0, %v3446
        %3448 = vmatmul.f32.gmra.mxu0 %v3401
        %v3449 = vpop.f32.mrf.mxu0
        %v3450 = vadd.f32 0.0, %v3449
        %3451 = vmatmul.f32.gmra.mxu0 %v3404
        %v3452 = vpop.f32.mrf.mxu0
        %v3453 = vadd.f32 0.0, %v3452
        %3454 = vdwg.mxu0
        %3455 = vmatpush.msra.mxu0 0.0
        %3456 = vmatpush.msra.mxu0 0.0
        %3457 = vmatpush.msra.mxu0 0.0
        %3458 = vmatpush.msra.mxu0 0.0
        %3459 = vmatpush.msra.mxu0 0.0
        %3460 = vmatpush.msra.mxu0 0.0
        %3461 = vmatpush.msra.mxu0 0.0
        %3462 = vmatpush.msra.mxu0 0.0
        %3463 = vmatpush.msra.mxu0 0.0
        %3464 = vmatpush.msra.mxu0 0.0
        %3465 = vmatpush.msra.mxu0 0.0
        %3466 = vmatpush.msra.mxu0 0.0
        %3467 = vmatpush.msra.mxu0 0.0
        %3468 = vmatpush.msra.mxu0 0.0
        %3469 = vmatpush.msra.mxu0 0.0
        %3470 = vmatpush.msra.mxu0 %v3408
        %3471 = vmatmul.f32.gmra.mxu0 %v3383
        %v3472 = vpop.f32.mrf.mxu0
        %v3473 = vadd.f32 0.0, %v3472
        %3474 = vmatmul.f32.gmra.mxu0 %v3386
        %v3475 = vpop.f32.mrf.mxu0
        %v3476 = vadd.f32 0.0, %v3475
        %3477 = vmatmul.f32.gmra.mxu0 %v3389
        %v3478 = vpop.f32.mrf.mxu0
        %v3479 = vadd.f32 0.0, %v3478
        %3480 = vmatmul.f32.gmra.mxu0 %v3392
        %v3481 = vpop.f32.mrf.mxu0
        %v3482 = vadd.f32 0.0, %v3481
        %3483 = vmatmul.f32.gmra.mxu0 %v3395
        %v3484 = vpop.f32.mrf.mxu0
        %v3485 = vadd.f32 0.0, %v3484
        %3486 = vmatmul.f32.gmra.mxu0 %v3398
        %v3487 = vpop.f32.mrf.mxu0
        %v3488 = vadd.f32 0.0, %v3487
        %3489 = vmatmul.f32.gmra.mxu0 %v3401
        %v3490 = vpop.f32.mrf.mxu0
        %v3491 = vadd.f32 0.0, %v3490
        %3492 = vmatmul.f32.gmra.mxu0 %v3404
        %v3493 = vpop.f32.mrf.mxu0
        %v3494 = vadd.f32 0.0, %v3493
        %3495 = vdwg.mxu0
        %3496 = vmatpush.msra.mxu0 0.0
        %3497 = vmatpush.msra.mxu0 0.0
        %3498 = vmatpush.msra.mxu0 0.0
        %3499 = vmatpush.msra.mxu0 0.0
        %3500 = vmatpush.msra.mxu0 0.0
        %3501 = vmatpush.msra.mxu0 0.0
        %3502 = vmatpush.msra.mxu0 0.0
        %3503 = vmatpush.msra.mxu0 0.0
        %3504 = vmatpush.msra.mxu0 0.0
        %3505 = vmatpush.msra.mxu0 0.0
        %3506 = vmatpush.msra.mxu0 0.0
        %3507 = vmatpush.msra.mxu0 0.0
        %3508 = vmatpush.msra.mxu0 0.0
        %3509 = vmatpush.msra.mxu0 0.0
        %3510 = vmatpush.msra.mxu0 0.0
        %3511 = vmatpush.msra.mxu0 %v3410
        %3512 = vmatmul.f32.gmra.mxu0 %v3383
        %v3513 = vpop.f32.mrf.mxu0
        %v3514 = vadd.f32 0.0, %v3513
        %3515 = vmatmul.f32.gmra.mxu0 %v3386
        %v3516 = vpop.f32.mrf.mxu0
        %v3517 = vadd.f32 0.0, %v3516
        %3518 = vmatmul.f32.gmra.mxu0 %v3389
        %v3519 = vpop.f32.mrf.mxu0
        %v3520 = vadd.f32 0.0, %v3519
        %3521 = vmatmul.f32.gmra.mxu0 %v3392
        %v3522 = vpop.f32.mrf.mxu0
        %v3523 = vadd.f32 0.0, %v3522
        %3524 = vmatmul.f32.gmra.mxu0 %v3395
        %v3525 = vpop.f32.mrf.mxu0
        %v3526 = vadd.f32 0.0, %v3525
        %3527 = vmatmul.f32.gmra.mxu0 %v3398
        %v3528 = vpop.f32.mrf.mxu0
        %v3529 = vadd.f32 0.0, %v3528
        %3530 = vmatmul.f32.gmra.mxu0 %v3401
        %v3531 = vpop.f32.mrf.mxu0
        %v3532 = vadd.f32 0.0, %v3531
        %3533 = vmatmul.f32.gmra.mxu0 %v3404
        %v3534 = vpop.f32.mrf.mxu0
        %v3535 = vadd.f32 0.0, %v3534
        %3536 = vdwg.mxu0
        %3537 = vmatpush.msra.mxu0 0.0
        %3538 = vmatpush.msra.mxu0 0.0
        %3539 = vmatpush.msra.mxu0 0.0
        %3540 = vmatpush.msra.mxu0 0.0
        %3541 = vmatpush.msra.mxu0 0.0
        %3542 = vmatpush.msra.mxu0 0.0
        %3543 = vmatpush.msra.mxu0 0.0
        %3544 = vmatpush.msra.mxu0 0.0
        %3545 = vmatpush.msra.mxu0 0.0
        %3546 = vmatpush.msra.mxu0 0.0
        %3547 = vmatpush.msra.mxu0 0.0
        %3548 = vmatpush.msra.mxu0 0.0
        %3549 = vmatpush.msra.mxu0 0.0
        %3550 = vmatpush.msra.mxu0 0.0
        %3551 = vmatpush.msra.mxu0 0.0
        %3552 = vmatpush.msra.mxu0 %v3412
        %3553 = vmatmul.f32.gmra.mxu0 %v3383
        %v3554 = vpop.f32.mrf.mxu0
        %v3555 = vadd.f32 0.0, %v3554
        %3556 = vmatmul.f32.gmra.mxu0 %v3386
        %v3557 = vpop.f32.mrf.mxu0
        %v3558 = vadd.f32 0.0, %v3557
        %3559 = vmatmul.f32.gmra.mxu0 %v3389
        %v3560 = vpop.f32.mrf.mxu0
        %v3561 = vadd.f32 0.0, %v3560
        %3562 = vmatmul.f32.gmra.mxu0 %v3392
        %v3563 = vpop.f32.mrf.mxu0
        %v3564 = vadd.f32 0.0, %v3563
        %3565 = vmatmul.f32.gmra.mxu0 %v3395
        %v3566 = vpop.f32.mrf.mxu0
        %v3567 = vadd.f32 0.0, %v3566
        %3568 = vmatmul.f32.gmra.mxu0 %v3398
        %v3569 = vpop.f32.mrf.mxu0
        %v3570 = vadd.f32 0.0, %v3569
        %3571 = vmatmul.f32.gmra.mxu0 %v3401
        %v3572 = vpop.f32.mrf.mxu0
        %v3573 = vadd.f32 0.0, %v3572
        %3574 = vmatmul.f32.gmra.mxu0 %v3404
        %v3575 = vpop.f32.mrf.mxu0
        %v3576 = vadd.f32 0.0, %v3575
        %3577 = vdwg.mxu0
        %v3578 = vmul.f32 %v2882, %v3432
        %v3579 = vmul.f32 %v2883, %v3473
        %v3580 = vmul.f32 %v2884, %v3514
        %v3581 = vmul.f32 %v2885, %v3555
        %v3582 = vmul.f32 %v2886, %v3435
        %v3583 = vmul.f32 %v2887, %v3476
        %v3584 = vmul.f32 %v2888, %v3517
        %v3585 = vmul.f32 %v2889, %v3558
        %v3586 = vmul.f32 %v2890, %v3438
        %v3587 = vmul.f32 %v2891, %v3479
        %v3588 = vmul.f32 %v2892, %v3520
        %v3589 = vmul.f32 %v2893, %v3561
        %v3590 = vmul.f32 %v2894, %v3441
        %v3591 = vmul.f32 %v2895, %v3482
        %v3592 = vmul.f32 %v2896, %v3523
        %v3593 = vmul.f32 %v2897, %v3564
        %v3594 = vmul.f32 %v2898, %v3444
        %v3595 = vmul.f32 %v2899, %v3485
        %v3596 = vmul.f32 %v2900, %v3526
        %v3597 = vmul.f32 %v2901, %v3567
        %v3598 = vmul.f32 %v2902, %v3447
        %v3599 = vmul.f32 %v2903, %v3488
        %v3600 = vmul.f32 %v2904, %v3529
        %v3601 = vmul.f32 %v2905, %v3570
        %v3602 = vmul.f32 %v2906, %v3450
        %v3603 = vmul.f32 %v2907, %v3491
        %v3604 = vmul.f32 %v2908, %v3532
        %v3605 = vmul.f32 %v2909, %v3573
        %v3606 = vmul.f32 %v2910, %v3453
        %v3607 = vmul.f32 %v2911, %v3494
        %v3608 = vmul.f32 %v2912, %v3535
        %v3609 = vmul.f32 %v2913, %v3576
        %v3610 = vadd.f32 %v3578, %v3594
        %v3611 = vadd.f32 %v3579, %v3595
        %v3612 = vadd.f32 %v3580, %v3596
        %v3613 = vadd.f32 %v3581, %v3597
        %v3614 = vadd.f32 %v3582, %v3598
        %v3615 = vadd.f32 %v3583, %v3599
        %v3616 = vadd.f32 %v3584, %v3600
        %v3617 = vadd.f32 %v3585, %v3601
        %v3618 = vadd.f32 %v3586, %v3602
        %v3619 = vadd.f32 %v3587, %v3603
        %v3620 = vadd.f32 %v3588, %v3604
        %v3621 = vadd.f32 %v3589, %v3605
        %v3622 = vadd.f32 %v3590, %v3606
        %v3623 = vadd.f32 %v3591, %v3607
        %v3624 = vadd.f32 %v3592, %v3608
        %v3625 = vadd.f32 %v3593, %v3609
        %v3626 = vld [vmem:[%s5] sm:$0xff]
        %v3627 = vld [vmem:[%s5 + $0x8] sm:$0xff]
        %v3628 = vld [vmem:[%s5 + $0x10] sm:$0xff]
        %v3629 = vld [vmem:[%s5 + $0x18] sm:$0xff]
        %v3630 = vld [vmem:[#allocation7] sm:$0xff]
        %v3631 = vld [vmem:[#allocation7 + $0x8] sm:$0xff]
        %v3632 = vld [vmem:[#allocation7 + $0x10] sm:$0xff]
        %v3633 = vld [vmem:[#allocation7 + $0x18] sm:$0xff]
        %v3634 = vld [vmem:[#allocation7 + $0x20] sm:$0xff]
        %v3635 = vld [vmem:[#allocation7 + $0x28] sm:$0xff]
        %v3636 = vld [vmem:[#allocation7 + $0x30] sm:$0xff]
        %v3637 = vld [vmem:[#allocation7 + $0x38] sm:$0xff]
        %v3638 = vld [vmem:[#allocation7 + $0x40] sm:$0xff]
        %v3639 = vld [vmem:[#allocation7 + $0x48] sm:$0xff]
        %v3640 = vld [vmem:[#allocation7 + $0x50] sm:$0xff]
        %v3641 = vld [vmem:[#allocation7 + $0x58] sm:$0xff]
        %v3642 = vld [vmem:[#allocation7 + $0x60] sm:$0xff]
        %v3643 = vld [vmem:[#allocation7 + $0x68] sm:$0xff]
        %v3644 = vld [vmem:[#allocation7 + $0x70] sm:$0xff]
        %v3645 = vld [vmem:[#allocation7 + $0x78] sm:$0xff]
        %3646 = vrot.lane.b32.xlu0 %v3610, 17
        %v3647 = vpop.permute.xlu0 %3646
        %3648 = vrot.lane.b32.xlu0 %v3614, 17
        %v3649 = vpop.permute.xlu0 %3648
        %3650 = vrot.lane.b32.xlu0 %v3618, 17
        %v3651 = vpop.permute.xlu0 %3650
        %3652 = vrot.lane.b32.xlu0 %v3622, 17
        %v3653 = vpop.permute.xlu0 %3652
        %3654 = vrot.lane.b32.xlu0 %v3611, 17
        %v3655 = vpop.permute.xlu0 %3654
        %3656 = vrot.lane.b32.xlu0 %v3615, 17
        %v3657 = vpop.permute.xlu0 %3656
        %3658 = vrot.lane.b32.xlu0 %v3619, 17
        %v3659 = vpop.permute.xlu0 %3658
        %3660 = vrot.lane.b32.xlu0 %v3623, 17
        %v3661 = vpop.permute.xlu0 %3660
        %3662 = vrot.lane.b32.xlu0 %v3612, 17
        %v3663 = vpop.permute.xlu0 %3662
        %3664 = vrot.lane.b32.xlu0 %v3616, 17
        %v3665 = vpop.permute.xlu0 %3664
        %3666 = vrot.lane.b32.xlu0 %v3620, 17
        %v3667 = vpop.permute.xlu0 %3666
        %3668 = vrot.lane.b32.xlu0 %v3624, 17
        %v3669 = vpop.permute.xlu0 %3668
        %3670 = vrot.lane.b32.xlu0 %v3613, 17
        %v3671 = vpop.permute.xlu0 %3670
        %3672 = vrot.lane.b32.xlu0 %v3617, 17
        %v3673 = vpop.permute.xlu0 %3672
        %3674 = vrot.lane.b32.xlu0 %v3621, 17
        %v3675 = vpop.permute.xlu0 %3674
        %3676 = vrot.lane.b32.xlu0 %v3625, 17
        %v3677 = vpop.permute.xlu0 %3676
        %v3678 = vsel %vm887, %v3663, %v3671
        %v3679 = vsel %vm887, %v3665, %v3673
        %v3680 = vsel %vm887, %v3667, %v3675
        %v3681 = vsel %vm887, %v3669, %v3677
        %v3682 = vsel %vm887, %v3655, %v3663
        %v3683 = vsel %vm887, %v3657, %v3665
        %v3684 = vsel %vm887, %v3659, %v3667
        %v3685 = vsel %vm887, %v3661, %v3669
        %v3686 = vsel %vm887, %v3647, %v3655
        %v3687 = vsel %vm887, %v3649, %v3657
        %v3688 = vsel %vm887, %v3651, %v3659
        %v3689 = vsel %vm887, %v3653, %v3661
        %v3690 = vsel %vm887, %v3671, %v3647
        %v3691 = vsel %vm887, %v3673, %v3649
        %v3692 = vsel %vm887, %v3675, %v3651
        %v3693 = vsel %vm887, %v3677, %v3653
        %v3694 = vmul.f32 %v3690, %v3630
        %v3695 = vmul.f32 %v3686, %v3631
        %v3696 = vmul.f32 %v3682, %v3632
        %v3697 = vmul.f32 %v3678, %v3633
        %v3698 = vmul.f32 %v3691, %v3634
        %v3699 = vmul.f32 %v3687, %v3635
        %v3700 = vmul.f32 %v3683, %v3636
        %v3701 = vmul.f32 %v3679, %v3637
        %v3702 = vmul.f32 %v3692, %v3638
        %v3703 = vmul.f32 %v3688, %v3639
        %v3704 = vmul.f32 %v3684, %v3640
        %v3705 = vmul.f32 %v3680, %v3641
        %v3706 = vmul.f32 %v3693, %v3642
        %v3707 = vmul.f32 %v3689, %v3643
        %v3708 = vmul.f32 %v3685, %v3644
        %v3709 = vmul.f32 %v3681, %v3645
        %s3710 = scalar_lea.vmem [#allocation7], 128
        %v3711 = vld [vmem:[%s3710] sm:$0xff]
        %v3712 = vld [vmem:[%s3710 + $0x8] sm:$0xff]
        %v3713 = vld [vmem:[%s3710 + $0x10] sm:$0xff]
        %v3714 = vld [vmem:[%s3710 + $0x18] sm:$0xff]
        %v3715 = vld [vmem:[%s3710 + $0x20] sm:$0xff]
        %v3716 = vld [vmem:[%s3710 + $0x28] sm:$0xff]
        %v3717 = vld [vmem:[%s3710 + $0x30] sm:$0xff]
        %v3718 = vld [vmem:[%s3710 + $0x38] sm:$0xff]
        %v3719 = vld [vmem:[%s3710 + $0x40] sm:$0xff]
        %v3720 = vld [vmem:[%s3710 + $0x48] sm:$0xff]
        %v3721 = vld [vmem:[%s3710 + $0x50] sm:$0xff]
        %v3722 = vld [vmem:[%s3710 + $0x58] sm:$0xff]
        %v3723 = vld [vmem:[%s3710 + $0x60] sm:$0xff]
        %v3724 = vld [vmem:[%s3710 + $0x68] sm:$0xff]
        %v3725 = vld [vmem:[%s3710 + $0x70] sm:$0xff]
        %v3726 = vld [vmem:[%s3710 + $0x78] sm:$0xff]
        %3727 = vrot.lane.b32.xlu0 %v3610, 16
        %v3728 = vpop.permute.xlu0 %3727
        %3729 = vrot.lane.b32.xlu0 %v3614, 16
        %v3730 = vpop.permute.xlu0 %3729
        %3731 = vrot.lane.b32.xlu0 %v3618, 16
        %v3732 = vpop.permute.xlu0 %3731
        %3733 = vrot.lane.b32.xlu0 %v3622, 16
        %v3734 = vpop.permute.xlu0 %3733
        %3735 = vrot.lane.b32.xlu0 %v3611, 16
        %v3736 = vpop.permute.xlu0 %3735
        %3737 = vrot.lane.b32.xlu0 %v3615, 16
        %v3738 = vpop.permute.xlu0 %3737
        %3739 = vrot.lane.b32.xlu0 %v3619, 16
        %v3740 = vpop.permute.xlu0 %3739
        %3741 = vrot.lane.b32.xlu0 %v3623, 16
        %v3742 = vpop.permute.xlu0 %3741
        %3743 = vrot.lane.b32.xlu0 %v3612, 16
        %v3744 = vpop.permute.xlu0 %3743
        %3745 = vrot.lane.b32.xlu0 %v3616, 16
        %v3746 = vpop.permute.xlu0 %3745
        %3747 = vrot.lane.b32.xlu0 %v3620, 16
        %v3748 = vpop.permute.xlu0 %3747
        %3749 = vrot.lane.b32.xlu0 %v3624, 16
        %v3750 = vpop.permute.xlu0 %3749
        %3751 = vrot.lane.b32.xlu0 %v3613, 16
        %v3752 = vpop.permute.xlu0 %3751
        %3753 = vrot.lane.b32.xlu0 %v3617, 16
        %v3754 = vpop.permute.xlu0 %3753
        %3755 = vrot.lane.b32.xlu0 %v3621, 16
        %v3756 = vpop.permute.xlu0 %3755
        %3757 = vrot.lane.b32.xlu0 %v3625, 16
        %v3758 = vpop.permute.xlu0 %3757
        %v3759 = vsel %vm1049, %v3744, %v3752
        %v3760 = vsel %vm1049, %v3746, %v3754
        %v3761 = vsel %vm1049, %v3748, %v3756
        %v3762 = vsel %vm1049, %v3750, %v3758
        %v3763 = vsel %vm1049, %v3736, %v3744
        %v3764 = vsel %vm1049, %v3738, %v3746
        %v3765 = vsel %vm1049, %v3740, %v3748
        %v3766 = vsel %vm1049, %v3742, %v3750
        %v3767 = vsel %vm1049, %v3728, %v3736
        %v3768 = vsel %vm1049, %v3730, %v3738
        %v3769 = vsel %vm1049, %v3732, %v3740
        %v3770 = vsel %vm1049, %v3734, %v3742
        %v3771 = vsel %vm1049, %v3752, %v3728
        %v3772 = vsel %vm1049, %v3754, %v3730
        %v3773 = vsel %vm1049, %v3756, %v3732
        %v3774 = vsel %vm1049, %v3758, %v3734
        %v3775 = vmul.f32 %v3771, %v3711
        %v3776 = vmul.f32 %v3767, %v3712
        %v3777 = vmul.f32 %v3763, %v3713
        %v3778 = vmul.f32 %v3759, %v3714
        %v3779 = vmul.f32 %v3772, %v3715
        %v3780 = vmul.f32 %v3768, %v3716
        %v3781 = vmul.f32 %v3764, %v3717
        %v3782 = vmul.f32 %v3760, %v3718
        %v3783 = vmul.f32 %v3773, %v3719
        %v3784 = vmul.f32 %v3769, %v3720
        %v3785 = vmul.f32 %v3765, %v3721
        %v3786 = vmul.f32 %v3761, %v3722
        %v3787 = vmul.f32 %v3774, %v3723
        %v3788 = vmul.f32 %v3770, %v3724
        %v3789 = vmul.f32 %v3766, %v3725
        %v3790 = vmul.f32 %v3762, %v3726
        %s3791 = scalar_lea.vmem [#allocation7], 256
        %v3792 = vld [vmem:[%s3791] sm:$0xff]
        %v3793 = vld [vmem:[%s3791 + $0x8] sm:$0xff]
        %v3794 = vld [vmem:[%s3791 + $0x10] sm:$0xff]
        %v3795 = vld [vmem:[%s3791 + $0x18] sm:$0xff]
        %v3796 = vld [vmem:[%s3791 + $0x20] sm:$0xff]
        %v3797 = vld [vmem:[%s3791 + $0x28] sm:$0xff]
        %v3798 = vld [vmem:[%s3791 + $0x30] sm:$0xff]
        %v3799 = vld [vmem:[%s3791 + $0x38] sm:$0xff]
        %v3800 = vld [vmem:[%s3791 + $0x40] sm:$0xff]
        %v3801 = vld [vmem:[%s3791 + $0x48] sm:$0xff]
        %v3802 = vld [vmem:[%s3791 + $0x50] sm:$0xff]
        %v3803 = vld [vmem:[%s3791 + $0x58] sm:$0xff]
        %v3804 = vld [vmem:[%s3791 + $0x60] sm:$0xff]
        %v3805 = vld [vmem:[%s3791 + $0x68] sm:$0xff]
        %v3806 = vld [vmem:[%s3791 + $0x70] sm:$0xff]
        %v3807 = vld [vmem:[%s3791 + $0x78] sm:$0xff]
        %3808 = vrot.lane.b32.xlu0 %v3610, 15
        %v3809 = vpop.permute.xlu0 %3808
        %3810 = vrot.lane.b32.xlu0 %v3614, 15
        %v3811 = vpop.permute.xlu0 %3810
        %3812 = vrot.lane.b32.xlu0 %v3618, 15
        %v3813 = vpop.permute.xlu0 %3812
        %3814 = vrot.lane.b32.xlu0 %v3622, 15
        %v3815 = vpop.permute.xlu0 %3814
        %3816 = vrot.lane.b32.xlu0 %v3611, 15
        %v3817 = vpop.permute.xlu0 %3816
        %3818 = vrot.lane.b32.xlu0 %v3615, 15
        %v3819 = vpop.permute.xlu0 %3818
        %3820 = vrot.lane.b32.xlu0 %v3619, 15
        %v3821 = vpop.permute.xlu0 %3820
        %3822 = vrot.lane.b32.xlu0 %v3623, 15
        %v3823 = vpop.permute.xlu0 %3822
        %3824 = vrot.lane.b32.xlu0 %v3612, 15
        %v3825 = vpop.permute.xlu0 %3824
        %3826 = vrot.lane.b32.xlu0 %v3616, 15
        %v3827 = vpop.permute.xlu0 %3826
        %3828 = vrot.lane.b32.xlu0 %v3620, 15
        %v3829 = vpop.permute.xlu0 %3828
        %3830 = vrot.lane.b32.xlu0 %v3624, 15
        %v3831 = vpop.permute.xlu0 %3830
        %3832 = vrot.lane.b32.xlu0 %v3613, 15
        %v3833 = vpop.permute.xlu0 %3832
        %3834 = vrot.lane.b32.xlu0 %v3617, 15
        %v3835 = vpop.permute.xlu0 %3834
        %3836 = vrot.lane.b32.xlu0 %v3621, 15
        %v3837 = vpop.permute.xlu0 %3836
        %3838 = vrot.lane.b32.xlu0 %v3625, 15
        %v3839 = vpop.permute.xlu0 %3838
        %v3840 = vsel %vm1211, %v3825, %v3833
        %v3841 = vsel %vm1211, %v3827, %v3835
        %v3842 = vsel %vm1211, %v3829, %v3837
        %v3843 = vsel %vm1211, %v3831, %v3839
        %v3844 = vsel %vm1211, %v3817, %v3825
        %v3845 = vsel %vm1211, %v3819, %v3827
        %v3846 = vsel %vm1211, %v3821, %v3829
        %v3847 = vsel %vm1211, %v3823, %v3831
        %v3848 = vsel %vm1211, %v3809, %v3817
        %v3849 = vsel %vm1211, %v3811, %v3819
        %v3850 = vsel %vm1211, %v3813, %v3821
        %v3851 = vsel %vm1211, %v3815, %v3823
        %v3852 = vsel %vm1211, %v3833, %v3809
        %v3853 = vsel %vm1211, %v3835, %v3811
        %v3854 = vsel %vm1211, %v3837, %v3813
        %v3855 = vsel %vm1211, %v3839, %v3815
        %v3856 = vmul.f32 %v3852, %v3792
        %v3857 = vmul.f32 %v3848, %v3793
        %v3858 = vmul.f32 %v3844, %v3794
        %v3859 = vmul.f32 %v3840, %v3795
        %v3860 = vmul.f32 %v3853, %v3796
        %v3861 = vmul.f32 %v3849, %v3797
        %v3862 = vmul.f32 %v3845, %v3798
        %v3863 = vmul.f32 %v3841, %v3799
        %v3864 = vmul.f32 %v3854, %v3800
        %v3865 = vmul.f32 %v3850, %v3801
        %v3866 = vmul.f32 %v3846, %v3802
        %v3867 = vmul.f32 %v3842, %v3803
        %v3868 = vmul.f32 %v3855, %v3804
        %v3869 = vmul.f32 %v3851, %v3805
        %v3870 = vmul.f32 %v3847, %v3806
        %v3871 = vmul.f32 %v3843, %v3807
        %s3872 = scalar_lea.vmem [#allocation7], 384
        %v3873 = vld [vmem:[%s3872] sm:$0xff]
        %v3874 = vld [vmem:[%s3872 + $0x8] sm:$0xff]
        %v3875 = vld [vmem:[%s3872 + $0x10] sm:$0xff]
        %v3876 = vld [vmem:[%s3872 + $0x18] sm:$0xff]
        %v3877 = vld [vmem:[%s3872 + $0x20] sm:$0xff]
        %v3878 = vld [vmem:[%s3872 + $0x28] sm:$0xff]
        %v3879 = vld [vmem:[%s3872 + $0x30] sm:$0xff]
        %v3880 = vld [vmem:[%s3872 + $0x38] sm:$0xff]
        %v3881 = vld [vmem:[%s3872 + $0x40] sm:$0xff]
        %v3882 = vld [vmem:[%s3872 + $0x48] sm:$0xff]
        %v3883 = vld [vmem:[%s3872 + $0x50] sm:$0xff]
        %v3884 = vld [vmem:[%s3872 + $0x58] sm:$0xff]
        %v3885 = vld [vmem:[%s3872 + $0x60] sm:$0xff]
        %v3886 = vld [vmem:[%s3872 + $0x68] sm:$0xff]
        %v3887 = vld [vmem:[%s3872 + $0x70] sm:$0xff]
        %v3888 = vld [vmem:[%s3872 + $0x78] sm:$0xff]
        %3889 = vrot.lane.b32.xlu0 %v3610, 1
        %v3890 = vpop.permute.xlu0 %3889
        %3891 = vrot.lane.b32.xlu0 %v3614, 1
        %v3892 = vpop.permute.xlu0 %3891
        %3893 = vrot.lane.b32.xlu0 %v3618, 1
        %v3894 = vpop.permute.xlu0 %3893
        %3895 = vrot.lane.b32.xlu0 %v3622, 1
        %v3896 = vpop.permute.xlu0 %3895
        %3897 = vrot.lane.b32.xlu0 %v3611, 1
        %v3898 = vpop.permute.xlu0 %3897
        %3899 = vrot.lane.b32.xlu0 %v3615, 1
        %v3900 = vpop.permute.xlu0 %3899
        %3901 = vrot.lane.b32.xlu0 %v3619, 1
        %v3902 = vpop.permute.xlu0 %3901
        %3903 = vrot.lane.b32.xlu0 %v3623, 1
        %v3904 = vpop.permute.xlu0 %3903
        %3905 = vrot.lane.b32.xlu0 %v3612, 1
        %v3906 = vpop.permute.xlu0 %3905
        %3907 = vrot.lane.b32.xlu0 %v3616, 1
        %v3908 = vpop.permute.xlu0 %3907
        %3909 = vrot.lane.b32.xlu0 %v3620, 1
        %v3910 = vpop.permute.xlu0 %3909
        %3911 = vrot.lane.b32.xlu0 %v3624, 1
        %v3912 = vpop.permute.xlu0 %3911
        %3913 = vrot.lane.b32.xlu0 %v3613, 1
        %v3914 = vpop.permute.xlu0 %3913
        %3915 = vrot.lane.b32.xlu0 %v3617, 1
        %v3916 = vpop.permute.xlu0 %3915
        %3917 = vrot.lane.b32.xlu0 %v3621, 1
        %v3918 = vpop.permute.xlu0 %3917
        %3919 = vrot.lane.b32.xlu0 %v3625, 1
        %v3920 = vpop.permute.xlu0 %3919
        %v3921 = vsel %vm1405, %v3906, %v3914
        %v3922 = vsel %vm1405, %v3908, %v3916
        %v3923 = vsel %vm1405, %v3910, %v3918
        %v3924 = vsel %vm1405, %v3912, %v3920
        %v3925 = vsel %vm1405, %v3898, %v3906
        %v3926 = vsel %vm1405, %v3900, %v3908
        %v3927 = vsel %vm1405, %v3902, %v3910
        %v3928 = vsel %vm1405, %v3904, %v3912
        %v3929 = vsel %vm1405, %v3890, %v3898
        %v3930 = vsel %vm1405, %v3892, %v3900
        %v3931 = vsel %vm1405, %v3894, %v3902
        %v3932 = vsel %vm1405, %v3896, %v3904
        %v3933 = vsel %vm1405, %v3914, %v3890
        %v3934 = vsel %vm1405, %v3916, %v3892
        %v3935 = vsel %vm1405, %v3918, %v3894
        %v3936 = vsel %vm1405, %v3920, %v3896
        %v3937 = vmul.f32 %v3933, %v3873
        %v3938 = vmul.f32 %v3929, %v3874
        %v3939 = vmul.f32 %v3925, %v3875
        %v3940 = vmul.f32 %v3921, %v3876
        %v3941 = vmul.f32 %v3934, %v3877
        %v3942 = vmul.f32 %v3930, %v3878
        %v3943 = vmul.f32 %v3926, %v3879
        %v3944 = vmul.f32 %v3922, %v3880
        %v3945 = vmul.f32 %v3935, %v3881
        %v3946 = vmul.f32 %v3931, %v3882
        %v3947 = vmul.f32 %v3927, %v3883
        %v3948 = vmul.f32 %v3923, %v3884
        %v3949 = vmul.f32 %v3936, %v3885
        %v3950 = vmul.f32 %v3932, %v3886
        %v3951 = vmul.f32 %v3928, %v3887
        %v3952 = vmul.f32 %v3924, %v3888
        %s3953 = scalar_lea.vmem [#allocation7], 512
        %v3954 = vld [vmem:[%s3953] sm:$0xff]
        %v3955 = vld [vmem:[%s3953 + $0x8] sm:$0xff]
        %v3956 = vld [vmem:[%s3953 + $0x10] sm:$0xff]
        %v3957 = vld [vmem:[%s3953 + $0x18] sm:$0xff]
        %v3958 = vld [vmem:[%s3953 + $0x20] sm:$0xff]
        %v3959 = vld [vmem:[%s3953 + $0x28] sm:$0xff]
        %v3960 = vld [vmem:[%s3953 + $0x30] sm:$0xff]
        %v3961 = vld [vmem:[%s3953 + $0x38] sm:$0xff]
        %v3962 = vld [vmem:[%s3953 + $0x40] sm:$0xff]
        %v3963 = vld [vmem:[%s3953 + $0x48] sm:$0xff]
        %v3964 = vld [vmem:[%s3953 + $0x50] sm:$0xff]
        %v3965 = vld [vmem:[%s3953 + $0x58] sm:$0xff]
        %v3966 = vld [vmem:[%s3953 + $0x60] sm:$0xff]
        %v3967 = vld [vmem:[%s3953 + $0x68] sm:$0xff]
        %v3968 = vld [vmem:[%s3953 + $0x70] sm:$0xff]
        %v3969 = vld [vmem:[%s3953 + $0x78] sm:$0xff]
        %v3970 = vmul.f32 %v3610, %v3954
        %v3971 = vmul.f32 %v3611, %v3955
        %v3972 = vmul.f32 %v3612, %v3956
        %v3973 = vmul.f32 %v3613, %v3957
        %v3974 = vmul.f32 %v3614, %v3958
        %v3975 = vmul.f32 %v3615, %v3959
        %v3976 = vmul.f32 %v3616, %v3960
        %v3977 = vmul.f32 %v3617, %v3961
        %v3978 = vmul.f32 %v3618, %v3962
        %v3979 = vmul.f32 %v3619, %v3963
        %v3980 = vmul.f32 %v3620, %v3964
        %v3981 = vmul.f32 %v3621, %v3965
        %v3982 = vmul.f32 %v3622, %v3966
        %v3983 = vmul.f32 %v3623, %v3967
        %v3984 = vmul.f32 %v3624, %v3968
        %v3985 = vmul.f32 %v3625, %v3969
        %v3986 = vadd.f32 %v3694, %v3970
        %v3987 = vadd.f32 %v3695, %v3971
        %v3988 = vadd.f32 %v3696, %v3972
        %v3989 = vadd.f32 %v3697, %v3973
        %v3990 = vadd.f32 %v3698, %v3974
        %v3991 = vadd.f32 %v3699, %v3975
        %v3992 = vadd.f32 %v3700, %v3976
        %v3993 = vadd.f32 %v3701, %v3977
        %v3994 = vadd.f32 %v3702, %v3978
        %v3995 = vadd.f32 %v3703, %v3979
        %v3996 = vadd.f32 %v3704, %v3980
        %v3997 = vadd.f32 %v3705, %v3981
        %v3998 = vadd.f32 %v3706, %v3982
        %v3999 = vadd.f32 %v3707, %v3983
        %v4000 = vadd.f32 %v3708, %v3984
        %v4001 = vadd.f32 %v3709, %v3985
        %s4002 = scalar_lea.vmem [#allocation7], 640
        %v4003 = vld [vmem:[%s4002] sm:$0xff]
        %v4004 = vld [vmem:[%s4002 + $0x8] sm:$0xff]
        %v4005 = vld [vmem:[%s4002 + $0x10] sm:$0xff]
        %v4006 = vld [vmem:[%s4002 + $0x18] sm:$0xff]
        %v4007 = vld [vmem:[%s4002 + $0x20] sm:$0xff]
        %v4008 = vld [vmem:[%s4002 + $0x28] sm:$0xff]
        %v4009 = vld [vmem:[%s4002 + $0x30] sm:$0xff]
        %v4010 = vld [vmem:[%s4002 + $0x38] sm:$0xff]
        %v4011 = vld [vmem:[%s4002 + $0x40] sm:$0xff]
        %v4012 = vld [vmem:[%s4002 + $0x48] sm:$0xff]
        %v4013 = vld [vmem:[%s4002 + $0x50] sm:$0xff]
        %v4014 = vld [vmem:[%s4002 + $0x58] sm:$0xff]
        %v4015 = vld [vmem:[%s4002 + $0x60] sm:$0xff]
        %v4016 = vld [vmem:[%s4002 + $0x68] sm:$0xff]
        %v4017 = vld [vmem:[%s4002 + $0x70] sm:$0xff]
        %v4018 = vld [vmem:[%s4002 + $0x78] sm:$0xff]
        %4019 = vrot.lane.b32.xlu0 %v3610, 127
        %v4020 = vpop.permute.xlu0 %4019
        %4021 = vrot.lane.b32.xlu0 %v3614, 127
        %v4022 = vpop.permute.xlu0 %4021
        %4023 = vrot.lane.b32.xlu0 %v3618, 127
        %v4024 = vpop.permute.xlu0 %4023
        %4025 = vrot.lane.b32.xlu0 %v3622, 127
        %v4026 = vpop.permute.xlu0 %4025
        %4027 = vrot.lane.b32.xlu0 %v3611, 127
        %v4028 = vpop.permute.xlu0 %4027
        %4029 = vrot.lane.b32.xlu0 %v3615, 127
        %v4030 = vpop.permute.xlu0 %4029
        %4031 = vrot.lane.b32.xlu0 %v3619, 127
        %v4032 = vpop.permute.xlu0 %4031
        %4033 = vrot.lane.b32.xlu0 %v3623, 127
        %v4034 = vpop.permute.xlu0 %4033
        %4035 = vrot.lane.b32.xlu0 %v3612, 127
        %v4036 = vpop.permute.xlu0 %4035
        %4037 = vrot.lane.b32.xlu0 %v3616, 127
        %v4038 = vpop.permute.xlu0 %4037
        %4039 = vrot.lane.b32.xlu0 %v3620, 127
        %v4040 = vpop.permute.xlu0 %4039
        %4041 = vrot.lane.b32.xlu0 %v3624, 127
        %v4042 = vpop.permute.xlu0 %4041
        %4043 = vrot.lane.b32.xlu0 %v3613, 127
        %v4044 = vpop.permute.xlu0 %4043
        %4045 = vrot.lane.b32.xlu0 %v3617, 127
        %v4046 = vpop.permute.xlu0 %4045
        %4047 = vrot.lane.b32.xlu0 %v3621, 127
        %v4048 = vpop.permute.xlu0 %4047
        %4049 = vrot.lane.b32.xlu0 %v3625, 127
        %v4050 = vpop.permute.xlu0 %4049
        %v4051 = vsel %vm1696, %v4036, %v4044
        %v4052 = vsel %vm1696, %v4038, %v4046
        %v4053 = vsel %vm1696, %v4040, %v4048
        %v4054 = vsel %vm1696, %v4042, %v4050
        %v4055 = vsel %vm1696, %v4028, %v4036
        %v4056 = vsel %vm1696, %v4030, %v4038
        %v4057 = vsel %vm1696, %v4032, %v4040
        %v4058 = vsel %vm1696, %v4034, %v4042
        %v4059 = vsel %vm1696, %v4020, %v4028
        %v4060 = vsel %vm1696, %v4022, %v4030
        %v4061 = vsel %vm1696, %v4024, %v4032
        %v4062 = vsel %vm1696, %v4026, %v4034
        %v4063 = vsel %vm1696, %v4044, %v4020
        %v4064 = vsel %vm1696, %v4046, %v4022
        %v4065 = vsel %vm1696, %v4048, %v4024
        %v4066 = vsel %vm1696, %v4050, %v4026
        %v4067 = vmul.f32 %v4059, %v4003
        %v4068 = vmul.f32 %v4055, %v4004
        %v4069 = vmul.f32 %v4051, %v4005
        %v4070 = vmul.f32 %v4063, %v4006
        %v4071 = vmul.f32 %v4060, %v4007
        %v4072 = vmul.f32 %v4056, %v4008
        %v4073 = vmul.f32 %v4052, %v4009
        %v4074 = vmul.f32 %v4064, %v4010
        %v4075 = vmul.f32 %v4061, %v4011
        %v4076 = vmul.f32 %v4057, %v4012
        %v4077 = vmul.f32 %v4053, %v4013
        %v4078 = vmul.f32 %v4065, %v4014
        %v4079 = vmul.f32 %v4062, %v4015
        %v4080 = vmul.f32 %v4058, %v4016
        %v4081 = vmul.f32 %v4054, %v4017
        %v4082 = vmul.f32 %v4066, %v4018
        %v4083 = vadd.f32 %v3775, %v4067
        %v4084 = vadd.f32 %v3776, %v4068
        %v4085 = vadd.f32 %v3777, %v4069
        %v4086 = vadd.f32 %v3778, %v4070
        %v4087 = vadd.f32 %v3779, %v4071
        %v4088 = vadd.f32 %v3780, %v4072
        %v4089 = vadd.f32 %v3781, %v4073
        %v4090 = vadd.f32 %v3782, %v4074
        %v4091 = vadd.f32 %v3783, %v4075
        %v4092 = vadd.f32 %v3784, %v4076
        %v4093 = vadd.f32 %v3785, %v4077
        %v4094 = vadd.f32 %v3786, %v4078
        %v4095 = vadd.f32 %v3787, %v4079
        %v4096 = vadd.f32 %v3788, %v4080
        %v4097 = vadd.f32 %v3789, %v4081
        %v4098 = vadd.f32 %v3790, %v4082
        %s4099 = scalar_lea.vmem [#allocation7], 768
        %v4100 = vld [vmem:[%s4099] sm:$0xff]
        %v4101 = vld [vmem:[%s4099 + $0x8] sm:$0xff]
        %v4102 = vld [vmem:[%s4099 + $0x10] sm:$0xff]
        %v4103 = vld [vmem:[%s4099 + $0x18] sm:$0xff]
        %v4104 = vld [vmem:[%s4099 + $0x20] sm:$0xff]
        %v4105 = vld [vmem:[%s4099 + $0x28] sm:$0xff]
        %v4106 = vld [vmem:[%s4099 + $0x30] sm:$0xff]
        %v4107 = vld [vmem:[%s4099 + $0x38] sm:$0xff]
        %v4108 = vld [vmem:[%s4099 + $0x40] sm:$0xff]
        %v4109 = vld [vmem:[%s4099 + $0x48] sm:$0xff]
        %v4110 = vld [vmem:[%s4099 + $0x50] sm:$0xff]
        %v4111 = vld [vmem:[%s4099 + $0x58] sm:$0xff]
        %v4112 = vld [vmem:[%s4099 + $0x60] sm:$0xff]
        %v4113 = vld [vmem:[%s4099 + $0x68] sm:$0xff]
        %v4114 = vld [vmem:[%s4099 + $0x70] sm:$0xff]
        %v4115 = vld [vmem:[%s4099 + $0x78] sm:$0xff]
        %4116 = vrot.lane.b32.xlu0 %v3610, 113
        %v4117 = vpop.permute.xlu0 %4116
        %4118 = vrot.lane.b32.xlu0 %v3614, 113
        %v4119 = vpop.permute.xlu0 %4118
        %4120 = vrot.lane.b32.xlu0 %v3618, 113
        %v4121 = vpop.permute.xlu0 %4120
        %4122 = vrot.lane.b32.xlu0 %v3622, 113
        %v4123 = vpop.permute.xlu0 %4122
        %4124 = vrot.lane.b32.xlu0 %v3611, 113
        %v4125 = vpop.permute.xlu0 %4124
        %4126 = vrot.lane.b32.xlu0 %v3615, 113
        %v4127 = vpop.permute.xlu0 %4126
        %4128 = vrot.lane.b32.xlu0 %v3619, 113
        %v4129 = vpop.permute.xlu0 %4128
        %4130 = vrot.lane.b32.xlu0 %v3623, 113
        %v4131 = vpop.permute.xlu0 %4130
        %4132 = vrot.lane.b32.xlu0 %v3612, 113
        %v4133 = vpop.permute.xlu0 %4132
        %4134 = vrot.lane.b32.xlu0 %v3616, 113
        %v4135 = vpop.permute.xlu0 %4134
        %4136 = vrot.lane.b32.xlu0 %v3620, 113
        %v4137 = vpop.permute.xlu0 %4136
        %4138 = vrot.lane.b32.xlu0 %v3624, 113
        %v4139 = vpop.permute.xlu0 %4138
        %4140 = vrot.lane.b32.xlu0 %v3613, 113
        %v4141 = vpop.permute.xlu0 %4140
        %4142 = vrot.lane.b32.xlu0 %v3617, 113
        %v4143 = vpop.permute.xlu0 %4142
        %4144 = vrot.lane.b32.xlu0 %v3621, 113
        %v4145 = vpop.permute.xlu0 %4144
        %4146 = vrot.lane.b32.xlu0 %v3625, 113
        %v4147 = vpop.permute.xlu0 %4146
        %v4148 = vsel %vm1890, %v4133, %v4141
        %v4149 = vsel %vm1890, %v4135, %v4143
        %v4150 = vsel %vm1890, %v4137, %v4145
        %v4151 = vsel %vm1890, %v4139, %v4147
        %v4152 = vsel %vm1890, %v4125, %v4133
        %v4153 = vsel %vm1890, %v4127, %v4135
        %v4154 = vsel %vm1890, %v4129, %v4137
        %v4155 = vsel %vm1890, %v4131, %v4139
        %v4156 = vsel %vm1890, %v4117, %v4125
        %v4157 = vsel %vm1890, %v4119, %v4127
        %v4158 = vsel %vm1890, %v4121, %v4129
        %v4159 = vsel %vm1890, %v4123, %v4131
        %v4160 = vsel %vm1890, %v4141, %v4117
        %v4161 = vsel %vm1890, %v4143, %v4119
        %v4162 = vsel %vm1890, %v4145, %v4121
        %v4163 = vsel %vm1890, %v4147, %v4123
        %v4164 = vmul.f32 %v4156, %v4100
        %v4165 = vmul.f32 %v4152, %v4101
        %v4166 = vmul.f32 %v4148, %v4102
        %v4167 = vmul.f32 %v4160, %v4103
        %v4168 = vmul.f32 %v4157, %v4104
        %v4169 = vmul.f32 %v4153, %v4105
        %v4170 = vmul.f32 %v4149, %v4106
        %v4171 = vmul.f32 %v4161, %v4107
        %v4172 = vmul.f32 %v4158, %v4108
        %v4173 = vmul.f32 %v4154, %v4109
        %v4174 = vmul.f32 %v4150, %v4110
        %v4175 = vmul.f32 %v4162, %v4111
        %v4176 = vmul.f32 %v4159, %v4112
        %v4177 = vmul.f32 %v4155, %v4113
        %v4178 = vmul.f32 %v4151, %v4114
        %v4179 = vmul.f32 %v4163, %v4115
        %v4180 = vadd.f32 %v3856, %v4164
        %v4181 = vadd.f32 %v3857, %v4165
        %v4182 = vadd.f32 %v3858, %v4166
        %v4183 = vadd.f32 %v3859, %v4167
        %v4184 = vadd.f32 %v3860, %v4168
        %v4185 = vadd.f32 %v3861, %v4169
        %v4186 = vadd.f32 %v3862, %v4170
        %v4187 = vadd.f32 %v3863, %v4171
        %v4188 = vadd.f32 %v3864, %v4172
        %v4189 = vadd.f32 %v3865, %v4173
        %v4190 = vadd.f32 %v3866, %v4174
        %v4191 = vadd.f32 %v3867, %v4175
        %v4192 = vadd.f32 %v3868, %v4176
        %v4193 = vadd.f32 %v3869, %v4177
        %v4194 = vadd.f32 %v3870, %v4178
        %v4195 = vadd.f32 %v3871, %v4179
        %s4196 = scalar_lea.vmem [#allocation7], 896
        %v4197 = vld [vmem:[%s4196] sm:$0xff]
        %v4198 = vld [vmem:[%s4196 + $0x8] sm:$0xff]
        %v4199 = vld [vmem:[%s4196 + $0x10] sm:$0xff]
        %v4200 = vld [vmem:[%s4196 + $0x18] sm:$0xff]
        %v4201 = vld [vmem:[%s4196 + $0x20] sm:$0xff]
        %v4202 = vld [vmem:[%s4196 + $0x28] sm:$0xff]
        %v4203 = vld [vmem:[%s4196 + $0x30] sm:$0xff]
        %v4204 = vld [vmem:[%s4196 + $0x38] sm:$0xff]
        %v4205 = vld [vmem:[%s4196 + $0x40] sm:$0xff]
        %v4206 = vld [vmem:[%s4196 + $0x48] sm:$0xff]
        %v4207 = vld [vmem:[%s4196 + $0x50] sm:$0xff]
        %v4208 = vld [vmem:[%s4196 + $0x58] sm:$0xff]
        %v4209 = vld [vmem:[%s4196 + $0x60] sm:$0xff]
        %v4210 = vld [vmem:[%s4196 + $0x68] sm:$0xff]
        %v4211 = vld [vmem:[%s4196 + $0x70] sm:$0xff]
        %v4212 = vld [vmem:[%s4196 + $0x78] sm:$0xff]
        %4213 = vrot.lane.b32.xlu0 %v3610, 112
        %v4214 = vpop.permute.xlu0 %4213
        %4215 = vrot.lane.b32.xlu0 %v3614, 112
        %v4216 = vpop.permute.xlu0 %4215
        %4217 = vrot.lane.b32.xlu0 %v3618, 112
        %v4218 = vpop.permute.xlu0 %4217
        %4219 = vrot.lane.b32.xlu0 %v3622, 112
        %v4220 = vpop.permute.xlu0 %4219
        %4221 = vrot.lane.b32.xlu0 %v3611, 112
        %v4222 = vpop.permute.xlu0 %4221
        %4223 = vrot.lane.b32.xlu0 %v3615, 112
        %v4224 = vpop.permute.xlu0 %4223
        %4225 = vrot.lane.b32.xlu0 %v3619, 112
        %v4226 = vpop.permute.xlu0 %4225
        %4227 = vrot.lane.b32.xlu0 %v3623, 112
        %v4228 = vpop.permute.xlu0 %4227
        %4229 = vrot.lane.b32.xlu0 %v3612, 112
        %v4230 = vpop.permute.xlu0 %4229
        %4231 = vrot.lane.b32.xlu0 %v3616, 112
        %v4232 = vpop.permute.xlu0 %4231
        %4233 = vrot.lane.b32.xlu0 %v3620, 112
        %v4234 = vpop.permute.xlu0 %4233
        %4235 = vrot.lane.b32.xlu0 %v3624, 112
        %v4236 = vpop.permute.xlu0 %4235
        %4237 = vrot.lane.b32.xlu0 %v3613, 112
        %v4238 = vpop.permute.xlu0 %4237
        %4239 = vrot.lane.b32.xlu0 %v3617, 112
        %v4240 = vpop.permute.xlu0 %4239
        %4241 = vrot.lane.b32.xlu0 %v3621, 112
        %v4242 = vpop.permute.xlu0 %4241
        %4243 = vrot.lane.b32.xlu0 %v3625, 112
        %v4244 = vpop.permute.xlu0 %4243
        %v4245 = vsel %vm2084, %v4230, %v4238
        %v4246 = vsel %vm2084, %v4232, %v4240
        %v4247 = vsel %vm2084, %v4234, %v4242
        %v4248 = vsel %vm2084, %v4236, %v4244
        %v4249 = vsel %vm2084, %v4222, %v4230
        %v4250 = vsel %vm2084, %v4224, %v4232
        %v4251 = vsel %vm2084, %v4226, %v4234
        %v4252 = vsel %vm2084, %v4228, %v4236
        %v4253 = vsel %vm2084, %v4214, %v4222
        %v4254 = vsel %vm2084, %v4216, %v4224
        %v4255 = vsel %vm2084, %v4218, %v4226
        %v4256 = vsel %vm2084, %v4220, %v4228
        %v4257 = vsel %vm2084, %v4238, %v4214
        %v4258 = vsel %vm2084, %v4240, %v4216
        %v4259 = vsel %vm2084, %v4242, %v4218
        %v4260 = vsel %vm2084, %v4244, %v4220
        %v4261 = vmul.f32 %v4253, %v4197
        %v4262 = vmul.f32 %v4249, %v4198
        %v4263 = vmul.f32 %v4245, %v4199
        %v4264 = vmul.f32 %v4257, %v4200
        %v4265 = vmul.f32 %v4254, %v4201
        %v4266 = vmul.f32 %v4250, %v4202
        %v4267 = vmul.f32 %v4246, %v4203
        %v4268 = vmul.f32 %v4258, %v4204
        %v4269 = vmul.f32 %v4255, %v4205
        %v4270 = vmul.f32 %v4251, %v4206
        %v4271 = vmul.f32 %v4247, %v4207
        %v4272 = vmul.f32 %v4259, %v4208
        %v4273 = vmul.f32 %v4256, %v4209
        %v4274 = vmul.f32 %v4252, %v4210
        %v4275 = vmul.f32 %v4248, %v4211
        %v4276 = vmul.f32 %v4260, %v4212
        %v4277 = vadd.f32 %v3937, %v4261
        %v4278 = vadd.f32 %v3938, %v4262
        %v4279 = vadd.f32 %v3939, %v4263
        %v4280 = vadd.f32 %v3940, %v4264
        %v4281 = vadd.f32 %v3941, %v4265
        %v4282 = vadd.f32 %v3942, %v4266
        %v4283 = vadd.f32 %v3943, %v4267
        %v4284 = vadd.f32 %v3944, %v4268
        %v4285 = vadd.f32 %v3945, %v4269
        %v4286 = vadd.f32 %v3946, %v4270
        %v4287 = vadd.f32 %v3947, %v4271
        %v4288 = vadd.f32 %v3948, %v4272
        %v4289 = vadd.f32 %v3949, %v4273
        %v4290 = vadd.f32 %v3950, %v4274
        %v4291 = vadd.f32 %v3951, %v4275
        %v4292 = vadd.f32 %v3952, %v4276
        %s4293 = scalar_lea.vmem [#allocation7], 1024
        %v4294 = vld [vmem:[%s4293] sm:$0xff]
        %v4295 = vld [vmem:[%s4293 + $0x8] sm:$0xff]
        %v4296 = vld [vmem:[%s4293 + $0x10] sm:$0xff]
        %v4297 = vld [vmem:[%s4293 + $0x18] sm:$0xff]
        %v4298 = vld [vmem:[%s4293 + $0x20] sm:$0xff]
        %v4299 = vld [vmem:[%s4293 + $0x28] sm:$0xff]
        %v4300 = vld [vmem:[%s4293 + $0x30] sm:$0xff]
        %v4301 = vld [vmem:[%s4293 + $0x38] sm:$0xff]
        %v4302 = vld [vmem:[%s4293 + $0x40] sm:$0xff]
        %v4303 = vld [vmem:[%s4293 + $0x48] sm:$0xff]
        %v4304 = vld [vmem:[%s4293 + $0x50] sm:$0xff]
        %v4305 = vld [vmem:[%s4293 + $0x58] sm:$0xff]
        %v4306 = vld [vmem:[%s4293 + $0x60] sm:$0xff]
        %v4307 = vld [vmem:[%s4293 + $0x68] sm:$0xff]
        %v4308 = vld [vmem:[%s4293 + $0x70] sm:$0xff]
        %v4309 = vld [vmem:[%s4293 + $0x78] sm:$0xff]
        %4310 = vrot.lane.b32.xlu0 %v3610, 111
        %v4311 = vpop.permute.xlu0 %4310
        %4312 = vrot.lane.b32.xlu0 %v3614, 111
        %v4313 = vpop.permute.xlu0 %4312
        %4314 = vrot.lane.b32.xlu0 %v3618, 111
        %v4315 = vpop.permute.xlu0 %4314
        %4316 = vrot.lane.b32.xlu0 %v3622, 111
        %v4317 = vpop.permute.xlu0 %4316
        %4318 = vrot.lane.b32.xlu0 %v3611, 111
        %v4319 = vpop.permute.xlu0 %4318
        %4320 = vrot.lane.b32.xlu0 %v3615, 111
        %v4321 = vpop.permute.xlu0 %4320
        %4322 = vrot.lane.b32.xlu0 %v3619, 111
        %v4323 = vpop.permute.xlu0 %4322
        %4324 = vrot.lane.b32.xlu0 %v3623, 111
        %v4325 = vpop.permute.xlu0 %4324
        %4326 = vrot.lane.b32.xlu0 %v3612, 111
        %v4327 = vpop.permute.xlu0 %4326
        %4328 = vrot.lane.b32.xlu0 %v3616, 111
        %v4329 = vpop.permute.xlu0 %4328
        %4330 = vrot.lane.b32.xlu0 %v3620, 111
        %v4331 = vpop.permute.xlu0 %4330
        %4332 = vrot.lane.b32.xlu0 %v3624, 111
        %v4333 = vpop.permute.xlu0 %4332
        %4334 = vrot.lane.b32.xlu0 %v3613, 111
        %v4335 = vpop.permute.xlu0 %4334
        %4336 = vrot.lane.b32.xlu0 %v3617, 111
        %v4337 = vpop.permute.xlu0 %4336
        %4338 = vrot.lane.b32.xlu0 %v3621, 111
        %v4339 = vpop.permute.xlu0 %4338
        %4340 = vrot.lane.b32.xlu0 %v3625, 111
        %v4341 = vpop.permute.xlu0 %4340
        %v4342 = vsel %vm2278, %v4327, %v4335
        %v4343 = vsel %vm2278, %v4329, %v4337
        %v4344 = vsel %vm2278, %v4331, %v4339
        %v4345 = vsel %vm2278, %v4333, %v4341
        %v4346 = vsel %vm2278, %v4319, %v4327
        %v4347 = vsel %vm2278, %v4321, %v4329
        %v4348 = vsel %vm2278, %v4323, %v4331
        %v4349 = vsel %vm2278, %v4325, %v4333
        %v4350 = vsel %vm2278, %v4311, %v4319
        %v4351 = vsel %vm2278, %v4313, %v4321
        %v4352 = vsel %vm2278, %v4315, %v4323
        %v4353 = vsel %vm2278, %v4317, %v4325
        %v4354 = vsel %vm2278, %v4335, %v4311
        %v4355 = vsel %vm2278, %v4337, %v4313
        %v4356 = vsel %vm2278, %v4339, %v4315
        %v4357 = vsel %vm2278, %v4341, %v4317
        %v4358 = vmul.f32 %v4350, %v4294
        %v4359 = vmul.f32 %v4346, %v4295
        %v4360 = vmul.f32 %v4342, %v4296
        %v4361 = vmul.f32 %v4354, %v4297
        %v4362 = vmul.f32 %v4351, %v4298
        %v4363 = vmul.f32 %v4347, %v4299
        %v4364 = vmul.f32 %v4343, %v4300
        %v4365 = vmul.f32 %v4355, %v4301
        %v4366 = vmul.f32 %v4352, %v4302
        %v4367 = vmul.f32 %v4348, %v4303
        %v4368 = vmul.f32 %v4344, %v4304
        %v4369 = vmul.f32 %v4356, %v4305
        %v4370 = vmul.f32 %v4353, %v4306
        %v4371 = vmul.f32 %v4349, %v4307
        %v4372 = vmul.f32 %v4345, %v4308
        %v4373 = vmul.f32 %v4357, %v4309
        %v4374 = vadd.f32 %v3986, %v4358
        %v4375 = vadd.f32 %v3987, %v4359
        %v4376 = vadd.f32 %v3988, %v4360
        %v4377 = vadd.f32 %v3989, %v4361
        %v4378 = vadd.f32 %v3990, %v4362
        %v4379 = vadd.f32 %v3991, %v4363
        %v4380 = vadd.f32 %v3992, %v4364
        %v4381 = vadd.f32 %v3993, %v4365
        %v4382 = vadd.f32 %v3994, %v4366
        %v4383 = vadd.f32 %v3995, %v4367
        %v4384 = vadd.f32 %v3996, %v4368
        %v4385 = vadd.f32 %v3997, %v4369
        %v4386 = vadd.f32 %v3998, %v4370
        %v4387 = vadd.f32 %v3999, %v4371
        %v4388 = vadd.f32 %v4000, %v4372
        %v4389 = vadd.f32 %v4001, %v4373
        %4391 = vset.pattern.permute.xlu0 1
        %4392 = vperm.xlu0 %4391, %v3626
        %v4393 = vpop.permute.xlu0 %4392
        %4396 = vset.pattern.permute.xlu0 1
        %4397 = vperm.xlu0 %4396, %v3627
        %v4398 = vpop.permute.xlu0 %4397
        %4401 = vset.pattern.permute.xlu0 1
        %4402 = vperm.xlu0 %4401, %v3628
        %v4403 = vpop.permute.xlu0 %4402
        %4406 = vset.pattern.permute.xlu0 1
        %4407 = vperm.xlu0 %4406, %v3629
        %v4408 = vpop.permute.xlu0 %4407
        %v4410 = vadd.f32 %v4374, %v4393
        %v4411 = vadd.f32 %v4375, %v4393
        %v4412 = vadd.f32 %v4376, %v4393
        %v4413 = vadd.f32 %v4377, %v4393
        %v4414 = vadd.f32 %v4378, %v4398
        %v4415 = vadd.f32 %v4379, %v4398
        %v4416 = vadd.f32 %v4380, %v4398
        %v4417 = vadd.f32 %v4381, %v4398
        %v4418 = vadd.f32 %v4382, %v4403
        %v4419 = vadd.f32 %v4383, %v4403
        %v4420 = vadd.f32 %v4384, %v4403
        %v4421 = vadd.f32 %v4385, %v4403
        %v4422 = vadd.f32 %v4386, %v4408
        %v4423 = vadd.f32 %v4387, %v4408
        %v4424 = vadd.f32 %v4388, %v4408
        %v4425 = vadd.f32 %v4389, %v4408
        %v4426 = vadd.f32 %v4410, %v4083
        %v4427 = vadd.f32 %v4411, %v4084
        %v4428 = vadd.f32 %v4412, %v4085
        %v4429 = vadd.f32 %v4413, %v4086
        %v4430 = vadd.f32 %v4414, %v4087
        %v4431 = vadd.f32 %v4415, %v4088
        %v4432 = vadd.f32 %v4416, %v4089
        %v4433 = vadd.f32 %v4417, %v4090
        %v4434 = vadd.f32 %v4418, %v4091
        %v4435 = vadd.f32 %v4419, %v4092
        %v4436 = vadd.f32 %v4420, %v4093
        %v4437 = vadd.f32 %v4421, %v4094
        %v4438 = vadd.f32 %v4422, %v4095
        %v4439 = vadd.f32 %v4423, %v4096
        %v4440 = vadd.f32 %v4424, %v4097
        %v4441 = vadd.f32 %v4425, %v4098
        %v4442 = vadd.f32 %v4180, %v4277
        %v4443 = vadd.f32 %v4181, %v4278
        %v4444 = vadd.f32 %v4182, %v4279
        %v4445 = vadd.f32 %v4183, %v4280
        %v4446 = vadd.f32 %v4184, %v4281
        %v4447 = vadd.f32 %v4185, %v4282
        %v4448 = vadd.f32 %v4186, %v4283
        %v4449 = vadd.f32 %v4187, %v4284
        %v4450 = vadd.f32 %v4188, %v4285
        %v4451 = vadd.f32 %v4189, %v4286
        %v4452 = vadd.f32 %v4190, %v4287
        %v4453 = vadd.f32 %v4191, %v4288
        %v4454 = vadd.f32 %v4192, %v4289
        %v4455 = vadd.f32 %v4193, %v4290
        %v4456 = vadd.f32 %v4194, %v4291
        %v4457 = vadd.f32 %v4195, %v4292
        %v4458 = vadd.f32 %v4426, %v4442
        %v4459 = vadd.f32 %v4427, %v4443
        %v4460 = vadd.f32 %v4428, %v4444
        %v4461 = vadd.f32 %v4429, %v4445
        %v4462 = vadd.f32 %v4430, %v4446
        %v4463 = vadd.f32 %v4431, %v4447
        %v4464 = vadd.f32 %v4432, %v4448
        %v4465 = vadd.f32 %v4433, %v4449
        %v4466 = vadd.f32 %v4434, %v4450
        %v4467 = vadd.f32 %v4435, %v4451
        %v4468 = vadd.f32 %v4436, %v4452
        %v4469 = vadd.f32 %v4437, %v4453
        %v4470 = vadd.f32 %v4438, %v4454
        %v4471 = vadd.f32 %v4439, %v4455
        %v4472 = vadd.f32 %v4440, %v4456
        %v4473 = vadd.f32 %v4441, %v4457
        %v4474 = vmul.f32 %v4458, %v611
        %v4475 = vmul.f32 %v4459, %v664
        %v4476 = vmul.f32 %v4460, %v717
        %v4477 = vmul.f32 %v4461, %v770
        %v4478 = vmul.f32 %v4462, %v614
        %v4479 = vmul.f32 %v4463, %v667
        %v4480 = vmul.f32 %v4464, %v720
        %v4481 = vmul.f32 %v4465, %v773
        %v4482 = vmul.f32 %v4466, %v617
        %v4483 = vmul.f32 %v4467, %v670
        %v4484 = vmul.f32 %v4468, %v723
        %v4485 = vmul.f32 %v4469, %v776
        %v4486 = vmul.f32 %v4470, %v620
        %v4487 = vmul.f32 %v4471, %v673
        %v4488 = vmul.f32 %v4472, %v726
        %v4489 = vmul.f32 %v4473, %v779
        %v4490 = vld [vmem:[%s5 + $0x20] sm:$0xff]
        %v4491 = vld [vmem:[%s5 + $0x28] sm:$0xff]
        %v4492 = vld [vmem:[%s5 + $0x30] sm:$0xff]
        %v4493 = vld [vmem:[%s5 + $0x38] sm:$0xff]
        %v4494 = vld [vmem:[#allocation8] sm:$0xff]
        %v4495 = vld [vmem:[#allocation8 + $0x8] sm:$0xff]
        %v4496 = vld [vmem:[#allocation8 + $0x10] sm:$0xff]
        %v4497 = vld [vmem:[#allocation8 + $0x18] sm:$0xff]
        %v4498 = vld [vmem:[#allocation8 + $0x20] sm:$0xff]
        %v4499 = vld [vmem:[#allocation8 + $0x28] sm:$0xff]
        %v4500 = vld [vmem:[#allocation8 + $0x30] sm:$0xff]
        %v4501 = vld [vmem:[#allocation8 + $0x38] sm:$0xff]
        %v4502 = vld [vmem:[#allocation8 + $0x40] sm:$0xff]
        %v4503 = vld [vmem:[#allocation8 + $0x48] sm:$0xff]
        %v4504 = vld [vmem:[#allocation8 + $0x50] sm:$0xff]
        %v4505 = vld [vmem:[#allocation8 + $0x58] sm:$0xff]
        %v4506 = vld [vmem:[#allocation8 + $0x60] sm:$0xff]
        %v4507 = vld [vmem:[#allocation8 + $0x68] sm:$0xff]
        %v4508 = vld [vmem:[#allocation8 + $0x70] sm:$0xff]
        %v4509 = vld [vmem:[#allocation8 + $0x78] sm:$0xff]
        %4510 = vrot.lane.b32.xlu0 %v4474, 17
        %v4511 = vpop.permute.xlu0 %4510
        %4512 = vrot.lane.b32.xlu0 %v4478, 17
        %v4513 = vpop.permute.xlu0 %4512
        %4514 = vrot.lane.b32.xlu0 %v4482, 17
        %v4515 = vpop.permute.xlu0 %4514
        %4516 = vrot.lane.b32.xlu0 %v4486, 17
        %v4517 = vpop.permute.xlu0 %4516
        %4518 = vrot.lane.b32.xlu0 %v4475, 17
        %v4519 = vpop.permute.xlu0 %4518
        %4520 = vrot.lane.b32.xlu0 %v4479, 17
        %v4521 = vpop.permute.xlu0 %4520
        %4522 = vrot.lane.b32.xlu0 %v4483, 17
        %v4523 = vpop.permute.xlu0 %4522
        %4524 = vrot.lane.b32.xlu0 %v4487, 17
        %v4525 = vpop.permute.xlu0 %4524
        %4526 = vrot.lane.b32.xlu0 %v4476, 17
        %v4527 = vpop.permute.xlu0 %4526
        %4528 = vrot.lane.b32.xlu0 %v4480, 17
        %v4529 = vpop.permute.xlu0 %4528
        %4530 = vrot.lane.b32.xlu0 %v4484, 17
        %v4531 = vpop.permute.xlu0 %4530
        %4532 = vrot.lane.b32.xlu0 %v4488, 17
        %v4533 = vpop.permute.xlu0 %4532
        %4534 = vrot.lane.b32.xlu0 %v4477, 17
        %v4535 = vpop.permute.xlu0 %4534
        %4536 = vrot.lane.b32.xlu0 %v4481, 17
        %v4537 = vpop.permute.xlu0 %4536
        %4538 = vrot.lane.b32.xlu0 %v4485, 17
        %v4539 = vpop.permute.xlu0 %4538
        %4540 = vrot.lane.b32.xlu0 %v4489, 17
        %v4541 = vpop.permute.xlu0 %4540
        %v4542 = vsel %vm887, %v4527, %v4535
        %v4543 = vsel %vm887, %v4529, %v4537
        %v4544 = vsel %vm887, %v4531, %v4539
        %v4545 = vsel %vm887, %v4533, %v4541
        %v4546 = vsel %vm887, %v4519, %v4527
        %v4547 = vsel %vm887, %v4521, %v4529
        %v4548 = vsel %vm887, %v4523, %v4531
        %v4549 = vsel %vm887, %v4525, %v4533
        %v4550 = vsel %vm887, %v4511, %v4519
        %v4551 = vsel %vm887, %v4513, %v4521
        %v4552 = vsel %vm887, %v4515, %v4523
        %v4553 = vsel %vm887, %v4517, %v4525
        %v4554 = vsel %vm887, %v4535, %v4511
        %v4555 = vsel %vm887, %v4537, %v4513
        %v4556 = vsel %vm887, %v4539, %v4515
        %v4557 = vsel %vm887, %v4541, %v4517
        %v4558 = vmul.f32 %v4554, %v4494
        %v4559 = vmul.f32 %v4550, %v4495
        %v4560 = vmul.f32 %v4546, %v4496
        %v4561 = vmul.f32 %v4542, %v4497
        %v4562 = vmul.f32 %v4555, %v4498
        %v4563 = vmul.f32 %v4551, %v4499
        %v4564 = vmul.f32 %v4547, %v4500
        %v4565 = vmul.f32 %v4543, %v4501
        %v4566 = vmul.f32 %v4556, %v4502
        %v4567 = vmul.f32 %v4552, %v4503
        %v4568 = vmul.f32 %v4548, %v4504
        %v4569 = vmul.f32 %v4544, %v4505
        %v4570 = vmul.f32 %v4557, %v4506
        %v4571 = vmul.f32 %v4553, %v4507
        %v4572 = vmul.f32 %v4549, %v4508
        %v4573 = vmul.f32 %v4545, %v4509
        %s4574 = scalar_lea.vmem [#allocation8], 128
        %v4575 = vld [vmem:[%s4574] sm:$0xff]
        %v4576 = vld [vmem:[%s4574 + $0x8] sm:$0xff]
        %v4577 = vld [vmem:[%s4574 + $0x10] sm:$0xff]
        %v4578 = vld [vmem:[%s4574 + $0x18] sm:$0xff]
        %v4579 = vld [vmem:[%s4574 + $0x20] sm:$0xff]
        %v4580 = vld [vmem:[%s4574 + $0x28] sm:$0xff]
        %v4581 = vld [vmem:[%s4574 + $0x30] sm:$0xff]
        %v4582 = vld [vmem:[%s4574 + $0x38] sm:$0xff]
        %v4583 = vld [vmem:[%s4574 + $0x40] sm:$0xff]
        %v4584 = vld [vmem:[%s4574 + $0x48] sm:$0xff]
        %v4585 = vld [vmem:[%s4574 + $0x50] sm:$0xff]
        %v4586 = vld [vmem:[%s4574 + $0x58] sm:$0xff]
        %v4587 = vld [vmem:[%s4574 + $0x60] sm:$0xff]
        %v4588 = vld [vmem:[%s4574 + $0x68] sm:$0xff]
        %v4589 = vld [vmem:[%s4574 + $0x70] sm:$0xff]
        %v4590 = vld [vmem:[%s4574 + $0x78] sm:$0xff]
        %4591 = vrot.lane.b32.xlu0 %v4474, 16
        %v4592 = vpop.permute.xlu0 %4591
        %4593 = vrot.lane.b32.xlu0 %v4478, 16
        %v4594 = vpop.permute.xlu0 %4593
        %4595 = vrot.lane.b32.xlu0 %v4482, 16
        %v4596 = vpop.permute.xlu0 %4595
        %4597 = vrot.lane.b32.xlu0 %v4486, 16
        %v4598 = vpop.permute.xlu0 %4597
        %4599 = vrot.lane.b32.xlu0 %v4475, 16
        %v4600 = vpop.permute.xlu0 %4599
        %4601 = vrot.lane.b32.xlu0 %v4479, 16
        %v4602 = vpop.permute.xlu0 %4601
        %4603 = vrot.lane.b32.xlu0 %v4483, 16
        %v4604 = vpop.permute.xlu0 %4603
        %4605 = vrot.lane.b32.xlu0 %v4487, 16
        %v4606 = vpop.permute.xlu0 %4605
        %4607 = vrot.lane.b32.xlu0 %v4476, 16
        %v4608 = vpop.permute.xlu0 %4607
        %4609 = vrot.lane.b32.xlu0 %v4480, 16
        %v4610 = vpop.permute.xlu0 %4609
        %4611 = vrot.lane.b32.xlu0 %v4484, 16
        %v4612 = vpop.permute.xlu0 %4611
        %4613 = vrot.lane.b32.xlu0 %v4488, 16
        %v4614 = vpop.permute.xlu0 %4613
        %4615 = vrot.lane.b32.xlu0 %v4477, 16
        %v4616 = vpop.permute.xlu0 %4615
        %4617 = vrot.lane.b32.xlu0 %v4481, 16
        %v4618 = vpop.permute.xlu0 %4617
        %4619 = vrot.lane.b32.xlu0 %v4485, 16
        %v4620 = vpop.permute.xlu0 %4619
        %4621 = vrot.lane.b32.xlu0 %v4489, 16
        %v4622 = vpop.permute.xlu0 %4621
        %v4623 = vsel %vm1049, %v4608, %v4616
        %v4624 = vsel %vm1049, %v4610, %v4618
        %v4625 = vsel %vm1049, %v4612, %v4620
        %v4626 = vsel %vm1049, %v4614, %v4622
        %v4627 = vsel %vm1049, %v4600, %v4608
        %v4628 = vsel %vm1049, %v4602, %v4610
        %v4629 = vsel %vm1049, %v4604, %v4612
        %v4630 = vsel %vm1049, %v4606, %v4614
        %v4631 = vsel %vm1049, %v4592, %v4600
        %v4632 = vsel %vm1049, %v4594, %v4602
        %v4633 = vsel %vm1049, %v4596, %v4604
        %v4634 = vsel %vm1049, %v4598, %v4606
        %v4635 = vsel %vm1049, %v4616, %v4592
        %v4636 = vsel %vm1049, %v4618, %v4594
        %v4637 = vsel %vm1049, %v4620, %v4596
        %v4638 = vsel %vm1049, %v4622, %v4598
        %v4639 = vmul.f32 %v4635, %v4575
        %v4640 = vmul.f32 %v4631, %v4576
        %v4641 = vmul.f32 %v4627, %v4577
        %v4642 = vmul.f32 %v4623, %v4578
        %v4643 = vmul.f32 %v4636, %v4579
        %v4644 = vmul.f32 %v4632, %v4580
        %v4645 = vmul.f32 %v4628, %v4581
        %v4646 = vmul.f32 %v4624, %v4582
        %v4647 = vmul.f32 %v4637, %v4583
        %v4648 = vmul.f32 %v4633, %v4584
        %v4649 = vmul.f32 %v4629, %v4585
        %v4650 = vmul.f32 %v4625, %v4586
        %v4651 = vmul.f32 %v4638, %v4587
        %v4652 = vmul.f32 %v4634, %v4588
        %v4653 = vmul.f32 %v4630, %v4589
        %v4654 = vmul.f32 %v4626, %v4590
        %s4655 = scalar_lea.vmem [#allocation8], 256
        %v4656 = vld [vmem:[%s4655] sm:$0xff]
        %v4657 = vld [vmem:[%s4655 + $0x8] sm:$0xff]
        %v4658 = vld [vmem:[%s4655 + $0x10] sm:$0xff]
        %v4659 = vld [vmem:[%s4655 + $0x18] sm:$0xff]
        %v4660 = vld [vmem:[%s4655 + $0x20] sm:$0xff]
        %v4661 = vld [vmem:[%s4655 + $0x28] sm:$0xff]
        %v4662 = vld [vmem:[%s4655 + $0x30] sm:$0xff]
        %v4663 = vld [vmem:[%s4655 + $0x38] sm:$0xff]
        %v4664 = vld [vmem:[%s4655 + $0x40] sm:$0xff]
        %v4665 = vld [vmem:[%s4655 + $0x48] sm:$0xff]
        %v4666 = vld [vmem:[%s4655 + $0x50] sm:$0xff]
        %v4667 = vld [vmem:[%s4655 + $0x58] sm:$0xff]
        %v4668 = vld [vmem:[%s4655 + $0x60] sm:$0xff]
        %v4669 = vld [vmem:[%s4655 + $0x68] sm:$0xff]
        %v4670 = vld [vmem:[%s4655 + $0x70] sm:$0xff]
        %v4671 = vld [vmem:[%s4655 + $0x78] sm:$0xff]
        %4672 = vrot.lane.b32.xlu0 %v4474, 15
        %v4673 = vpop.permute.xlu0 %4672
        %4674 = vrot.lane.b32.xlu0 %v4478, 15
        %v4675 = vpop.permute.xlu0 %4674
        %4676 = vrot.lane.b32.xlu0 %v4482, 15
        %v4677 = vpop.permute.xlu0 %4676
        %4678 = vrot.lane.b32.xlu0 %v4486, 15
        %v4679 = vpop.permute.xlu0 %4678
        %4680 = vrot.lane.b32.xlu0 %v4475, 15
        %v4681 = vpop.permute.xlu0 %4680
        %4682 = vrot.lane.b32.xlu0 %v4479, 15
        %v4683 = vpop.permute.xlu0 %4682
        %4684 = vrot.lane.b32.xlu0 %v4483, 15
        %v4685 = vpop.permute.xlu0 %4684
        %4686 = vrot.lane.b32.xlu0 %v4487, 15
        %v4687 = vpop.permute.xlu0 %4686
        %4688 = vrot.lane.b32.xlu0 %v4476, 15
        %v4689 = vpop.permute.xlu0 %4688
        %4690 = vrot.lane.b32.xlu0 %v4480, 15
        %v4691 = vpop.permute.xlu0 %4690
        %4692 = vrot.lane.b32.xlu0 %v4484, 15
        %v4693 = vpop.permute.xlu0 %4692
        %4694 = vrot.lane.b32.xlu0 %v4488, 15
        %v4695 = vpop.permute.xlu0 %4694
        %4696 = vrot.lane.b32.xlu0 %v4477, 15
        %v4697 = vpop.permute.xlu0 %4696
        %4698 = vrot.lane.b32.xlu0 %v4481, 15
        %v4699 = vpop.permute.xlu0 %4698
        %4700 = vrot.lane.b32.xlu0 %v4485, 15
        %v4701 = vpop.permute.xlu0 %4700
        %4702 = vrot.lane.b32.xlu0 %v4489, 15
        %v4703 = vpop.permute.xlu0 %4702
        %v4704 = vsel %vm1211, %v4689, %v4697
        %v4705 = vsel %vm1211, %v4691, %v4699
        %v4706 = vsel %vm1211, %v4693, %v4701
        %v4707 = vsel %vm1211, %v4695, %v4703
        %v4708 = vsel %vm1211, %v4681, %v4689
        %v4709 = vsel %vm1211, %v4683, %v4691
        %v4710 = vsel %vm1211, %v4685, %v4693
        %v4711 = vsel %vm1211, %v4687, %v4695
        %v4712 = vsel %vm1211, %v4673, %v4681
        %v4713 = vsel %vm1211, %v4675, %v4683
        %v4714 = vsel %vm1211, %v4677, %v4685
        %v4715 = vsel %vm1211, %v4679, %v4687
        %v4716 = vsel %vm1211, %v4697, %v4673
        %v4717 = vsel %vm1211, %v4699, %v4675
        %v4718 = vsel %vm1211, %v4701, %v4677
        %v4719 = vsel %vm1211, %v4703, %v4679
        %v4720 = vmul.f32 %v4716, %v4656
        %v4721 = vmul.f32 %v4712, %v4657
        %v4722 = vmul.f32 %v4708, %v4658
        %v4723 = vmul.f32 %v4704, %v4659
        %v4724 = vmul.f32 %v4717, %v4660
        %v4725 = vmul.f32 %v4713, %v4661
        %v4726 = vmul.f32 %v4709, %v4662
        %v4727 = vmul.f32 %v4705, %v4663
        %v4728 = vmul.f32 %v4718, %v4664
        %v4729 = vmul.f32 %v4714, %v4665
        %v4730 = vmul.f32 %v4710, %v4666
        %v4731 = vmul.f32 %v4706, %v4667
        %v4732 = vmul.f32 %v4719, %v4668
        %v4733 = vmul.f32 %v4715, %v4669
        %v4734 = vmul.f32 %v4711, %v4670
        %v4735 = vmul.f32 %v4707, %v4671
        %s4736 = scalar_lea.vmem [#allocation8], 384
        %v4737 = vld [vmem:[%s4736] sm:$0xff]
        %v4738 = vld [vmem:[%s4736 + $0x8] sm:$0xff]
        %v4739 = vld [vmem:[%s4736 + $0x10] sm:$0xff]
        %v4740 = vld [vmem:[%s4736 + $0x18] sm:$0xff]
        %v4741 = vld [vmem:[%s4736 + $0x20] sm:$0xff]
        %v4742 = vld [vmem:[%s4736 + $0x28] sm:$0xff]
        %v4743 = vld [vmem:[%s4736 + $0x30] sm:$0xff]
        %v4744 = vld [vmem:[%s4736 + $0x38] sm:$0xff]
        %v4745 = vld [vmem:[%s4736 + $0x40] sm:$0xff]
        %v4746 = vld [vmem:[%s4736 + $0x48] sm:$0xff]
        %v4747 = vld [vmem:[%s4736 + $0x50] sm:$0xff]
        %v4748 = vld [vmem:[%s4736 + $0x58] sm:$0xff]
        %v4749 = vld [vmem:[%s4736 + $0x60] sm:$0xff]
        %v4750 = vld [vmem:[%s4736 + $0x68] sm:$0xff]
        %v4751 = vld [vmem:[%s4736 + $0x70] sm:$0xff]
        %v4752 = vld [vmem:[%s4736 + $0x78] sm:$0xff]
        %4753 = vrot.lane.b32.xlu0 %v4474, 1
        %v4754 = vpop.permute.xlu0 %4753
        %4755 = vrot.lane.b32.xlu0 %v4478, 1
        %v4756 = vpop.permute.xlu0 %4755
        %4757 = vrot.lane.b32.xlu0 %v4482, 1
        %v4758 = vpop.permute.xlu0 %4757
        %4759 = vrot.lane.b32.xlu0 %v4486, 1
        %v4760 = vpop.permute.xlu0 %4759
        %4761 = vrot.lane.b32.xlu0 %v4475, 1
        %v4762 = vpop.permute.xlu0 %4761
        %4763 = vrot.lane.b32.xlu0 %v4479, 1
        %v4764 = vpop.permute.xlu0 %4763
        %4765 = vrot.lane.b32.xlu0 %v4483, 1
        %v4766 = vpop.permute.xlu0 %4765
        %4767 = vrot.lane.b32.xlu0 %v4487, 1
        %v4768 = vpop.permute.xlu0 %4767
        %4769 = vrot.lane.b32.xlu0 %v4476, 1
        %v4770 = vpop.permute.xlu0 %4769
        %4771 = vrot.lane.b32.xlu0 %v4480, 1
        %v4772 = vpop.permute.xlu0 %4771
        %4773 = vrot.lane.b32.xlu0 %v4484, 1
        %v4774 = vpop.permute.xlu0 %4773
        %4775 = vrot.lane.b32.xlu0 %v4488, 1
        %v4776 = vpop.permute.xlu0 %4775
        %4777 = vrot.lane.b32.xlu0 %v4477, 1
        %v4778 = vpop.permute.xlu0 %4777
        %4779 = vrot.lane.b32.xlu0 %v4481, 1
        %v4780 = vpop.permute.xlu0 %4779
        %4781 = vrot.lane.b32.xlu0 %v4485, 1
        %v4782 = vpop.permute.xlu0 %4781
        %4783 = vrot.lane.b32.xlu0 %v4489, 1
        %v4784 = vpop.permute.xlu0 %4783
        %v4785 = vsel %vm1405, %v4770, %v4778
        %v4786 = vsel %vm1405, %v4772, %v4780
        %v4787 = vsel %vm1405, %v4774, %v4782
        %v4788 = vsel %vm1405, %v4776, %v4784
        %v4789 = vsel %vm1405, %v4762, %v4770
        %v4790 = vsel %vm1405, %v4764, %v4772
        %v4791 = vsel %vm1405, %v4766, %v4774
        %v4792 = vsel %vm1405, %v4768, %v4776
        %v4793 = vsel %vm1405, %v4754, %v4762
        %v4794 = vsel %vm1405, %v4756, %v4764
        %v4795 = vsel %vm1405, %v4758, %v4766
        %v4796 = vsel %vm1405, %v4760, %v4768
        %v4797 = vsel %vm1405, %v4778, %v4754
        %v4798 = vsel %vm1405, %v4780, %v4756
        %v4799 = vsel %vm1405, %v4782, %v4758
        %v4800 = vsel %vm1405, %v4784, %v4760
        %v4801 = vmul.f32 %v4797, %v4737
        %v4802 = vmul.f32 %v4793, %v4738
        %v4803 = vmul.f32 %v4789, %v4739
        %v4804 = vmul.f32 %v4785, %v4740
        %v4805 = vmul.f32 %v4798, %v4741
        %v4806 = vmul.f32 %v4794, %v4742
        %v4807 = vmul.f32 %v4790, %v4743
        %v4808 = vmul.f32 %v4786, %v4744
        %v4809 = vmul.f32 %v4799, %v4745
        %v4810 = vmul.f32 %v4795, %v4746
        %v4811 = vmul.f32 %v4791, %v4747
        %v4812 = vmul.f32 %v4787, %v4748
        %v4813 = vmul.f32 %v4800, %v4749
        %v4814 = vmul.f32 %v4796, %v4750
        %v4815 = vmul.f32 %v4792, %v4751
        %v4816 = vmul.f32 %v4788, %v4752
        %s4817 = scalar_lea.vmem [#allocation8], 512
        %v4818 = vld [vmem:[%s4817] sm:$0xff]
        %v4819 = vld [vmem:[%s4817 + $0x8] sm:$0xff]
        %v4820 = vld [vmem:[%s4817 + $0x10] sm:$0xff]
        %v4821 = vld [vmem:[%s4817 + $0x18] sm:$0xff]
        %v4822 = vld [vmem:[%s4817 + $0x20] sm:$0xff]
        %v4823 = vld [vmem:[%s4817 + $0x28] sm:$0xff]
        %v4824 = vld [vmem:[%s4817 + $0x30] sm:$0xff]
        %v4825 = vld [vmem:[%s4817 + $0x38] sm:$0xff]
        %v4826 = vld [vmem:[%s4817 + $0x40] sm:$0xff]
        %v4827 = vld [vmem:[%s4817 + $0x48] sm:$0xff]
        %v4828 = vld [vmem:[%s4817 + $0x50] sm:$0xff]
        %v4829 = vld [vmem:[%s4817 + $0x58] sm:$0xff]
        %v4830 = vld [vmem:[%s4817 + $0x60] sm:$0xff]
        %v4831 = vld [vmem:[%s4817 + $0x68] sm:$0xff]
        %v4832 = vld [vmem:[%s4817 + $0x70] sm:$0xff]
        %v4833 = vld [vmem:[%s4817 + $0x78] sm:$0xff]
        %v4834 = vmul.f32 %v4474, %v4818
        %v4835 = vmul.f32 %v4475, %v4819
        %v4836 = vmul.f32 %v4476, %v4820
        %v4837 = vmul.f32 %v4477, %v4821
        %v4838 = vmul.f32 %v4478, %v4822
        %v4839 = vmul.f32 %v4479, %v4823
        %v4840 = vmul.f32 %v4480, %v4824
        %v4841 = vmul.f32 %v4481, %v4825
        %v4842 = vmul.f32 %v4482, %v4826
        %v4843 = vmul.f32 %v4483, %v4827
        %v4844 = vmul.f32 %v4484, %v4828
        %v4845 = vmul.f32 %v4485, %v4829
        %v4846 = vmul.f32 %v4486, %v4830
        %v4847 = vmul.f32 %v4487, %v4831
        %v4848 = vmul.f32 %v4488, %v4832
        %v4849 = vmul.f32 %v4489, %v4833
        %v4850 = vadd.f32 %v4558, %v4834
        %v4851 = vadd.f32 %v4559, %v4835
        %v4852 = vadd.f32 %v4560, %v4836
        %v4853 = vadd.f32 %v4561, %v4837
        %v4854 = vadd.f32 %v4562, %v4838
        %v4855 = vadd.f32 %v4563, %v4839
        %v4856 = vadd.f32 %v4564, %v4840
        %v4857 = vadd.f32 %v4565, %v4841
        %v4858 = vadd.f32 %v4566, %v4842
        %v4859 = vadd.f32 %v4567, %v4843
        %v4860 = vadd.f32 %v4568, %v4844
        %v4861 = vadd.f32 %v4569, %v4845
        %v4862 = vadd.f32 %v4570, %v4846
        %v4863 = vadd.f32 %v4571, %v4847
        %v4864 = vadd.f32 %v4572, %v4848
        %v4865 = vadd.f32 %v4573, %v4849
        %s4866 = scalar_lea.vmem [#allocation8], 640
        %v4867 = vld [vmem:[%s4866] sm:$0xff]
        %v4868 = vld [vmem:[%s4866 + $0x8] sm:$0xff]
        %v4869 = vld [vmem:[%s4866 + $0x10] sm:$0xff]
        %v4870 = vld [vmem:[%s4866 + $0x18] sm:$0xff]
        %v4871 = vld [vmem:[%s4866 + $0x20] sm:$0xff]
        %v4872 = vld [vmem:[%s4866 + $0x28] sm:$0xff]
        %v4873 = vld [vmem:[%s4866 + $0x30] sm:$0xff]
        %v4874 = vld [vmem:[%s4866 + $0x38] sm:$0xff]
        %v4875 = vld [vmem:[%s4866 + $0x40] sm:$0xff]
        %v4876 = vld [vmem:[%s4866 + $0x48] sm:$0xff]
        %v4877 = vld [vmem:[%s4866 + $0x50] sm:$0xff]
        %v4878 = vld [vmem:[%s4866 + $0x58] sm:$0xff]
        %v4879 = vld [vmem:[%s4866 + $0x60] sm:$0xff]
        %v4880 = vld [vmem:[%s4866 + $0x68] sm:$0xff]
        %v4881 = vld [vmem:[%s4866 + $0x70] sm:$0xff]
        %v4882 = vld [vmem:[%s4866 + $0x78] sm:$0xff]
        %4883 = vrot.lane.b32.xlu0 %v4474, 127
        %v4884 = vpop.permute.xlu0 %4883
        %4885 = vrot.lane.b32.xlu0 %v4478, 127
        %v4886 = vpop.permute.xlu0 %4885
        %4887 = vrot.lane.b32.xlu0 %v4482, 127
        %v4888 = vpop.permute.xlu0 %4887
        %4889 = vrot.lane.b32.xlu0 %v4486, 127
        %v4890 = vpop.permute.xlu0 %4889
        %4891 = vrot.lane.b32.xlu0 %v4475, 127
        %v4892 = vpop.permute.xlu0 %4891
        %4893 = vrot.lane.b32.xlu0 %v4479, 127
        %v4894 = vpop.permute.xlu0 %4893
        %4895 = vrot.lane.b32.xlu0 %v4483, 127
        %v4896 = vpop.permute.xlu0 %4895
        %4897 = vrot.lane.b32.xlu0 %v4487, 127
        %v4898 = vpop.permute.xlu0 %4897
        %4899 = vrot.lane.b32.xlu0 %v4476, 127
        %v4900 = vpop.permute.xlu0 %4899
        %4901 = vrot.lane.b32.xlu0 %v4480, 127
        %v4902 = vpop.permute.xlu0 %4901
        %4903 = vrot.lane.b32.xlu0 %v4484, 127
        %v4904 = vpop.permute.xlu0 %4903
        %4905 = vrot.lane.b32.xlu0 %v4488, 127
        %v4906 = vpop.permute.xlu0 %4905
        %4907 = vrot.lane.b32.xlu0 %v4477, 127
        %v4908 = vpop.permute.xlu0 %4907
        %4909 = vrot.lane.b32.xlu0 %v4481, 127
        %v4910 = vpop.permute.xlu0 %4909
        %4911 = vrot.lane.b32.xlu0 %v4485, 127
        %v4912 = vpop.permute.xlu0 %4911
        %4913 = vrot.lane.b32.xlu0 %v4489, 127
        %v4914 = vpop.permute.xlu0 %4913
        %v4915 = vsel %vm1696, %v4900, %v4908
        %v4916 = vsel %vm1696, %v4902, %v4910
        %v4917 = vsel %vm1696, %v4904, %v4912
        %v4918 = vsel %vm1696, %v4906, %v4914
        %v4919 = vsel %vm1696, %v4892, %v4900
        %v4920 = vsel %vm1696, %v4894, %v4902
        %v4921 = vsel %vm1696, %v4896, %v4904
        %v4922 = vsel %vm1696, %v4898, %v4906
        %v4923 = vsel %vm1696, %v4884, %v4892
        %v4924 = vsel %vm1696, %v4886, %v4894
        %v4925 = vsel %vm1696, %v4888, %v4896
        %v4926 = vsel %vm1696, %v4890, %v4898
        %v4927 = vsel %vm1696, %v4908, %v4884
        %v4928 = vsel %vm1696, %v4910, %v4886
        %v4929 = vsel %vm1696, %v4912, %v4888
        %v4930 = vsel %vm1696, %v4914, %v4890
        %v4931 = vmul.f32 %v4923, %v4867
        %v4932 = vmul.f32 %v4919, %v4868
        %v4933 = vmul.f32 %v4915, %v4869
        %v4934 = vmul.f32 %v4927, %v4870
        %v4935 = vmul.f32 %v4924, %v4871
        %v4936 = vmul.f32 %v4920, %v4872
        %v4937 = vmul.f32 %v4916, %v4873
        %v4938 = vmul.f32 %v4928, %v4874
        %v4939 = vmul.f32 %v4925, %v4875
        %v4940 = vmul.f32 %v4921, %v4876
        %v4941 = vmul.f32 %v4917, %v4877
        %v4942 = vmul.f32 %v4929, %v4878
        %v4943 = vmul.f32 %v4926, %v4879
        %v4944 = vmul.f32 %v4922, %v4880
        %v4945 = vmul.f32 %v4918, %v4881
        %v4946 = vmul.f32 %v4930, %v4882
        %v4947 = vadd.f32 %v4639, %v4931
        %v4948 = vadd.f32 %v4640, %v4932
        %v4949 = vadd.f32 %v4641, %v4933
        %v4950 = vadd.f32 %v4642, %v4934
        %v4951 = vadd.f32 %v4643, %v4935
        %v4952 = vadd.f32 %v4644, %v4936
        %v4953 = vadd.f32 %v4645, %v4937
        %v4954 = vadd.f32 %v4646, %v4938
        %v4955 = vadd.f32 %v4647, %v4939
        %v4956 = vadd.f32 %v4648, %v4940
        %v4957 = vadd.f32 %v4649, %v4941
        %v4958 = vadd.f32 %v4650, %v4942
        %v4959 = vadd.f32 %v4651, %v4943
        %v4960 = vadd.f32 %v4652, %v4944
        %v4961 = vadd.f32 %v4653, %v4945
        %v4962 = vadd.f32 %v4654, %v4946
        %s4963 = scalar_lea.vmem [#allocation8], 768
        %v4964 = vld [vmem:[%s4963] sm:$0xff]
        %v4965 = vld [vmem:[%s4963 + $0x8] sm:$0xff]
        %v4966 = vld [vmem:[%s4963 + $0x10] sm:$0xff]
        %v4967 = vld [vmem:[%s4963 + $0x18] sm:$0xff]
        %v4968 = vld [vmem:[%s4963 + $0x20] sm:$0xff]
        %v4969 = vld [vmem:[%s4963 + $0x28] sm:$0xff]
        %v4970 = vld [vmem:[%s4963 + $0x30] sm:$0xff]
        %v4971 = vld [vmem:[%s4963 + $0x38] sm:$0xff]
        %v4972 = vld [vmem:[%s4963 + $0x40] sm:$0xff]
        %v4973 = vld [vmem:[%s4963 + $0x48] sm:$0xff]
        %v4974 = vld [vmem:[%s4963 + $0x50] sm:$0xff]
        %v4975 = vld [vmem:[%s4963 + $0x58] sm:$0xff]
        %v4976 = vld [vmem:[%s4963 + $0x60] sm:$0xff]
        %v4977 = vld [vmem:[%s4963 + $0x68] sm:$0xff]
        %v4978 = vld [vmem:[%s4963 + $0x70] sm:$0xff]
        %v4979 = vld [vmem:[%s4963 + $0x78] sm:$0xff]
        %4980 = vrot.lane.b32.xlu0 %v4474, 113
        %v4981 = vpop.permute.xlu0 %4980
        %4982 = vrot.lane.b32.xlu0 %v4478, 113
        %v4983 = vpop.permute.xlu0 %4982
        %4984 = vrot.lane.b32.xlu0 %v4482, 113
        %v4985 = vpop.permute.xlu0 %4984
        %4986 = vrot.lane.b32.xlu0 %v4486, 113
        %v4987 = vpop.permute.xlu0 %4986
        %4988 = vrot.lane.b32.xlu0 %v4475, 113
        %v4989 = vpop.permute.xlu0 %4988
        %4990 = vrot.lane.b32.xlu0 %v4479, 113
        %v4991 = vpop.permute.xlu0 %4990
        %4992 = vrot.lane.b32.xlu0 %v4483, 113
        %v4993 = vpop.permute.xlu0 %4992
        %4994 = vrot.lane.b32.xlu0 %v4487, 113
        %v4995 = vpop.permute.xlu0 %4994
        %4996 = vrot.lane.b32.xlu0 %v4476, 113
        %v4997 = vpop.permute.xlu0 %4996
        %4998 = vrot.lane.b32.xlu0 %v4480, 113
        %v4999 = vpop.permute.xlu0 %4998
        %5000 = vrot.lane.b32.xlu0 %v4484, 113
        %v5001 = vpop.permute.xlu0 %5000
        %5002 = vrot.lane.b32.xlu0 %v4488, 113
        %v5003 = vpop.permute.xlu0 %5002
        %5004 = vrot.lane.b32.xlu0 %v4477, 113
        %v5005 = vpop.permute.xlu0 %5004
        %5006 = vrot.lane.b32.xlu0 %v4481, 113
        %v5007 = vpop.permute.xlu0 %5006
        %5008 = vrot.lane.b32.xlu0 %v4485, 113
        %v5009 = vpop.permute.xlu0 %5008
        %5010 = vrot.lane.b32.xlu0 %v4489, 113
        %v5011 = vpop.permute.xlu0 %5010
        %v5012 = vsel %vm1890, %v4997, %v5005
        %v5013 = vsel %vm1890, %v4999, %v5007
        %v5014 = vsel %vm1890, %v5001, %v5009
        %v5015 = vsel %vm1890, %v5003, %v5011
        %v5016 = vsel %vm1890, %v4989, %v4997
        %v5017 = vsel %vm1890, %v4991, %v4999
        %v5018 = vsel %vm1890, %v4993, %v5001
        %v5019 = vsel %vm1890, %v4995, %v5003
        %v5020 = vsel %vm1890, %v4981, %v4989
        %v5021 = vsel %vm1890, %v4983, %v4991
        %v5022 = vsel %vm1890, %v4985, %v4993
        %v5023 = vsel %vm1890, %v4987, %v4995
        %v5024 = vsel %vm1890, %v5005, %v4981
        %v5025 = vsel %vm1890, %v5007, %v4983
        %v5026 = vsel %vm1890, %v5009, %v4985
        %v5027 = vsel %vm1890, %v5011, %v4987
        %v5028 = vmul.f32 %v5020, %v4964
        %v5029 = vmul.f32 %v5016, %v4965
        %v5030 = vmul.f32 %v5012, %v4966
        %v5031 = vmul.f32 %v5024, %v4967
        %v5032 = vmul.f32 %v5021, %v4968
        %v5033 = vmul.f32 %v5017, %v4969
        %v5034 = vmul.f32 %v5013, %v4970
        %v5035 = vmul.f32 %v5025, %v4971
        %v5036 = vmul.f32 %v5022, %v4972
        %v5037 = vmul.f32 %v5018, %v4973
        %v5038 = vmul.f32 %v5014, %v4974
        %v5039 = vmul.f32 %v5026, %v4975
        %v5040 = vmul.f32 %v5023, %v4976
        %v5041 = vmul.f32 %v5019, %v4977
        %v5042 = vmul.f32 %v5015, %v4978
        %v5043 = vmul.f32 %v5027, %v4979
        %v5044 = vadd.f32 %v4720, %v5028
        %v5045 = vadd.f32 %v4721, %v5029
        %v5046 = vadd.f32 %v4722, %v5030
        %v5047 = vadd.f32 %v4723, %v5031
        %v5048 = vadd.f32 %v4724, %v5032
        %v5049 = vadd.f32 %v4725, %v5033
        %v5050 = vadd.f32 %v4726, %v5034
        %v5051 = vadd.f32 %v4727, %v5035
        %v5052 = vadd.f32 %v4728, %v5036
        %v5053 = vadd.f32 %v4729, %v5037
        %v5054 = vadd.f32 %v4730, %v5038
        %v5055 = vadd.f32 %v4731, %v5039
        %v5056 = vadd.f32 %v4732, %v5040
        %v5057 = vadd.f32 %v4733, %v5041
        %v5058 = vadd.f32 %v4734, %v5042
        %v5059 = vadd.f32 %v4735, %v5043
        %s5060 = scalar_lea.vmem [#allocation8], 896
        %v5061 = vld [vmem:[%s5060] sm:$0xff]
        %v5062 = vld [vmem:[%s5060 + $0x8] sm:$0xff]
        %v5063 = vld [vmem:[%s5060 + $0x10] sm:$0xff]
        %v5064 = vld [vmem:[%s5060 + $0x18] sm:$0xff]
        %v5065 = vld [vmem:[%s5060 + $0x20] sm:$0xff]
        %v5066 = vld [vmem:[%s5060 + $0x28] sm:$0xff]
        %v5067 = vld [vmem:[%s5060 + $0x30] sm:$0xff]
        %v5068 = vld [vmem:[%s5060 + $0x38] sm:$0xff]
        %v5069 = vld [vmem:[%s5060 + $0x40] sm:$0xff]
        %v5070 = vld [vmem:[%s5060 + $0x48] sm:$0xff]
        %v5071 = vld [vmem:[%s5060 + $0x50] sm:$0xff]
        %v5072 = vld [vmem:[%s5060 + $0x58] sm:$0xff]
        %v5073 = vld [vmem:[%s5060 + $0x60] sm:$0xff]
        %v5074 = vld [vmem:[%s5060 + $0x68] sm:$0xff]
        %v5075 = vld [vmem:[%s5060 + $0x70] sm:$0xff]
        %v5076 = vld [vmem:[%s5060 + $0x78] sm:$0xff]
        %5077 = vrot.lane.b32.xlu0 %v4474, 112
        %v5078 = vpop.permute.xlu0 %5077
        %5079 = vrot.lane.b32.xlu0 %v4478, 112
        %v5080 = vpop.permute.xlu0 %5079
        %5081 = vrot.lane.b32.xlu0 %v4482, 112
        %v5082 = vpop.permute.xlu0 %5081
        %5083 = vrot.lane.b32.xlu0 %v4486, 112
        %v5084 = vpop.permute.xlu0 %5083
        %5085 = vrot.lane.b32.xlu0 %v4475, 112
        %v5086 = vpop.permute.xlu0 %5085
        %5087 = vrot.lane.b32.xlu0 %v4479, 112
        %v5088 = vpop.permute.xlu0 %5087
        %5089 = vrot.lane.b32.xlu0 %v4483, 112
        %v5090 = vpop.permute.xlu0 %5089
        %5091 = vrot.lane.b32.xlu0 %v4487, 112
        %v5092 = vpop.permute.xlu0 %5091
        %5093 = vrot.lane.b32.xlu0 %v4476, 112
        %v5094 = vpop.permute.xlu0 %5093
        %5095 = vrot.lane.b32.xlu0 %v4480, 112
        %v5096 = vpop.permute.xlu0 %5095
        %5097 = vrot.lane.b32.xlu0 %v4484, 112
        %v5098 = vpop.permute.xlu0 %5097
        %5099 = vrot.lane.b32.xlu0 %v4488, 112
        %v5100 = vpop.permute.xlu0 %5099
        %5101 = vrot.lane.b32.xlu0 %v4477, 112
        %v5102 = vpop.permute.xlu0 %5101
        %5103 = vrot.lane.b32.xlu0 %v4481, 112
        %v5104 = vpop.permute.xlu0 %5103
        %5105 = vrot.lane.b32.xlu0 %v4485, 112
        %v5106 = vpop.permute.xlu0 %5105
        %5107 = vrot.lane.b32.xlu0 %v4489, 112
        %v5108 = vpop.permute.xlu0 %5107
        %v5109 = vsel %vm2084, %v5094, %v5102
        %v5110 = vsel %vm2084, %v5096, %v5104
        %v5111 = vsel %vm2084, %v5098, %v5106
        %v5112 = vsel %vm2084, %v5100, %v5108
        %v5113 = vsel %vm2084, %v5086, %v5094
        %v5114 = vsel %vm2084, %v5088, %v5096
        %v5115 = vsel %vm2084, %v5090, %v5098
        %v5116 = vsel %vm2084, %v5092, %v5100
        %v5117 = vsel %vm2084, %v5078, %v5086
        %v5118 = vsel %vm2084, %v5080, %v5088
        %v5119 = vsel %vm2084, %v5082, %v5090
        %v5120 = vsel %vm2084, %v5084, %v5092
        %v5121 = vsel %vm2084, %v5102, %v5078
        %v5122 = vsel %vm2084, %v5104, %v5080
        %v5123 = vsel %vm2084, %v5106, %v5082
        %v5124 = vsel %vm2084, %v5108, %v5084
        %v5125 = vmul.f32 %v5117, %v5061
        %v5126 = vmul.f32 %v5113, %v5062
        %v5127 = vmul.f32 %v5109, %v5063
        %v5128 = vmul.f32 %v5121, %v5064
        %v5129 = vmul.f32 %v5118, %v5065
        %v5130 = vmul.f32 %v5114, %v5066
        %v5131 = vmul.f32 %v5110, %v5067
        %v5132 = vmul.f32 %v5122, %v5068
        %v5133 = vmul.f32 %v5119, %v5069
        %v5134 = vmul.f32 %v5115, %v5070
        %v5135 = vmul.f32 %v5111, %v5071
        %v5136 = vmul.f32 %v5123, %v5072
        %v5137 = vmul.f32 %v5120, %v5073
        %v5138 = vmul.f32 %v5116, %v5074
        %v5139 = vmul.f32 %v5112, %v5075
        %v5140 = vmul.f32 %v5124, %v5076
        %v5141 = vadd.f32 %v4801, %v5125
        %v5142 = vadd.f32 %v4802, %v5126
        %v5143 = vadd.f32 %v4803, %v5127
        %v5144 = vadd.f32 %v4804, %v5128
        %v5145 = vadd.f32 %v4805, %v5129
        %v5146 = vadd.f32 %v4806, %v5130
        %v5147 = vadd.f32 %v4807, %v5131
        %v5148 = vadd.f32 %v4808, %v5132
        %v5149 = vadd.f32 %v4809, %v5133
        %v5150 = vadd.f32 %v4810, %v5134
        %v5151 = vadd.f32 %v4811, %v5135
        %v5152 = vadd.f32 %v4812, %v5136
        %v5153 = vadd.f32 %v4813, %v5137
        %v5154 = vadd.f32 %v4814, %v5138
        %v5155 = vadd.f32 %v4815, %v5139
        %v5156 = vadd.f32 %v4816, %v5140
        %s5157 = scalar_lea.vmem [#allocation8], 1024
        %v5158 = vld [vmem:[%s5157] sm:$0xff]
        %v5159 = vld [vmem:[%s5157 + $0x8] sm:$0xff]
        %v5160 = vld [vmem:[%s5157 + $0x10] sm:$0xff]
        %v5161 = vld [vmem:[%s5157 + $0x18] sm:$0xff]
        %v5162 = vld [vmem:[%s5157 + $0x20] sm:$0xff]
        %v5163 = vld [vmem:[%s5157 + $0x28] sm:$0xff]
        %v5164 = vld [vmem:[%s5157 + $0x30] sm:$0xff]
        %v5165 = vld [vmem:[%s5157 + $0x38] sm:$0xff]
        %v5166 = vld [vmem:[%s5157 + $0x40] sm:$0xff]
        %v5167 = vld [vmem:[%s5157 + $0x48] sm:$0xff]
        %v5168 = vld [vmem:[%s5157 + $0x50] sm:$0xff]
        %v5169 = vld [vmem:[%s5157 + $0x58] sm:$0xff]
        %v5170 = vld [vmem:[%s5157 + $0x60] sm:$0xff]
        %v5171 = vld [vmem:[%s5157 + $0x68] sm:$0xff]
        %v5172 = vld [vmem:[%s5157 + $0x70] sm:$0xff]
        %v5173 = vld [vmem:[%s5157 + $0x78] sm:$0xff]
        %5174 = vrot.lane.b32.xlu0 %v4474, 111
        %v5175 = vpop.permute.xlu0 %5174
        %5176 = vrot.lane.b32.xlu0 %v4478, 111
        %v5177 = vpop.permute.xlu0 %5176
        %5178 = vrot.lane.b32.xlu0 %v4482, 111
        %v5179 = vpop.permute.xlu0 %5178
        %5180 = vrot.lane.b32.xlu0 %v4486, 111
        %v5181 = vpop.permute.xlu0 %5180
        %5182 = vrot.lane.b32.xlu0 %v4475, 111
        %v5183 = vpop.permute.xlu0 %5182
        %5184 = vrot.lane.b32.xlu0 %v4479, 111
        %v5185 = vpop.permute.xlu0 %5184
        %5186 = vrot.lane.b32.xlu0 %v4483, 111
        %v5187 = vpop.permute.xlu0 %5186
        %5188 = vrot.lane.b32.xlu0 %v4487, 111
        %v5189 = vpop.permute.xlu0 %5188
        %5190 = vrot.lane.b32.xlu0 %v4476, 111
        %v5191 = vpop.permute.xlu0 %5190
        %5192 = vrot.lane.b32.xlu0 %v4480, 111
        %v5193 = vpop.permute.xlu0 %5192
        %5194 = vrot.lane.b32.xlu0 %v4484, 111
        %v5195 = vpop.permute.xlu0 %5194
        %5196 = vrot.lane.b32.xlu0 %v4488, 111
        %v5197 = vpop.permute.xlu0 %5196
        %5198 = vrot.lane.b32.xlu0 %v4477, 111
        %v5199 = vpop.permute.xlu0 %5198
        %5200 = vrot.lane.b32.xlu0 %v4481, 111
        %v5201 = vpop.permute.xlu0 %5200
        %5202 = vrot.lane.b32.xlu0 %v4485, 111
        %v5203 = vpop.permute.xlu0 %5202
        %5204 = vrot.lane.b32.xlu0 %v4489, 111
        %v5205 = vpop.permute.xlu0 %5204
        %v5206 = vsel %vm2278, %v5191, %v5199
        %v5207 = vsel %vm2278, %v5193, %v5201
        %v5208 = vsel %vm2278, %v5195, %v5203
        %v5209 = vsel %vm2278, %v5197, %v5205
        %v5210 = vsel %vm2278, %v5183, %v5191
        %v5211 = vsel %vm2278, %v5185, %v5193
        %v5212 = vsel %vm2278, %v5187, %v5195
        %v5213 = vsel %vm2278, %v5189, %v5197
        %v5214 = vsel %vm2278, %v5175, %v5183
        %v5215 = vsel %vm2278, %v5177, %v5185
        %v5216 = vsel %vm2278, %v5179, %v5187
        %v5217 = vsel %vm2278, %v5181, %v5189
        %v5218 = vsel %vm2278, %v5199, %v5175
        %v5219 = vsel %vm2278, %v5201, %v5177
        %v5220 = vsel %vm2278, %v5203, %v5179
        %v5221 = vsel %vm2278, %v5205, %v5181
        %v5222 = vmul.f32 %v5214, %v5158
        %v5223 = vmul.f32 %v5210, %v5159
        %v5224 = vmul.f32 %v5206, %v5160
        %v5225 = vmul.f32 %v5218, %v5161
        %v5226 = vmul.f32 %v5215, %v5162
        %v5227 = vmul.f32 %v5211, %v5163
        %v5228 = vmul.f32 %v5207, %v5164
        %v5229 = vmul.f32 %v5219, %v5165
        %v5230 = vmul.f32 %v5216, %v5166
        %v5231 = vmul.f32 %v5212, %v5167
        %v5232 = vmul.f32 %v5208, %v5168
        %v5233 = vmul.f32 %v5220, %v5169
        %v5234 = vmul.f32 %v5217, %v5170
        %v5235 = vmul.f32 %v5213, %v5171
        %v5236 = vmul.f32 %v5209, %v5172
        %v5237 = vmul.f32 %v5221, %v5173
        %v5238 = vadd.f32 %v4850, %v5222
        %v5239 = vadd.f32 %v4851, %v5223
        %v5240 = vadd.f32 %v4852, %v5224
        %v5241 = vadd.f32 %v4853, %v5225
        %v5242 = vadd.f32 %v4854, %v5226
        %v5243 = vadd.f32 %v4855, %v5227
        %v5244 = vadd.f32 %v4856, %v5228
        %v5245 = vadd.f32 %v4857, %v5229
        %v5246 = vadd.f32 %v4858, %v5230
        %v5247 = vadd.f32 %v4859, %v5231
        %v5248 = vadd.f32 %v4860, %v5232
        %v5249 = vadd.f32 %v4861, %v5233
        %v5250 = vadd.f32 %v4862, %v5234
        %v5251 = vadd.f32 %v4863, %v5235
        %v5252 = vadd.f32 %v4864, %v5236
        %v5253 = vadd.f32 %v4865, %v5237
        %5255 = vset.pattern.permute.xlu0 1
        %5256 = vperm.xlu0 %5255, %v4490
        %v5257 = vpop.permute.xlu0 %5256
        %5260 = vset.pattern.permute.xlu0 1
        %5261 = vperm.xlu0 %5260, %v4491
        %v5262 = vpop.permute.xlu0 %5261
        %5265 = vset.pattern.permute.xlu0 1
        %5266 = vperm.xlu0 %5265, %v4492
        %v5267 = vpop.permute.xlu0 %5266
        %5270 = vset.pattern.permute.xlu0 1
        %5271 = vperm.xlu0 %5270, %v4493
        %v5272 = vpop.permute.xlu0 %5271
        %v5274 = vadd.f32 %v5238, %v5257
        %v5275 = vadd.f32 %v5239, %v5257
        %v5276 = vadd.f32 %v5240, %v5257
        %v5277 = vadd.f32 %v5241, %v5257
        %v5278 = vadd.f32 %v5242, %v5262
        %v5279 = vadd.f32 %v5243, %v5262
        %v5280 = vadd.f32 %v5244, %v5262
        %v5281 = vadd.f32 %v5245, %v5262
        %v5282 = vadd.f32 %v5246, %v5267
        %v5283 = vadd.f32 %v5247, %v5267
        %v5284 = vadd.f32 %v5248, %v5267
        %v5285 = vadd.f32 %v5249, %v5267
        %v5286 = vadd.f32 %v5250, %v5272
        %v5287 = vadd.f32 %v5251, %v5272
        %v5288 = vadd.f32 %v5252, %v5272
        %v5289 = vadd.f32 %v5253, %v5272
        %v5290 = vadd.f32 %v5274, %v4947
        %v5291 = vadd.f32 %v5275, %v4948
        %v5292 = vadd.f32 %v5276, %v4949
        %v5293 = vadd.f32 %v5277, %v4950
        %v5294 = vadd.f32 %v5278, %v4951
        %v5295 = vadd.f32 %v5279, %v4952
        %v5296 = vadd.f32 %v5280, %v4953
        %v5297 = vadd.f32 %v5281, %v4954
        %v5298 = vadd.f32 %v5282, %v4955
        %v5299 = vadd.f32 %v5283, %v4956
        %v5300 = vadd.f32 %v5284, %v4957
        %v5301 = vadd.f32 %v5285, %v4958
        %v5302 = vadd.f32 %v5286, %v4959
        %v5303 = vadd.f32 %v5287, %v4960
        %v5304 = vadd.f32 %v5288, %v4961
        %v5305 = vadd.f32 %v5289, %v4962
        %v5306 = vadd.f32 %v5044, %v5141
        %v5307 = vadd.f32 %v5045, %v5142
        %v5308 = vadd.f32 %v5046, %v5143
        %v5309 = vadd.f32 %v5047, %v5144
        %v5310 = vadd.f32 %v5048, %v5145
        %v5311 = vadd.f32 %v5049, %v5146
        %v5312 = vadd.f32 %v5050, %v5147
        %v5313 = vadd.f32 %v5051, %v5148
        %v5314 = vadd.f32 %v5052, %v5149
        %v5315 = vadd.f32 %v5053, %v5150
        %v5316 = vadd.f32 %v5054, %v5151
        %v5317 = vadd.f32 %v5055, %v5152
        %v5318 = vadd.f32 %v5056, %v5153
        %v5319 = vadd.f32 %v5057, %v5154
        %v5320 = vadd.f32 %v5058, %v5155
        %v5321 = vadd.f32 %v5059, %v5156
        %v5322 = vadd.f32 %v5290, %v5306
        %v5323 = vadd.f32 %v5291, %v5307
        %v5324 = vadd.f32 %v5292, %v5308
        %v5325 = vadd.f32 %v5293, %v5309
        %v5326 = vadd.f32 %v5294, %v5310
        %v5327 = vadd.f32 %v5295, %v5311
        %v5328 = vadd.f32 %v5296, %v5312
        %v5329 = vadd.f32 %v5297, %v5313
        %v5330 = vadd.f32 %v5298, %v5314
        %v5331 = vadd.f32 %v5299, %v5315
        %v5332 = vadd.f32 %v5300, %v5316
        %v5333 = vadd.f32 %v5301, %v5317
        %v5334 = vadd.f32 %v5302, %v5318
        %v5335 = vadd.f32 %v5303, %v5319
        %v5336 = vadd.f32 %v5304, %v5320
        %v5337 = vadd.f32 %v5305, %v5321
        %5338 = vst [vmem:[%s501] sm:$0xff] %v5322
        %5339 = vst [vmem:[%s501 + $0x8] sm:$0xff] %v5323
        %5340 = vst [vmem:[%s501 + $0x10] sm:$0xff] %v5324
        %5341 = vst [vmem:[%s501 + $0x18] sm:$0xff] %v5325
        %5342 = vst [vmem:[%s501 + $0x20] sm:$0xff] %v5326
        %5343 = vst [vmem:[%s501 + $0x28] sm:$0xff] %v5327
        %5344 = vst [vmem:[%s501 + $0x30] sm:$0xff] %v5328
        %5345 = vst [vmem:[%s501 + $0x38] sm:$0xff] %v5329
        %5346 = vst [vmem:[%s501 + $0x40] sm:$0xff] %v5330
        %5347 = vst [vmem:[%s501 + $0x48] sm:$0xff] %v5331
        %5348 = vst [vmem:[%s501 + $0x50] sm:$0xff] %v5332
        %5349 = vst [vmem:[%s501 + $0x58] sm:$0xff] %v5333
        %5350 = vst [vmem:[%s501 + $0x60] sm:$0xff] %v5334
        %5351 = vst [vmem:[%s501 + $0x68] sm:$0xff] %v5335
        %5352 = vst [vmem:[%s501 + $0x70] sm:$0xff] %v5336
        %5353 = vst [vmem:[%s501 + $0x78] sm:$0xff] %v5337
        %s5354 = sand.u32 %s275, 1
        %s5355 = scalar_lea.sflag [#allocation4], %s5354
        %s5356 = sand.u32 %s275, 1
        %s5357 = smul.addr %s5356, 128
        %s5358 = scalar_lea.vmem [#allocation14], %s5357
        // Predicated region
        $region93: #{tpu_custom_call.1} parent=63 // pred_check
          %p5359 = pneg %p285
        $region94: #{tpu_custom_call.1} parent=63 // pred_check_branch
          %5361 = sbr.rel (%p5359) target = $region96
        $region95: #{tpu_custom_call.1} parent=63 // pred_region
          %s5362 = smul.u32 4, %s31
          %5364 = vsyncadd %s5355, 0
          %s5365 = smul.addr %s5362, 8
          %s5366 = scalar_lea.hbm %s11, %s5365
          %s5367 = sshll.u32 %s5358, 4
          %s5368 = int_to_ptr.vmem [resolvable:$true] %s5367
          %s5369 = sshll.u32 %s5366, 4
          %s5370 = int_to_ptr.hbm [resolvable:$true] %s5369
          %5375 = dma.vmem_to_hbm [thread:$0]  %s5368, 2048, %s5370, %s5355, 512, 1024, 32
        $region96: #{tpu_custom_call.1} parent=63 // pred_fallthru
          _
      $region64: #{tpu_custom_call.1} parent=5 // pred_fallthru
        _
      %p5376 = scmp.le.s32.totalorder 2, %s26
      // Predicated region
      $region97: #{tpu_custom_call.1} parent=5 // pred_check
        %p5377 = pneg %p5376
      $region98: #{tpu_custom_call.1} parent=5 // pred_check_branch
        %5379 = sbr.rel (%p5377) target = $region100
      $region99: #{tpu_custom_call.1} parent=5 // pred_region
        %s5380 = ssub.s32 %s26, 2
        // Predicated region
        $region101: #{tpu_custom_call.1} parent=99 // pred_check
          %p5381 = pneg %p291
        $region102: #{tpu_custom_call.1} parent=99 // pred_check_branch
          %5383 = sbr.rel (%p5381) target = $region104
        $region103: #{tpu_custom_call.1} parent=99 // pred_region
          %s5384 = sand.u32 %s276, 1
          %s5385 = scalar_lea.sflag [#allocation4], %s5384
          %s5386 = sand.u32 %s276, 1
          %s5387 = smul.addr %s5386, 128
          %s5388 = scalar_lea.vmem [#allocation14], %s5387
          %5390 = dma.done %s5385, 2048
        $region104: #{tpu_custom_call.1} parent=99 // pred_fallthru
          _
      $region100: #{tpu_custom_call.1} parent=5 // pred_fallthru
        _
    $region6: #{tpu_custom_call.1} parent=1 // loop_footer
      %s30 = sadd.s32 1, %s26
    $region7: #{tpu_custom_call.1} parent=1 // loop_footer_branch
      %25 = sbr.rel target = $region3
    $region8: #{tpu_custom_call.1} parent=1 // loop_exit
      _
    %5391 = vsyncpa [#allocation3], 1
    %s5392 = scalar_lea.sflag [#allocation3], 1
    %5393 = vsyncpa %s5392, 1
    %5394 = vsyncpa [#allocation6], 1
    %5395 = vsyncpa [#allocation9], 1
    %5396 = vsyncpa [#allocation12], 1
    %5397 = vsyncpa [#allocation4], 1
    %s5398 = scalar_lea.sflag [#allocation4], 1
    %5399 = vsyncpa %s5398, 1

</llo_original>
